<compile_context>
chip_gen: v6e
topology: v6e:2x2x1
jax: 0.10.0
libtpu: 0.0.40
codegen_flags: <defaults>
</compile_context>

<pallas_src>
import functools

import jax
import jax.numpy as jnp
from jax.experimental import pallas as pl


# ----------------------------------------------------------------------------
# Fused GATBlock kernel (single invocation, whole working set in VMEM)
# ----------------------------------------------------------------------------
def _gat_block_kernel(
    # data
    x_ref,        # (N, D)      node features
    ea_ref,       # (N*N, D)    dense edge attrs, row (d*N+s) = attr of edge s->d
    mask_ref,     # (N*N, 1)    additive mask: 0 on edges/self-loops, -1e30 else
    rel_ref,      # (R, D)      relation features
    # GATv2Conv parameters
    wl_ref, bl_ref,       # lin_l: (D, H*C), (1, H*C)
    wr_ref, br_ref,       # lin_r: (D, H*C), (1, H*C)
    we_ref,               # lin_edge (no bias): (D, H*C)
    attm_ref,             # (H*C, H) block-diagonal attention vectors
    # constant 0/1 selection / reduction matrices
    dstb_ref,             # (N*N, N)  row (d,s) -> picks d
    srcb_ref,             # (N*N, N)  row (d,s) -> picks s
    gsum_ref,             # (N, N*N)  sums all rows of one destination group
    hrep_ref,             # (H, H*C)  repeats a per-head scalar across its C lanes
    hmean_ref,            # (H*C, C)  mean over heads (1/H folded in)
    bias_ref,             # (1, C)    conv output bias
    # relation-MLP parameters
    wblk_ref, bblk_ref,   # block.lin_edge: (H*C, D), (1, D)
    # outputs
    xo_ref,               # (N, C)
    ro_ref,               # (R, D)
):
    f32 = jnp.float32

    def mm(a, b):
        return jnp.dot(a, b, preferred_element_type=f32)

    we = we_ref[...]
    gsum = gsum_ref[...]
    hrep = hrep_ref[...]

    # Fused input projections, lane-dense over heads*channels (H*C lanes).
    xl = mm(x_ref[...], wl_ref[...]) + bl_ref[...]          # (N, H*C)   lin_l(x)
    xr = mm(x_ref[...], wr_ref[...]) + br_ref[...]          # (N, H*C)   lin_r(x)
    ep = mm(ea_ref[...], we)                                # (N*N, H*C) lin_edge(e)

    # Broadcast xr to every source / xl to every destination with 0/1 matmuls
    # (keeps the whole score computation 2-D and on the MXU).
    xr_rep = mm(dstb_ref[...], xr)                          # row (d,s) -> xr[d]
    xl_rep = mm(srcb_ref[...], xl)                          # row (d,s) -> xl[s]

    # GATv2 score: a_h . leaky_relu(x_r[d] + x_l[s] + e_{s->d}); the C-reduction
    # is an MXU matmul against the block-diagonal attention matrix.
    s = xr_rep + xl_rep + ep
    s = jnp.where(s > 0, s, 0.2 * s)                        # leaky_relu(slope=0.2)
    score = mm(s, attm_ref[...]) + mask_ref[...]            # (N*N, H)

    # Softmax over sources for each (destination, head).  Stabilised with the
    # global max (exact here; masked entries sit near -1e30 and underflow to 0).
    # TODO(synk): a per-destination max would need an (N*N,H)<->(N,N,H) value
    # reshape or a dst-tiled grid; only relevant for adversarially-scaled scores.
    gmax = jnp.max(jnp.max(score, axis=1, keepdims=True), axis=0, keepdims=True)
    p = jnp.exp(score - gmax)                               # (N*N, H)
    denom = mm(gsum, p)                                     # (N, H) sum over sources

    # Aggregate sum_s alpha_{d,s,h} * x_l[s, h*C+c]; normalisation applied after
    # the group sum, per-head weights repeated across their C lanes via hrep.
    num = mm(gsum, mm(p, hrep) * xl_rep)                    # (N, H*C)
    heads_out = num / mm(denom, hrep)                       # (N, H*C)

    # concat=False -> mean over heads (1/H folded into hmean) + output bias.
    xo_ref[...] = mm(heads_out, hmean_ref[...]) + bias_ref[...]

    # Relation branch: block.lin_edge(relu(gnn.lin_edge(relations))).
    r_h = jnp.maximum(mm(rel_ref[...], we), 0.0)
    ro_ref[...] = mm(r_h, wblk_ref[...]) + bblk_ref[...]


# ----------------------------------------------------------------------------
# GATBlock forward: light JAX preprocessing (no scatters) + one Pallas call
# ----------------------------------------------------------------------------
def gat_block_forward(params, x, edge_index, relations, relation_index):
    f32 = jnp.float32
    N, D = x.shape
    H = params["n_head"]
    C = D
    src, dst = edge_index[0], edge_index[1]

    # --- dense edge-attribute table & mask, built with one-hot matmuls --------
    edge_attr = relations[relation_index]                                   # (E, D)
    node_ids = jnp.arange(N)
    dst_oh = (dst[:, None] == node_ids[None, :]).astype(f32)                # (E, N)
    src_oh = (src[:, None] == node_ids[None, :]).astype(f32)                # (E, N)

    # add_self_loops(fill_value='mean'): self-loop attr = mean of incoming attrs.
    deg = dst_oh.sum(axis=0)                                                # (N,)
    loop_attr = (dst_oh.T @ edge_attr) / jnp.maximum(deg, 1.0)[:, None]     # (N, D)

    # pair_oh[d*N+s, e] = 1 iff edge e is (src=s -> dst=d)
    pair_oh = (dst_oh[:, :, None] * src_oh[:, None, :]).reshape(-1, N * N).T
    eye_nn = jnp.eye(N, dtype=f32)
    eattr_dense = (pair_oh @ edge_attr
                   + (eye_nn[:, :, None] * loop_attr[:, None, :]).reshape(N * N, D))
    # TODO(synk): duplicate (dst, src) edges are summed here; PyG softmaxes them
    # as separate edges (harness generates unique edges, matching the reference).
    adj = pair_oh.sum(axis=1, keepdims=True) + eye_nn.reshape(N * N, 1)     # (N*N, 1)
    add_mask = jnp.where(adj > 0, 0.0, -1e30).astype(f32)                   # (N*N, 1)

    # --- constant selection / reduction matrices (entries 0/1 or 1/H) ---------
    rows = jnp.arange(N * N)
    dstb = ((rows // N)[:, None] == node_ids[None, :]).astype(f32)          # (N*N, N)
    srcb = ((rows % N)[:, None] == node_ids[None, :]).astype(f32)           # (N*N, N)
    gsum = dstb.T                                                           # (N, N*N)
    hrep = (jnp.arange(H)[:, None]
            == (jnp.arange(H * C) // C)[None, :]).astype(f32)               # (H, H*C)
    attm = hrep.T * params["att"].reshape(H * C, 1)                         # (H*C, H)
    hmean = jnp.tile(jnp.eye(C, dtype=f32), (H, 1)) / H                     # (H*C, C)

    x_out, rel_out = pl.pallas_call(
        _gat_block_kernel,
        out_shape=(jax.ShapeDtypeStruct((N, C), f32),
                   jax.ShapeDtypeStruct((relations.shape[0], D), f32)),
        # grid=() + default whole-array VMEM blocks: everything fits on-chip.
    )(x, eattr_dense, add_mask, relations,
      params["w_l"], params["b_l"][None, :],
      params["w_r"], params["b_r"][None, :],
      params["w_e"], attm,
      dstb, srcb, gsum, hrep, hmean,
      params["bias"][None, :],
      params["w_blk"], params["b_blk"][None, :])
    return x_out, rel_out


# ----------------------------------------------------------------------------
# Pure-JAX reference (edge-wise, PyG-style) for validation
# ----------------------------------------------------------------------------
def reference_forward(params, x, edge_index, relations, relation_index):
    hdot = functools.partial(jnp.dot, precision=jax.lax.Precision.HIGHEST)
    N, D = x.shape
    H = params["n_head"]
    src, dst = edge_index[0], edge_index[1]
    E = src.shape[0]

    edge_attr = relations[relation_index]
    deg = jax.ops.segment_sum(jnp.ones((E,), jnp.float32), dst, num_segments=N)
    loop_attr = (jax.ops.segment_sum(edge_attr, dst, num_segments=N)
                 / jnp.maximum(deg, 1.0)[:, None])
    iota = jnp.arange(N, dtype=src.dtype)
    src_all = jnp.concatenate([src, iota])
    dst_all = jnp.concatenate([dst, iota])
    eattr_all = jnp.concatenate([edge_attr, loop_attr], axis=0)

    xl = (hdot(x, params["w_l"]) + params["b_l"]).reshape(N, H, D)
    xr = (hdot(x, params["w_r"]) + params["b_r"]).reshape(N, H, D)
    ep = hdot(eattr_all, params["w_e"]).reshape(-1, H, D)
    att = params["att"].reshape(1, H, D)

    s = xr[dst_all] + xl[src_all] + ep
    s = jnp.where(s > 0, s, 0.2 * s)
    score = jnp.sum(s * att, axis=-1)                                       # (E+N, H)
    smax = jax.ops.segment_max(score, dst_all, num_segments=N)
    p = jnp.exp(score - smax[dst_all])
    denom = jax.ops.segment_sum(p, dst_all, num_segments=N)
    alpha = p / denom[dst_all]
    out = jax.ops.segment_sum(alpha[:, :, None] * xl[src_all], dst_all,
                              num_segments=N)                               # (N, H, D)
    x_ref = out.mean(axis=1) + params["bias"]

    rel = (hdot(jnp.maximum(hdot(relations, params["w_e"]), 0.0), params["w_blk"])
           + params["b_blk"])
    return x_ref, rel


# ----------------------------------------------------------------------------
if __name__ == "__main__":
    N, D, H, R, E = 16, 32, 8, 8, 48  # nodes, dim, heads, relations, edges

    key = jax.random.PRNGKey(0)
    keys = jax.random.split(key, 12)

    x = jax.random.normal(keys[0], (N, D), jnp.float32)
    relations = jax.random.normal(keys[1], (R, D), jnp.float32)

    # unique directed edges without self loops (duplicate-free by construction)
    pair_ids = jax.random.permutation(keys[2], N * (N - 1))[:E]
    src = (pair_ids // (N - 1)).astype(jnp.int32)
    off = (pair_ids % (N - 1)).astype(jnp.int32)
    dst = jnp.where(off >= src, off + 1, off).astype(jnp.int32)
    edge_index = jnp.stack([src, dst], axis=0)
    relation_index = jax.random.randint(keys[3], (E,), 0, R, dtype=jnp.int32)

    def glorot(k, shape):
        lim = (6.0 / (shape[0] + shape[1])) ** 0.5
        return jax.random.uniform(k, shape, jnp.float32, -lim, lim)

    params = {
        "n_head": H,
        # GATv2Conv(dim, dim, heads=H, concat=False, edge_dim=dim)
        "w_l": glorot(keys[4], (D, H * D)),                 # lin_l weight (transposed)
        "b_l": 0.01 * jax.random.normal(keys[5], (H * D,), jnp.float32),
        "w_r": glorot(keys[6], (D, H * D)),                 # lin_r weight (transposed)
        "b_r": 0.01 * jax.random.normal(keys[7], (H * D,), jnp.float32),
        "w_e": glorot(keys[8], (D, H * D)),                 # gnn.lin_edge (no bias)
        "att": glorot(keys[9], (H, D)),                     # attention vector
        "bias": 0.01 * jax.random.normal(keys[10], (D,), jnp.float32),
        # GATBlock.lin_edge : Linear(H*dim, dim)
        "w_blk": glorot(keys[11], (H * D, D)),
        "b_blk": jnp.full((D,), 0.05, jnp.float32),
    }

    x_out, rel_out = gat_block_forward(params, x, edge_index, relations, relation_index)
    jax.block_until_ready((x_out, rel_out))

    x_ref, rel_ref = reference_forward(params, x, edge_index, relations, relation_index)
    assert x_out.shape == (N, D) and rel_out.shape == (R, D)
    # Tolerance covers default (bf16-pass) MXU matmul precision in the kernel;
    # the reference is computed with HIGHEST-precision dots.
    assert jnp.allclose(x_out, x_ref, atol=2e-2, rtol=2e-2), "node output mismatch"
    assert jnp.allclose(rel_out, rel_ref, atol=2e-2, rtol=2e-2), "relation output mismatch"

    print("KERNEL_OK")
</pallas_src>

<mosaic_0001>
module attributes {stable_mosaic.version = 11 : i64} {
  func.func @_gat_block_kernel(%arg0: memref<16x32xf32, #tpu.memory_space<vmem>>, %arg1: memref<256x32xf32, #tpu.memory_space<vmem>>, %arg2: memref<256x1xf32, #tpu.memory_space<vmem>>, %arg3: memref<8x32xf32, #tpu.memory_space<vmem>>, %arg4: memref<32x256xf32, #tpu.memory_space<vmem>>, %arg5: memref<1x256xf32, #tpu.memory_space<vmem>>, %arg6: memref<32x256xf32, #tpu.memory_space<vmem>>, %arg7: memref<1x256xf32, #tpu.memory_space<vmem>>, %arg8: memref<32x256xf32, #tpu.memory_space<vmem>>, %arg9: memref<256x8xf32, #tpu.memory_space<vmem>>, %arg10: memref<256x16xf32, #tpu.memory_space<vmem>>, %arg11: memref<256x16xf32, #tpu.memory_space<vmem>>, %arg12: memref<16x256xf32, #tpu.memory_space<vmem>>, %arg13: memref<8x256xf32, #tpu.memory_space<vmem>>, %arg14: memref<256x32xf32, #tpu.memory_space<vmem>>, %arg15: memref<1x32xf32, #tpu.memory_space<vmem>>, %arg16: memref<256x32xf32, #tpu.memory_space<vmem>>, %arg17: memref<1x32xf32, #tpu.memory_space<vmem>>, %arg18: memref<16x32xf32, #tpu.memory_space<vmem>>, %arg19: memref<8x32xf32, #tpu.memory_space<vmem>>) attributes {dimension_semantics = [], scalar_prefetch = 0 : i64, scratch_operands = 0 : i64, tpu.core_type = #tpu.core_type<tc>} {
    %c0 = arith.constant 0 : index
    %c0_0 = arith.constant 0 : index
    %0 = vector.load %arg8[%c0, %c0_0] : memref<32x256xf32, #tpu.memory_space<vmem>>, vector<32x256xf32>
    %c0_1 = arith.constant 0 : index
    %c0_2 = arith.constant 0 : index
    %1 = vector.load %arg12[%c0_1, %c0_2] : memref<16x256xf32, #tpu.memory_space<vmem>>, vector<16x256xf32>
    %c0_3 = arith.constant 0 : index
    %c0_4 = arith.constant 0 : index
    %2 = vector.load %arg13[%c0_3, %c0_4] : memref<8x256xf32, #tpu.memory_space<vmem>>, vector<8x256xf32>
    %c0_5 = arith.constant 0 : index
    %c0_6 = arith.constant 0 : index
    %3 = vector.load %arg0[%c0_5, %c0_6] : memref<16x32xf32, #tpu.memory_space<vmem>>, vector<16x32xf32>
    %c0_7 = arith.constant 0 : index
    %c0_8 = arith.constant 0 : index
    %4 = vector.load %arg4[%c0_7, %c0_8] : memref<32x256xf32, #tpu.memory_space<vmem>>, vector<32x256xf32>
    %cst = arith.constant dense<0.000000e+00> : vector<16x256xf32>
    %5 = tpu.matmul %3, %4, %cst {dimension_numbers = #tpu.dot_dimension_numbers<[1], [0], [0], [1], [0, 0, 1, 1], [], []>} : vector<16x32xf32>, vector<32x256xf32>, vector<16x256xf32> -> vector<16x256xf32>
    %c0_9 = arith.constant 0 : index
    %c0_10 = arith.constant 0 : index
    %6 = vector.load %arg5[%c0_9, %c0_10] : memref<1x256xf32, #tpu.memory_space<vmem>>, vector<1x256xf32>
    %7 = vector.broadcast %6 : vector<1x256xf32> to vector<16x256xf32>
    %8 = arith.addf %5, %7 : vector<16x256xf32>
    %c0_11 = arith.constant 0 : index
    %c0_12 = arith.constant 0 : index
    %9 = vector.load %arg0[%c0_11, %c0_12] : memref<16x32xf32, #tpu.memory_space<vmem>>, vector<16x32xf32>
    %c0_13 = arith.constant 0 : index
    %c0_14 = arith.constant 0 : index
    %10 = vector.load %arg6[%c0_13, %c0_14] : memref<32x256xf32, #tpu.memory_space<vmem>>, vector<32x256xf32>
    %cst_15 = arith.constant dense<0.000000e+00> : vector<16x256xf32>
    %11 = tpu.matmul %9, %10, %cst_15 {dimension_numbers = #tpu.dot_dimension_numbers<[1], [0], [0], [1], [0, 0, 1, 1], [], []>} : vector<16x32xf32>, vector<32x256xf32>, vector<16x256xf32> -> vector<16x256xf32>
    %c0_16 = arith.constant 0 : index
    %c0_17 = arith.constant 0 : index
    %12 = vector.load %arg7[%c0_16, %c0_17] : memref<1x256xf32, #tpu.memory_space<vmem>>, vector<1x256xf32>
    %13 = vector.broadcast %12 : vector<1x256xf32> to vector<16x256xf32>
    %14 = arith.addf %11, %13 : vector<16x256xf32>
    %c0_18 = arith.constant 0 : index
    %c0_19 = arith.constant 0 : index
    %15 = vector.load %arg1[%c0_18, %c0_19] : memref<256x32xf32, #tpu.memory_space<vmem>>, vector<256x32xf32>
    %cst_20 = arith.constant dense<0.000000e+00> : vector<256x256xf32>
    %16 = tpu.matmul %15, %0, %cst_20 {dimension_numbers = #tpu.dot_dimension_numbers<[1], [0], [0], [1], [0, 0, 1, 1], [], []>} : vector<256x32xf32>, vector<32x256xf32>, vector<256x256xf32> -> vector<256x256xf32>
    %c0_21 = arith.constant 0 : index
    %c0_22 = arith.constant 0 : index
    %17 = vector.load %arg10[%c0_21, %c0_22] : memref<256x16xf32, #tpu.memory_space<vmem>>, vector<256x16xf32>
    %cst_23 = arith.constant dense<0.000000e+00> : vector<256x256xf32>
    %18 = tpu.matmul %17, %14, %cst_23 {dimension_numbers = #tpu.dot_dimension_numbers<[1], [0], [0], [1], [0, 0, 1, 1], [], []>} : vector<256x16xf32>, vector<16x256xf32>, vector<256x256xf32> -> vector<256x256xf32>
    %c0_24 = arith.constant 0 : index
    %c0_25 = arith.constant 0 : index
    %19 = vector.load %arg11[%c0_24, %c0_25] : memref<256x16xf32, #tpu.memory_space<vmem>>, vector<256x16xf32>
    %cst_26 = arith.constant dense<0.000000e+00> : vector<256x256xf32>
    %20 = tpu.matmul %19, %8, %cst_26 {dimension_numbers = #tpu.dot_dimension_numbers<[1], [0], [0], [1], [0, 0, 1, 1], [], []>} : vector<256x16xf32>, vector<16x256xf32>, vector<256x256xf32> -> vector<256x256xf32>
    %21 = arith.addf %18, %20 : vector<256x256xf32>
    %22 = arith.addf %21, %16 : vector<256x256xf32>
    %cst_27 = arith.constant 0.000000e+00 : f32
    %23 = vector.broadcast %cst_27 : f32 to vector<256x256xf32>
    %24 = arith.cmpf ogt, %22, %23 : vector<256x256xf32>
    %cst_28 = arith.constant 2.000000e-01 : f32
    %25 = vector.broadcast %cst_28 : f32 to vector<256x256xf32>
    %26 = arith.mulf %25, %22 : vector<256x256xf32>
    %27 = arith.select %24, %22, %26 : vector<256x256xi1>, vector<256x256xf32>
    %c0_29 = arith.constant 0 : index
    %c0_30 = arith.constant 0 : index
    %28 = vector.load %arg9[%c0_29, %c0_30] : memref<256x8xf32, #tpu.memory_space<vmem>>, vector<256x8xf32>
    %cst_31 = arith.constant dense<0.000000e+00> : vector<256x8xf32>
    %29 = tpu.matmul %27, %28, %cst_31 {dimension_numbers = #tpu.dot_dimension_numbers<[1], [0], [0], [1], [0, 0, 1, 1], [], []>} : vector<256x256xf32>, vector<256x8xf32>, vector<256x8xf32> -> vector<256x8xf32>
    %c0_32 = arith.constant 0 : index
    %c0_33 = arith.constant 0 : index
    %30 = vector.load %arg2[%c0_32, %c0_33] : memref<256x1xf32, #tpu.memory_space<vmem>>, vector<256x1xf32>
    %31 = vector.broadcast %30 : vector<256x1xf32> to vector<256x8xf32>
    %32 = arith.addf %29, %31 : vector<256x8xf32>
    %cst_34 = arith.constant dense<0xFF800000> : vector<256xf32>
    %33 = vector.multi_reduction <maximumf>, %32, %cst_34 [1] : vector<256x8xf32> to vector<256xf32>
    %34 = vector.shape_cast %33 : vector<256xf32> to vector<256x1xf32>
    %cst_35 = arith.constant dense<0xFF800000> : vector<1xf32>
    %35 = vector.multi_reduction <maximumf>, %34, %cst_35 [0] : vector<256x1xf32> to vector<1xf32>
    %36 = vector.shape_cast %35 : vector<1xf32> to vector<1x1xf32>
    %37 = vector.broadcast %36 : vector<1x1xf32> to vector<256x8xf32>
    %38 = arith.subf %32, %37 : vector<256x8xf32>
    %39 = math.exp %38 : vector<256x8xf32>
    %cst_36 = arith.constant dense<0.000000e+00> : vector<16x8xf32>
    %40 = tpu.matmul %1, %39, %cst_36 {dimension_numbers = #tpu.dot_dimension_numbers<[1], [0], [0], [1], [0, 0, 1, 1], [], []>} : vector<16x256xf32>, vector<256x8xf32>, vector<16x8xf32> -> vector<16x8xf32>
    %cst_37 = arith.constant dense<0.000000e+00> : vector<256x256xf32>
    %41 = tpu.matmul %39, %2, %cst_37 {dimension_numbers = #tpu.dot_dimension_numbers<[1], [0], [0], [1], [0, 0, 1, 1], [], []>} : vector<256x8xf32>, vector<8x256xf32>, vector<256x256xf32> -> vector<256x256xf32>
    %42 = arith.mulf %41, %20 : vector<256x256xf32>
    %cst_38 = arith.constant dense<0.000000e+00> : vector<16x256xf32>
    %43 = tpu.matmul %1, %42, %cst_38 {dimension_numbers = #tpu.dot_dimension_numbers<[1], [0], [0], [1], [0, 0, 1, 1], [], []>} : vector<16x256xf32>, vector<256x256xf32>, vector<16x256xf32> -> vector<16x256xf32>
    %cst_39 = arith.constant dense<0.000000e+00> : vector<16x256xf32>
    %44 = tpu.matmul %40, %2, %cst_39 {dimension_numbers = #tpu.dot_dimension_numbers<[1], [0], [0], [1], [0, 0, 1, 1], [], []>} : vector<16x8xf32>, vector<8x256xf32>, vector<16x256xf32> -> vector<16x256xf32>
    %45 = arith.divf %43, %44 : vector<16x256xf32>
    %c0_40 = arith.constant 0 : index
    %c0_41 = arith.constant 0 : index
    %46 = vector.load %arg14[%c0_40, %c0_41] : memref<256x32xf32, #tpu.memory_space<vmem>>, vector<256x32xf32>
    %cst_42 = arith.constant dense<0.000000e+00> : vector<16x32xf32>
    %47 = tpu.matmul %45, %46, %cst_42 {dimension_numbers = #tpu.dot_dimension_numbers<[1], [0], [0], [1], [0, 0, 1, 1], [], []>} : vector<16x256xf32>, vector<256x32xf32>, vector<16x32xf32> -> vector<16x32xf32>
    %c0_43 = arith.constant 0 : index
    %c0_44 = arith.constant 0 : index
    %48 = vector.load %arg15[%c0_43, %c0_44] : memref<1x32xf32, #tpu.memory_space<vmem>>, vector<1x32xf32>
    %49 = vector.broadcast %48 : vector<1x32xf32> to vector<16x32xf32>
    %50 = arith.addf %47, %49 : vector<16x32xf32>
    %c0_45 = arith.constant 0 : index
    %c0_46 = arith.constant 0 : index
    %51 = vector.load %arg18[%c0_45, %c0_46] : memref<16x32xf32, #tpu.memory_space<vmem>>, vector<16x32xf32>
    tpu.vector_store %arg18[%c0_45, %c0_46], %50 {strides = array<i32>} : memref<16x32xf32, #tpu.memory_space<vmem>>, vector<16x32xf32>,
    %c0_47 = arith.constant 0 : index
    %c0_48 = arith.constant 0 : index
    %52 = vector.load %arg3[%c0_47, %c0_48] : memref<8x32xf32, #tpu.memory_space<vmem>>, vector<8x32xf32>
    %cst_49 = arith.constant dense<0.000000e+00> : vector<8x256xf32>
    %53 = tpu.matmul %52, %0, %cst_49 {dimension_numbers = #tpu.dot_dimension_numbers<[1], [0], [0], [1], [0, 0, 1, 1], [], []>} : vector<8x32xf32>, vector<32x256xf32>, vector<8x256xf32> -> vector<8x256xf32>
    %cst_50 = arith.constant 0.000000e+00 : f32
    %54 = vector.broadcast %cst_50 : f32 to vector<8x256xf32>
    %55 = arith.maximumf %53, %54 : vector<8x256xf32>
    %c0_51 = arith.constant 0 : index
    %c0_52 = arith.constant 0 : index
    %56 = vector.load %arg16[%c0_51, %c0_52] : memref<256x32xf32, #tpu.memory_space<vmem>>, vector<256x32xf32>
    %cst_53 = arith.constant dense<0.000000e+00> : vector<8x32xf32>
    %57 = tpu.matmul %55, %56, %cst_53 {dimension_numbers = #tpu.dot_dimension_numbers<[1], [0], [0], [1], [0, 0, 1, 1], [], []>} : vector<8x256xf32>, vector<256x32xf32>, vector<8x32xf32> -> vector<8x32xf32>
    %c0_54 = arith.constant 0 : index
    %c0_55 = arith.constant 0 : index
    %58 = vector.load %arg17[%c0_54, %c0_55] : memref<1x32xf32, #tpu.memory_space<vmem>>, vector<1x32xf32>
    %59 = vector.broadcast %58 : vector<1x32xf32> to vector<8x32xf32>
    %60 = arith.addf %57, %59 : vector<8x32xf32>
    %c0_56 = arith.constant 0 : index
    %c0_57 = arith.constant 0 : index
    %61 = vector.load %arg19[%c0_56, %c0_57] : memref<8x32xf32, #tpu.memory_space<vmem>>, vector<8x32xf32>
    tpu.vector_store %arg19[%c0_56, %c0_57], %60 {strides = array<i32>} : memref<8x32xf32, #tpu.memory_space<vmem>>, vector<8x32xf32>,
    return
  }
}

</mosaic_0001>

<llo_original>
// kernel: tpu_custom_call.1
$region0: #{tpu_custom_call.1}
  #allocation0 [shape = 'u32[]', space=smem, size = 0x4, offset = 0x4, fixed_abs, tag = 'smem constant byte address 0x4 - core index']
  #allocation1 [shape = 'u32[144,128]{1,0:T(1,128)}', space=vmem, size = 0x12000, scoped, tag = 'internal scratch']
  %s0 = inlined_call_operand.vmem [shape: f32[16,32], index: 0, kind: input, shape index: {}]
  %s1 = inlined_call_operand.vmem [shape: f32[256,32], index: 1, kind: input, shape index: {}]
  %s2 = inlined_call_operand.vmem [shape: f32[256,1], index: 2, kind: input, shape index: {}]
  %s3 = inlined_call_operand.vmem [shape: f32[8,32], index: 3, kind: input, shape index: {}]
  %s4 = inlined_call_operand.vmem [shape: f32[32,256], index: 4, kind: input, shape index: {}]
  %s5 = inlined_call_operand.vmem [shape: f32[1,256], index: 5, kind: input, shape index: {}]
  %s6 = inlined_call_operand.vmem [shape: f32[32,256], index: 6, kind: input, shape index: {}]
  %s7 = inlined_call_operand.vmem [shape: f32[1,256], index: 7, kind: input, shape index: {}]
  %s8 = inlined_call_operand.vmem [shape: f32[32,256], index: 8, kind: input, shape index: {}]
  %s9 = inlined_call_operand.vmem [shape: f32[256,8], index: 9, kind: input, shape index: {}]
  %s10 = inlined_call_operand.vmem [shape: f32[256,16], index: 10, kind: input, shape index: {}]
  %s11 = inlined_call_operand.vmem [shape: f32[256,16], index: 11, kind: input, shape index: {}]
  %s12 = inlined_call_operand.vmem [shape: f32[16,256], index: 12, kind: input, shape index: {}]
  %s13 = inlined_call_operand.vmem [shape: f32[8,256], index: 13, kind: input, shape index: {}]
  %s14 = inlined_call_operand.vmem [shape: f32[256,32], index: 14, kind: input, shape index: {}]
  %s15 = inlined_call_operand.vmem [shape: f32[1,32], index: 15, kind: input, shape index: {}]
  %s16 = inlined_call_operand.vmem [shape: f32[256,32], index: 16, kind: input, shape index: {}]
  %s17 = inlined_call_operand.vmem [shape: f32[1,32], index: 17, kind: input, shape index: {}]
  %s18 = inlined_call_operand.hbm [shape: f32[16,32], index: 18, kind: output, shape index: {0}]
  %s19 = inlined_call_operand.hbm [shape: f32[8,32], index: 19, kind: output, shape index: {1}]
  %20 = xla_tuple %s18, %s19
  %s21 = sld [smem:[#allocation0]]
  $region90: #{tpu_custom_call.1} parent=0
    _
  %s23 = ssub.s32 1, %s21
  %s24 = scalar_select 0, %s23, %s21
  $region1: #{tpu_custom_call.1} parent=0
    #allocation2 [shape = 'u8[8192]{0}', space=vmem, size = 0x2000, scoped, tag = 'output window, operand 0, single buffered']
    #allocation3 [shape = 's32[1]{0}', space=sflag, size = 0x4, scoped, tag = 'scoped memory for tpu_custom_call.1']
    #allocation4 [shape = 'u8[4096]{0}', space=vmem, size = 0x1000, scoped, tag = 'output window, operand 1, single buffered']
    #allocation5 [shape = 's32[1]{0}', space=sflag, size = 0x4, scoped, tag = 'scoped memory for tpu_custom_call.1']
    %25 = vsyncpa [#allocation3], 0
    %26 = vsyncpa [#allocation5], 0
    // Predicated region
    $region2: #{tpu_custom_call.1} parent=1 // pred_check
      _
    $region3: #{tpu_custom_call.1} parent=1 // pred_check_branch
      %28 = sbr.rel (0) target = $region5
    $region4: #{tpu_custom_call.1} parent=1 // pred_region
      _
    $region5: #{tpu_custom_call.1} parent=1 // pred_fallthru
      _
    // Predicated region
    $region6: #{tpu_custom_call.1} parent=1 // pred_check
      _
    $region7: #{tpu_custom_call.1} parent=1 // pred_check_branch
      %30 = sbr.rel (0) target = $region9
    $region8: #{tpu_custom_call.1} parent=1 // pred_region
      _
    $region9: #{tpu_custom_call.1} parent=1 // pred_fallthru
      _
    // Predicated region
    $region10: #{tpu_custom_call.1} parent=1 // pred_check
      _
    $region11: #{tpu_custom_call.1} parent=1 // pred_check_branch
      %32 = sbr.rel (0) target = $region13
    $region12: #{tpu_custom_call.1} parent=1 // pred_region
      _
    $region13: #{tpu_custom_call.1} parent=1 // pred_fallthru
      _
    // Predicated region
    $region14: #{tpu_custom_call.1} parent=1 // pred_check
      _
    $region15: #{tpu_custom_call.1} parent=1 // pred_check_branch
      %34 = sbr.rel (0) target = $region17
    $region16: #{tpu_custom_call.1} parent=1 // pred_region
      _
    $region17: #{tpu_custom_call.1} parent=1 // pred_fallthru
      _
    // Predicated region
    $region18: #{tpu_custom_call.1} parent=1 // pred_check
      _
    $region19: #{tpu_custom_call.1} parent=1 // pred_check_branch
      %36 = sbr.rel (0) target = $region21
    $region20: #{tpu_custom_call.1} parent=1 // pred_region
      _
    $region21: #{tpu_custom_call.1} parent=1 // pred_fallthru
      _
    // Predicated region
    $region22: #{tpu_custom_call.1} parent=1 // pred_check
      _
    $region23: #{tpu_custom_call.1} parent=1 // pred_check_branch
      %38 = sbr.rel (0) target = $region25
    $region24: #{tpu_custom_call.1} parent=1 // pred_region
      _
    $region25: #{tpu_custom_call.1} parent=1 // pred_fallthru
      _
    // Predicated region
    $region26: #{tpu_custom_call.1} parent=1 // pred_check
      _
    $region27: #{tpu_custom_call.1} parent=1 // pred_check_branch
      %40 = sbr.rel (0) target = $region29
    $region28: #{tpu_custom_call.1} parent=1 // pred_region
      _
    $region29: #{tpu_custom_call.1} parent=1 // pred_fallthru
      _
    // Predicated region
    $region30: #{tpu_custom_call.1} parent=1 // pred_check
      _
    $region31: #{tpu_custom_call.1} parent=1 // pred_check_branch
      %42 = sbr.rel (0) target = $region33
    $region32: #{tpu_custom_call.1} parent=1 // pred_region
      _
    $region33: #{tpu_custom_call.1} parent=1 // pred_fallthru
      _
    // Predicated region
    $region34: #{tpu_custom_call.1} parent=1 // pred_check
      _
    $region35: #{tpu_custom_call.1} parent=1 // pred_check_branch
      %44 = sbr.rel (0) target = $region37
    $region36: #{tpu_custom_call.1} parent=1 // pred_region
      _
    $region37: #{tpu_custom_call.1} parent=1 // pred_fallthru
      _
    // Predicated region
    $region38: #{tpu_custom_call.1} parent=1 // pred_check
      _
    $region39: #{tpu_custom_call.1} parent=1 // pred_check_branch
      %46 = sbr.rel (0) target = $region41
    $region40: #{tpu_custom_call.1} parent=1 // pred_region
      _
    $region41: #{tpu_custom_call.1} parent=1 // pred_fallthru
      _
    // Predicated region
    $region42: #{tpu_custom_call.1} parent=1 // pred_check
      _
    $region43: #{tpu_custom_call.1} parent=1 // pred_check_branch
      %48 = sbr.rel (0) target = $region45
    $region44: #{tpu_custom_call.1} parent=1 // pred_region
      _
    $region45: #{tpu_custom_call.1} parent=1 // pred_fallthru
      _
    // Predicated region
    $region46: #{tpu_custom_call.1} parent=1 // pred_check
      _
    $region47: #{tpu_custom_call.1} parent=1 // pred_check_branch
      %50 = sbr.rel (0) target = $region49
    $region48: #{tpu_custom_call.1} parent=1 // pred_region
      _
    $region49: #{tpu_custom_call.1} parent=1 // pred_fallthru
      _
    // Predicated region
    $region50: #{tpu_custom_call.1} parent=1 // pred_check
      _
    $region51: #{tpu_custom_call.1} parent=1 // pred_check_branch
      %52 = sbr.rel (0) target = $region53
    $region52: #{tpu_custom_call.1} parent=1 // pred_region
      _
    $region53: #{tpu_custom_call.1} parent=1 // pred_fallthru
      _
    // Predicated region
    $region54: #{tpu_custom_call.1} parent=1 // pred_check
      _
    $region55: #{tpu_custom_call.1} parent=1 // pred_check_branch
      %54 = sbr.rel (0) target = $region57
    $region56: #{tpu_custom_call.1} parent=1 // pred_region
      _
    $region57: #{tpu_custom_call.1} parent=1 // pred_fallthru
      _
    // Predicated region
    $region58: #{tpu_custom_call.1} parent=1 // pred_check
      _
    $region59: #{tpu_custom_call.1} parent=1 // pred_check_branch
      %56 = sbr.rel (0) target = $region61
    $region60: #{tpu_custom_call.1} parent=1 // pred_region
      _
    $region61: #{tpu_custom_call.1} parent=1 // pred_fallthru
      _
    // Predicated region
    $region62: #{tpu_custom_call.1} parent=1 // pred_check
      _
    $region63: #{tpu_custom_call.1} parent=1 // pred_check_branch
      %58 = sbr.rel (0) target = $region65
    $region64: #{tpu_custom_call.1} parent=1 // pred_region
      _
    $region65: #{tpu_custom_call.1} parent=1 // pred_fallthru
      _
    // Predicated region
    $region66: #{tpu_custom_call.1} parent=1 // pred_check
      _
    $region67: #{tpu_custom_call.1} parent=1 // pred_check_branch
      %60 = sbr.rel (0) target = $region69
    $region68: #{tpu_custom_call.1} parent=1 // pred_region
      _
    $region69: #{tpu_custom_call.1} parent=1 // pred_fallthru
      _
    // Predicated region
    $region70: #{tpu_custom_call.1} parent=1 // pred_check
      _
    $region71: #{tpu_custom_call.1} parent=1 // pred_check_branch
      %62 = sbr.rel (0) target = $region73
    $region72: #{tpu_custom_call.1} parent=1 // pred_region
      _
    $region73: #{tpu_custom_call.1} parent=1 // pred_fallthru
      _
    %v63 = vld [vmem:[%s8] sm:$0xff]
    %v64 = vld [vmem:[%s8 + $0x8] sm:$0xff]
    %v65 = vld [vmem:[%s8 + $0x10] sm:$0xff]
    %v66 = vld [vmem:[%s8 + $0x18] sm:$0xff]
    %v67 = vld [vmem:[%s8 + $0x20] sm:$0xff]
    %v68 = vld [vmem:[%s8 + $0x28] sm:$0xff]
    %v69 = vld [vmem:[%s8 + $0x30] sm:$0xff]
    %v70 = vld [vmem:[%s8 + $0x38] sm:$0xff]
    %v71 = vld [vmem:[%s12] sm:$0xff]
    %v72 = vld [vmem:[%s12 + $0x8] sm:$0xff]
    %v73 = vld [vmem:[%s12 + $0x10] sm:$0xff]
    %v74 = vld [vmem:[%s12 + $0x18] sm:$0xff]
    %v75 = vld [vmem:[%s13] sm:$0xff]
    %v76 = vld [vmem:[%s13 + $0x8] sm:$0xff]
    %v77 = vld [vmem:[%s0] sm:$0xff]
    %v78 = vld [vmem:[%s0 + $0x8] sm:$0xff]
    %v79 = vld [vmem:[%s4] sm:$0xff]
    %v80 = vld [vmem:[%s4 + $0x8] sm:$0xff]
    %v81 = vld [vmem:[%s4 + $0x10] sm:$0xff]
    %v82 = vld [vmem:[%s4 + $0x18] sm:$0xff]
    %v83 = vld [vmem:[%s4 + $0x20] sm:$0xff]
    %v84 = vld [vmem:[%s4 + $0x28] sm:$0xff]
    %v85 = vld [vmem:[%s4 + $0x30] sm:$0xff]
    %v86 = vld [vmem:[%s4 + $0x38] sm:$0xff]
    %v87 = vld [vmem:[%s5] sm:$0x3]
    %v89 = vlaneseq
    %v90 = vshrl.u32 %v89, 7
    %v91 = vsub.s32 0, %v90
    %v92 = vrot.slane %v87, %v91
    %v93 = vlaneseq
    %v94 = vshrl.u32 %v93, 7
    %v95 = vsub.s32 1, %v94
    %v96 = vrot.slane %v87, %v95
    %vm99 = vcmask 261120
    %v101 = vsel %vm99, %v77, 0
    %v104 = vsel %vm99, %v78, 0
    %106 = vmatprep.subr.mxu0 0.0
    %107 = vmatpush1.msra.mxu0 0.0
    %108 = vmatprep.subr.mxu0 0.0
    %109 = vmatpush1.msra.mxu0 0.0
    %110 = vmatprep.subr.mxu0 0.0
    %111 = vmatpush1.msra.mxu0 0.0
    %112 = vmatprep.subr.mxu0 0.0
    %113 = vmatpush1.msra.mxu0 0.0
    %114 = vmatprep.subr.mxu0 0.0
    %115 = vmatpush1.msra.mxu0 0.0
    %116 = vmatprep.subr.mxu0 0.0
    %117 = vmatpush1.msra.mxu0 0.0
    %118 = vmatprep.subr.mxu0 0.0
    %119 = vmatpush1.msra.mxu0 0.0
    %120 = vmatprep.subr.mxu0 0.0
    %121 = vmatpush1.msra.mxu0 0.0
    %122 = vmatprep.subr.mxu0 0.0
    %123 = vmatpush1.msra.mxu0 0.0
    %124 = vmatprep.subr.mxu0 0.0
    %125 = vmatpush1.msra.mxu0 0.0
    %126 = vmatprep.subr.mxu0 0.0
    %127 = vmatpush1.msra.mxu0 0.0
    %128 = vmatprep.subr.mxu0 0.0
    %129 = vmatpush1.msra.mxu0 0.0
    %130 = vmatprep.subr.mxu0 %v86
    %131 = vmatpush1.msra.mxu0 %v85
    %132 = vmatprep.subr.mxu0 %v84
    %133 = vmatpush1.msra.mxu0 %v83
    %134 = vmatprep.subr.mxu0 %v82
    %135 = vmatpush1.msra.mxu0 %v81
    %136 = vmatprep.subr.mxu0 %v80
    %137 = vmatpush1.msra.mxu0 %v79
    %138 = vmatprep.subr.mxu0 0.0
    %139 = vmatpush2.msra.mxu0 0.0
    %140 = vmatprep.subr.mxu0 0.0
    %141 = vmatpush2.msra.mxu0 0.0
    %142 = vmatprep.subr.mxu0 0.0
    %143 = vmatpush2.msra.mxu0 0.0
    %144 = vmatprep.subr.mxu0 0.0
    %145 = vmatpush2.msra.mxu0 0.0
    %146 = vmatprep.subr.mxu0 0.0
    %147 = vmatpush2.msra.mxu0 0.0
    %148 = vmatprep.subr.mxu0 0.0
    %149 = vmatpush2.msra.mxu0 0.0
    %150 = vmatprep.subr.mxu0 0.0
    %151 = vmatpush2.msra.mxu0 0.0
    %152 = vmatprep.subr.mxu0 0.0
    %153 = vmatpush2.msra.mxu0 0.0
    %154 = vmatprep.subr.mxu0 0.0
    %155 = vmatpush2.msra.mxu0 0.0
    %156 = vmatprep.subr.mxu0 0.0
    %157 = vmatpush2.msra.mxu0 0.0
    %158 = vmatprep.subr.mxu0 0.0
    %159 = vmatpush2.msra.mxu0 0.0
    %160 = vmatprep.subr.mxu0 0.0
    %161 = vmatpush2.msra.mxu0 0.0
    %162 = vmatprep.subr.mxu0 0.0
    %163 = vmatpush2.msra.mxu0 0.0
    %164 = vmatprep.subr.mxu0 0.0
    %165 = vmatpush2.msra.mxu0 0.0
    %166 = vmatprep.subr.mxu0 0.0
    %167 = vmatpush2.msra.mxu0 0.0
    %168 = vmatprep.subr.mxu0 0.0
    %169 = vmatpush2.msra.mxu0 0.0
    %170 = vmatprep.mubr.f32.mxu0 0.0
    %171 = vmatmul.mubr.f32.gmra.mxu0 %v101
    %v172 = vpop.f32.mrf.mxu0
    %v173 = vadd.f32 %v92, %v172
    %v174 = vpop.f32.mrf.mxu0
    %v175 = vadd.f32 %v96, %v174
    %176 = vmatprep.mubr.f32.mxu0 0.0
    %177 = vmatmul.mubr.f32.gmra.mxu0 %v104
    %v178 = vpop.f32.mrf.mxu0
    %v179 = vadd.f32 %v92, %v178
    %v180 = vpop.f32.mrf.mxu0
    %v181 = vadd.f32 %v96, %v180
    %182 = vdwg.mxu0
    %v183 = vld [vmem:[%s6] sm:$0xff]
    %v184 = vld [vmem:[%s6 + $0x8] sm:$0xff]
    %v185 = vld [vmem:[%s6 + $0x10] sm:$0xff]
    %v186 = vld [vmem:[%s6 + $0x18] sm:$0xff]
    %v187 = vld [vmem:[%s6 + $0x20] sm:$0xff]
    %v188 = vld [vmem:[%s6 + $0x28] sm:$0xff]
    %v189 = vld [vmem:[%s6 + $0x30] sm:$0xff]
    %v190 = vld [vmem:[%s6 + $0x38] sm:$0xff]
    %v191 = vld [vmem:[%s7] sm:$0x3]
    %v193 = vlaneseq
    %v194 = vshrl.u32 %v193, 7
    %v195 = vsub.s32 0, %v194
    %v196 = vrot.slane %v191, %v195
    %v197 = vlaneseq
    %v198 = vshrl.u32 %v197, 7
    %v199 = vsub.s32 1, %v198
    %v200 = vrot.slane %v191, %v199
    %203 = vmatprep.subr.mxu0 0.0
    %204 = vmatpush1.msra.mxu0 0.0
    %205 = vmatprep.subr.mxu0 0.0
    %206 = vmatpush1.msra.mxu0 0.0
    %207 = vmatprep.subr.mxu0 0.0
    %208 = vmatpush1.msra.mxu0 0.0
    %209 = vmatprep.subr.mxu0 0.0
    %210 = vmatpush1.msra.mxu0 0.0
    %211 = vmatprep.subr.mxu0 0.0
    %212 = vmatpush1.msra.mxu0 0.0
    %213 = vmatprep.subr.mxu0 0.0
    %214 = vmatpush1.msra.mxu0 0.0
    %215 = vmatprep.subr.mxu0 0.0
    %216 = vmatpush1.msra.mxu0 0.0
    %217 = vmatprep.subr.mxu0 0.0
    %218 = vmatpush1.msra.mxu0 0.0
    %219 = vmatprep.subr.mxu0 0.0
    %220 = vmatpush1.msra.mxu0 0.0
    %221 = vmatprep.subr.mxu0 0.0
    %222 = vmatpush1.msra.mxu0 0.0
    %223 = vmatprep.subr.mxu0 0.0
    %224 = vmatpush1.msra.mxu0 0.0
    %225 = vmatprep.subr.mxu0 0.0
    %226 = vmatpush1.msra.mxu0 0.0
    %227 = vmatprep.subr.mxu0 %v190
    %228 = vmatpush1.msra.mxu0 %v189
    %229 = vmatprep.subr.mxu0 %v188
    %230 = vmatpush1.msra.mxu0 %v187
    %231 = vmatprep.subr.mxu0 %v186
    %232 = vmatpush1.msra.mxu0 %v185
    %233 = vmatprep.subr.mxu0 %v184
    %234 = vmatpush1.msra.mxu0 %v183
    %235 = vmatprep.subr.mxu0 0.0
    %236 = vmatpush2.msra.mxu0 0.0
    %237 = vmatprep.subr.mxu0 0.0
    %238 = vmatpush2.msra.mxu0 0.0
    %239 = vmatprep.subr.mxu0 0.0
    %240 = vmatpush2.msra.mxu0 0.0
    %241 = vmatprep.subr.mxu0 0.0
    %242 = vmatpush2.msra.mxu0 0.0
    %243 = vmatprep.subr.mxu0 0.0
    %244 = vmatpush2.msra.mxu0 0.0
    %245 = vmatprep.subr.mxu0 0.0
    %246 = vmatpush2.msra.mxu0 0.0
    %247 = vmatprep.subr.mxu0 0.0
    %248 = vmatpush2.msra.mxu0 0.0
    %249 = vmatprep.subr.mxu0 0.0
    %250 = vmatpush2.msra.mxu0 0.0
    %251 = vmatprep.subr.mxu0 0.0
    %252 = vmatpush2.msra.mxu0 0.0
    %253 = vmatprep.subr.mxu0 0.0
    %254 = vmatpush2.msra.mxu0 0.0
    %255 = vmatprep.subr.mxu0 0.0
    %256 = vmatpush2.msra.mxu0 0.0
    %257 = vmatprep.subr.mxu0 0.0
    %258 = vmatpush2.msra.mxu0 0.0
    %259 = vmatprep.subr.mxu0 0.0
    %260 = vmatpush2.msra.mxu0 0.0
    %261 = vmatprep.subr.mxu0 0.0
    %262 = vmatpush2.msra.mxu0 0.0
    %263 = vmatprep.subr.mxu0 0.0
    %264 = vmatpush2.msra.mxu0 0.0
    %265 = vmatprep.subr.mxu0 0.0
    %266 = vmatpush2.msra.mxu0 0.0
    %267 = vmatprep.mubr.f32.mxu0 0.0
    %268 = vmatmul.mubr.f32.gmra.mxu0 %v101
    %v269 = vpop.f32.mrf.mxu0
    %v270 = vadd.f32 %v196, %v269
    %v271 = vpop.f32.mrf.mxu0
    %v272 = vadd.f32 %v200, %v271
    %273 = vmatprep.mubr.f32.mxu0 0.0
    %274 = vmatmul.mubr.f32.gmra.mxu0 %v104
    %v275 = vpop.f32.mrf.mxu0
    %v276 = vadd.f32 %v196, %v275
    %v277 = vpop.f32.mrf.mxu0
    %v278 = vadd.f32 %v200, %v277
    %279 = vdwg.mxu0
    %v280 = vld [vmem:[%s1] sm:$0xff]
    %v281 = vld [vmem:[%s1 + $0x8] sm:$0xff]
    %v282 = vld [vmem:[%s1 + $0x10] sm:$0xff]
    %v283 = vld [vmem:[%s1 + $0x18] sm:$0xff]
    %v284 = vld [vmem:[%s1 + $0x20] sm:$0xff]
    %v285 = vld [vmem:[%s1 + $0x28] sm:$0xff]
    %v286 = vld [vmem:[%s1 + $0x30] sm:$0xff]
    %v287 = vld [vmem:[%s1 + $0x38] sm:$0xff]
    %v288 = vld [vmem:[%s1 + $0x40] sm:$0xff]
    %v289 = vld [vmem:[%s1 + $0x48] sm:$0xff]
    %v290 = vld [vmem:[%s1 + $0x50] sm:$0xff]
    %v291 = vld [vmem:[%s1 + $0x58] sm:$0xff]
    %v292 = vld [vmem:[%s1 + $0x60] sm:$0xff]
    %v293 = vld [vmem:[%s1 + $0x68] sm:$0xff]
    %v294 = vld [vmem:[%s1 + $0x70] sm:$0xff]
    %v295 = vld [vmem:[%s1 + $0x78] sm:$0xff]
    %v296 = vld [vmem:[%s1 + $0x80] sm:$0xff]
    %v297 = vld [vmem:[%s1 + $0x88] sm:$0xff]
    %v298 = vld [vmem:[%s1 + $0x90] sm:$0xff]
    %v299 = vld [vmem:[%s1 + $0x98] sm:$0xff]
    %v300 = vld [vmem:[%s1 + $0xa0] sm:$0xff]
    %v301 = vld [vmem:[%s1 + $0xa8] sm:$0xff]
    %v302 = vld [vmem:[%s1 + $0xb0] sm:$0xff]
    %v303 = vld [vmem:[%s1 + $0xb8] sm:$0xff]
    %v304 = vld [vmem:[%s1 + $0xc0] sm:$0xff]
    %v305 = vld [vmem:[%s1 + $0xc8] sm:$0xff]
    %v306 = vld [vmem:[%s1 + $0xd0] sm:$0xff]
    %v307 = vld [vmem:[%s1 + $0xd8] sm:$0xff]
    %v308 = vld [vmem:[%s1 + $0xe0] sm:$0xff]
    %v309 = vld [vmem:[%s1 + $0xe8] sm:$0xff]
    %v310 = vld [vmem:[%s1 + $0xf0] sm:$0xff]
    %v311 = vld [vmem:[%s1 + $0xf8] sm:$0xff]
    %v313 = vsel %vm99, %v280, 0
    %v316 = vsel %vm99, %v281, 0
    %v319 = vsel %vm99, %v282, 0
    %v322 = vsel %vm99, %v283, 0
    %v325 = vsel %vm99, %v284, 0
    %v328 = vsel %vm99, %v285, 0
    %v331 = vsel %vm99, %v286, 0
    %v334 = vsel %vm99, %v287, 0
    %v337 = vsel %vm99, %v288, 0
    %v340 = vsel %vm99, %v289, 0
    %v343 = vsel %vm99, %v290, 0
    %v346 = vsel %vm99, %v291, 0
    %v349 = vsel %vm99, %v292, 0
    %v352 = vsel %vm99, %v293, 0
    %v355 = vsel %vm99, %v294, 0
    %v358 = vsel %vm99, %v295, 0
    %v361 = vsel %vm99, %v296, 0
    %v364 = vsel %vm99, %v297, 0
    %v367 = vsel %vm99, %v298, 0
    %v370 = vsel %vm99, %v299, 0
    %v373 = vsel %vm99, %v300, 0
    %v376 = vsel %vm99, %v301, 0
    %v379 = vsel %vm99, %v302, 0
    %v382 = vsel %vm99, %v303, 0
    %v385 = vsel %vm99, %v304, 0
    %v388 = vsel %vm99, %v305, 0
    %v391 = vsel %vm99, %v306, 0
    %v394 = vsel %vm99, %v307, 0
    %v397 = vsel %vm99, %v308, 0
    %v400 = vsel %vm99, %v309, 0
    %v403 = vsel %vm99, %v310, 0
    %v406 = vsel %vm99, %v311, 0
    %408 = vmatprep.subr.mxu0 0.0
    %409 = vmatpush1.msra.mxu0 0.0
    %410 = vmatprep.subr.mxu0 0.0
    %411 = vmatpush1.msra.mxu0 0.0
    %412 = vmatprep.subr.mxu0 0.0
    %413 = vmatpush1.msra.mxu0 0.0
    %414 = vmatprep.subr.mxu0 0.0
    %415 = vmatpush1.msra.mxu0 0.0
    %416 = vmatprep.subr.mxu0 0.0
    %417 = vmatpush1.msra.mxu0 0.0
    %418 = vmatprep.subr.mxu0 0.0
    %419 = vmatpush1.msra.mxu0 0.0
    %420 = vmatprep.subr.mxu0 0.0
    %421 = vmatpush1.msra.mxu0 0.0
    %422 = vmatprep.subr.mxu0 0.0
    %423 = vmatpush1.msra.mxu0 0.0
    %424 = vmatprep.subr.mxu0 0.0
    %425 = vmatpush1.msra.mxu0 0.0
    %426 = vmatprep.subr.mxu0 0.0
    %427 = vmatpush1.msra.mxu0 0.0
    %428 = vmatprep.subr.mxu0 0.0
    %429 = vmatpush1.msra.mxu0 0.0
    %430 = vmatprep.subr.mxu0 0.0
    %431 = vmatpush1.msra.mxu0 0.0
    %432 = vmatprep.subr.mxu0 %v70
    %433 = vmatpush1.msra.mxu0 %v69
    %434 = vmatprep.subr.mxu0 %v68
    %435 = vmatpush1.msra.mxu0 %v67
    %436 = vmatprep.subr.mxu0 %v66
    %437 = vmatpush1.msra.mxu0 %v65
    %438 = vmatprep.subr.mxu0 %v64
    %439 = vmatpush1.msra.mxu0 %v63
    %440 = vmatprep.subr.mxu0 0.0
    %441 = vmatpush2.msra.mxu0 0.0
    %442 = vmatprep.subr.mxu0 0.0
    %443 = vmatpush2.msra.mxu0 0.0
    %444 = vmatprep.subr.mxu0 0.0
    %445 = vmatpush2.msra.mxu0 0.0
    %446 = vmatprep.subr.mxu0 0.0
    %447 = vmatpush2.msra.mxu0 0.0
    %448 = vmatprep.subr.mxu0 0.0
    %449 = vmatpush2.msra.mxu0 0.0
    %450 = vmatprep.subr.mxu0 0.0
    %451 = vmatpush2.msra.mxu0 0.0
    %452 = vmatprep.subr.mxu0 0.0
    %453 = vmatpush2.msra.mxu0 0.0
    %454 = vmatprep.subr.mxu0 0.0
    %455 = vmatpush2.msra.mxu0 0.0
    %456 = vmatprep.subr.mxu0 0.0
    %457 = vmatpush2.msra.mxu0 0.0
    %458 = vmatprep.subr.mxu0 0.0
    %459 = vmatpush2.msra.mxu0 0.0
    %460 = vmatprep.subr.mxu0 0.0
    %461 = vmatpush2.msra.mxu0 0.0
    %462 = vmatprep.subr.mxu0 0.0
    %463 = vmatpush2.msra.mxu0 0.0
    %464 = vmatprep.subr.mxu0 0.0
    %465 = vmatpush2.msra.mxu0 0.0
    %466 = vmatprep.subr.mxu0 0.0
    %467 = vmatpush2.msra.mxu0 0.0
    %468 = vmatprep.subr.mxu0 0.0
    %469 = vmatpush2.msra.mxu0 0.0
    %470 = vmatprep.subr.mxu0 0.0
    %471 = vmatpush2.msra.mxu0 0.0
    %472 = vmatprep.mubr.f32.mxu0 0.0
    %473 = vmatmul.mubr.f32.gmra.mxu0 %v313
    %v474 = vpop.f32.mrf.mxu0
    %v475 = vadd.f32 0.0, %v474
    %v476 = vpop.f32.mrf.mxu0
    %v477 = vadd.f32 0.0, %v476
    %478 = vmatprep.mubr.f32.mxu0 0.0
    %479 = vmatmul.mubr.f32.gmra.mxu0 %v316
    %v480 = vpop.f32.mrf.mxu0
    %v481 = vadd.f32 0.0, %v480
    %v482 = vpop.f32.mrf.mxu0
    %v483 = vadd.f32 0.0, %v482
    %484 = vmatprep.mubr.f32.mxu0 0.0
    %485 = vmatmul.mubr.f32.gmra.mxu0 %v319
    %v486 = vpop.f32.mrf.mxu0
    %v487 = vadd.f32 0.0, %v486
    %v488 = vpop.f32.mrf.mxu0
    %v489 = vadd.f32 0.0, %v488
    %490 = vmatprep.mubr.f32.mxu0 0.0
    %491 = vmatmul.mubr.f32.gmra.mxu0 %v322
    %v492 = vpop.f32.mrf.mxu0
    %v493 = vadd.f32 0.0, %v492
    %v494 = vpop.f32.mrf.mxu0
    %v495 = vadd.f32 0.0, %v494
    %496 = vmatprep.mubr.f32.mxu0 0.0
    %497 = vmatmul.mubr.f32.gmra.mxu0 %v325
    %v498 = vpop.f32.mrf.mxu0
    %v499 = vadd.f32 0.0, %v498
    %v500 = vpop.f32.mrf.mxu0
    %v501 = vadd.f32 0.0, %v500
    %502 = vmatprep.mubr.f32.mxu0 0.0
    %503 = vmatmul.mubr.f32.gmra.mxu0 %v328
    %v504 = vpop.f32.mrf.mxu0
    %v505 = vadd.f32 0.0, %v504
    %v506 = vpop.f32.mrf.mxu0
    %v507 = vadd.f32 0.0, %v506
    %508 = vmatprep.mubr.f32.mxu0 0.0
    %509 = vmatmul.mubr.f32.gmra.mxu0 %v331
    %v510 = vpop.f32.mrf.mxu0
    %v511 = vadd.f32 0.0, %v510
    %v512 = vpop.f32.mrf.mxu0
    %v513 = vadd.f32 0.0, %v512
    %514 = vmatprep.mubr.f32.mxu0 0.0
    %515 = vmatmul.mubr.f32.gmra.mxu0 %v334
    %v516 = vpop.f32.mrf.mxu0
    %v517 = vadd.f32 0.0, %v516
    %v518 = vpop.f32.mrf.mxu0
    %v519 = vadd.f32 0.0, %v518
    %520 = vmatprep.mubr.f32.mxu0 0.0
    %521 = vmatmul.mubr.f32.gmra.mxu0 %v337
    %v522 = vpop.f32.mrf.mxu0
    %v523 = vadd.f32 0.0, %v522
    %v524 = vpop.f32.mrf.mxu0
    %v525 = vadd.f32 0.0, %v524
    %526 = vmatprep.mubr.f32.mxu0 0.0
    %527 = vmatmul.mubr.f32.gmra.mxu0 %v340
    %v528 = vpop.f32.mrf.mxu0
    %v529 = vadd.f32 0.0, %v528
    %v530 = vpop.f32.mrf.mxu0
    %v531 = vadd.f32 0.0, %v530
    %532 = vmatprep.mubr.f32.mxu0 0.0
    %533 = vmatmul.mubr.f32.gmra.mxu0 %v343
    %v534 = vpop.f32.mrf.mxu0
    %v535 = vadd.f32 0.0, %v534
    %v536 = vpop.f32.mrf.mxu0
    %v537 = vadd.f32 0.0, %v536
    %538 = vmatprep.mubr.f32.mxu0 0.0
    %539 = vmatmul.mubr.f32.gmra.mxu0 %v346
    %v540 = vpop.f32.mrf.mxu0
    %v541 = vadd.f32 0.0, %v540
    %v542 = vpop.f32.mrf.mxu0
    %v543 = vadd.f32 0.0, %v542
    %544 = vmatprep.mubr.f32.mxu0 0.0
    %545 = vmatmul.mubr.f32.gmra.mxu0 %v349
    %v546 = vpop.f32.mrf.mxu0
    %v547 = vadd.f32 0.0, %v546
    %v548 = vpop.f32.mrf.mxu0
    %v549 = vadd.f32 0.0, %v548
    %550 = vmatprep.mubr.f32.mxu0 0.0
    %551 = vmatmul.mubr.f32.gmra.mxu0 %v352
    %v552 = vpop.f32.mrf.mxu0
    %v553 = vadd.f32 0.0, %v552
    %v554 = vpop.f32.mrf.mxu0
    %v555 = vadd.f32 0.0, %v554
    %556 = vmatprep.mubr.f32.mxu0 0.0
    %557 = vmatmul.mubr.f32.gmra.mxu0 %v355
    %v558 = vpop.f32.mrf.mxu0
    %v559 = vadd.f32 0.0, %v558
    %v560 = vpop.f32.mrf.mxu0
    %v561 = vadd.f32 0.0, %v560
    %562 = vmatprep.mubr.f32.mxu0 0.0
    %563 = vmatmul.mubr.f32.gmra.mxu0 %v358
    %v564 = vpop.f32.mrf.mxu0
    %v565 = vadd.f32 0.0, %v564
    %v566 = vpop.f32.mrf.mxu0
    %v567 = vadd.f32 0.0, %v566
    %568 = vmatprep.mubr.f32.mxu0 0.0
    %569 = vmatmul.mubr.f32.gmra.mxu0 %v361
    %v570 = vpop.f32.mrf.mxu0
    %v571 = vadd.f32 0.0, %v570
    %v572 = vpop.f32.mrf.mxu0
    %v573 = vadd.f32 0.0, %v572
    %574 = vmatprep.mubr.f32.mxu0 0.0
    %575 = vmatmul.mubr.f32.gmra.mxu0 %v364
    %v576 = vpop.f32.mrf.mxu0
    %v577 = vadd.f32 0.0, %v576
    %v578 = vpop.f32.mrf.mxu0
    %v579 = vadd.f32 0.0, %v578
    %580 = vmatprep.mubr.f32.mxu0 0.0
    %581 = vmatmul.mubr.f32.gmra.mxu0 %v367
    %v582 = vpop.f32.mrf.mxu0
    %v583 = vadd.f32 0.0, %v582
    %v584 = vpop.f32.mrf.mxu0
    %v585 = vadd.f32 0.0, %v584
    %586 = vmatprep.mubr.f32.mxu0 0.0
    %587 = vmatmul.mubr.f32.gmra.mxu0 %v370
    %v588 = vpop.f32.mrf.mxu0
    %v589 = vadd.f32 0.0, %v588
    %v590 = vpop.f32.mrf.mxu0
    %v591 = vadd.f32 0.0, %v590
    %592 = vmatprep.mubr.f32.mxu0 0.0
    %593 = vmatmul.mubr.f32.gmra.mxu0 %v373
    %v594 = vpop.f32.mrf.mxu0
    %v595 = vadd.f32 0.0, %v594
    %v596 = vpop.f32.mrf.mxu0
    %v597 = vadd.f32 0.0, %v596
    %598 = vmatprep.mubr.f32.mxu0 0.0
    %599 = vmatmul.mubr.f32.gmra.mxu0 %v376
    %v600 = vpop.f32.mrf.mxu0
    %v601 = vadd.f32 0.0, %v600
    %v602 = vpop.f32.mrf.mxu0
    %v603 = vadd.f32 0.0, %v602
    %604 = vmatprep.mubr.f32.mxu0 0.0
    %605 = vmatmul.mubr.f32.gmra.mxu0 %v379
    %v606 = vpop.f32.mrf.mxu0
    %v607 = vadd.f32 0.0, %v606
    %v608 = vpop.f32.mrf.mxu0
    %v609 = vadd.f32 0.0, %v608
    %610 = vmatprep.mubr.f32.mxu0 0.0
    %611 = vmatmul.mubr.f32.gmra.mxu0 %v382
    %v612 = vpop.f32.mrf.mxu0
    %v613 = vadd.f32 0.0, %v612
    %v614 = vpop.f32.mrf.mxu0
    %v615 = vadd.f32 0.0, %v614
    %616 = vmatprep.mubr.f32.mxu0 0.0
    %617 = vmatmul.mubr.f32.gmra.mxu0 %v385
    %v618 = vpop.f32.mrf.mxu0
    %v619 = vadd.f32 0.0, %v618
    %v620 = vpop.f32.mrf.mxu0
    %v621 = vadd.f32 0.0, %v620
    %622 = vmatprep.mubr.f32.mxu0 0.0
    %623 = vmatmul.mubr.f32.gmra.mxu0 %v388
    %v624 = vpop.f32.mrf.mxu0
    %v625 = vadd.f32 0.0, %v624
    %v626 = vpop.f32.mrf.mxu0
    %v627 = vadd.f32 0.0, %v626
    %628 = vmatprep.mubr.f32.mxu0 0.0
    %629 = vmatmul.mubr.f32.gmra.mxu0 %v391
    %v630 = vpop.f32.mrf.mxu0
    %v631 = vadd.f32 0.0, %v630
    %v632 = vpop.f32.mrf.mxu0
    %v633 = vadd.f32 0.0, %v632
    %634 = vmatprep.mubr.f32.mxu0 0.0
    %635 = vmatmul.mubr.f32.gmra.mxu0 %v394
    %v636 = vpop.f32.mrf.mxu0
    %v637 = vadd.f32 0.0, %v636
    %v638 = vpop.f32.mrf.mxu0
    %v639 = vadd.f32 0.0, %v638
    %640 = vmatprep.mubr.f32.mxu0 0.0
    %641 = vmatmul.mubr.f32.gmra.mxu0 %v397
    %v642 = vpop.f32.mrf.mxu0
    %v643 = vadd.f32 0.0, %v642
    %v644 = vpop.f32.mrf.mxu0
    %v645 = vadd.f32 0.0, %v644
    %646 = vmatprep.mubr.f32.mxu0 0.0
    %647 = vmatmul.mubr.f32.gmra.mxu0 %v400
    %v648 = vpop.f32.mrf.mxu0
    %v649 = vadd.f32 0.0, %v648
    %v650 = vpop.f32.mrf.mxu0
    %v651 = vadd.f32 0.0, %v650
    %652 = vmatprep.mubr.f32.mxu0 0.0
    %653 = vmatmul.mubr.f32.gmra.mxu0 %v403
    %v654 = vpop.f32.mrf.mxu0
    %v655 = vadd.f32 0.0, %v654
    %v656 = vpop.f32.mrf.mxu0
    %v657 = vadd.f32 0.0, %v656
    %658 = vmatprep.mubr.f32.mxu0 0.0
    %659 = vmatmul.mubr.f32.gmra.mxu0 %v406
    %v660 = vpop.f32.mrf.mxu0
    %v661 = vadd.f32 0.0, %v660
    %v662 = vpop.f32.mrf.mxu0
    %v663 = vadd.f32 0.0, %v662
    %664 = vdwg.mxu0
    %v665 = vld [vmem:[%s10] sm:$0xff]
    %v666 = vld [vmem:[%s10 + $0x8] sm:$0xff]
    %v667 = vld [vmem:[%s10 + $0x10] sm:$0xff]
    %v668 = vld [vmem:[%s10 + $0x18] sm:$0xff]
    %v669 = vld [vmem:[%s10 + $0x20] sm:$0xff]
    %v670 = vld [vmem:[%s10 + $0x28] sm:$0xff]
    %v671 = vld [vmem:[%s10 + $0x30] sm:$0xff]
    %v672 = vld [vmem:[%s10 + $0x38] sm:$0xff]
    %v673 = vld [vmem:[%s10 + $0x40] sm:$0xff]
    %v674 = vld [vmem:[%s10 + $0x48] sm:$0xff]
    %v675 = vld [vmem:[%s10 + $0x50] sm:$0xff]
    %v676 = vld [vmem:[%s10 + $0x58] sm:$0xff]
    %v677 = vld [vmem:[%s10 + $0x60] sm:$0xff]
    %v678 = vld [vmem:[%s10 + $0x68] sm:$0xff]
    %v679 = vld [vmem:[%s10 + $0x70] sm:$0xff]
    %v680 = vld [vmem:[%s10 + $0x78] sm:$0xff]
    %v681 = vld [vmem:[%s10 + $0x80] sm:$0xff]
    %v682 = vld [vmem:[%s10 + $0x88] sm:$0xff]
    %v683 = vld [vmem:[%s10 + $0x90] sm:$0xff]
    %v684 = vld [vmem:[%s10 + $0x98] sm:$0xff]
    %v685 = vld [vmem:[%s10 + $0xa0] sm:$0xff]
    %v686 = vld [vmem:[%s10 + $0xa8] sm:$0xff]
    %v687 = vld [vmem:[%s10 + $0xb0] sm:$0xff]
    %v688 = vld [vmem:[%s10 + $0xb8] sm:$0xff]
    %v689 = vld [vmem:[%s10 + $0xc0] sm:$0xff]
    %v690 = vld [vmem:[%s10 + $0xc8] sm:$0xff]
    %v691 = vld [vmem:[%s10 + $0xd0] sm:$0xff]
    %v692 = vld [vmem:[%s10 + $0xd8] sm:$0xff]
    %v693 = vld [vmem:[%s10 + $0xe0] sm:$0xff]
    %v694 = vld [vmem:[%s10 + $0xe8] sm:$0xff]
    %v695 = vld [vmem:[%s10 + $0xf0] sm:$0xff]
    %v696 = vld [vmem:[%s10 + $0xf8] sm:$0xff]
    %v697 = vld [vmem:[%s11] sm:$0xff]
    %v698 = vld [vmem:[%s11 + $0x8] sm:$0xff]
    %v699 = vld [vmem:[%s11 + $0x10] sm:$0xff]
    %v700 = vld [vmem:[%s11 + $0x18] sm:$0xff]
    %v701 = vld [vmem:[%s11 + $0x20] sm:$0xff]
    %v702 = vld [vmem:[%s11 + $0x28] sm:$0xff]
    %v703 = vld [vmem:[%s11 + $0x30] sm:$0xff]
    %v704 = vld [vmem:[%s11 + $0x38] sm:$0xff]
    %v705 = vld [vmem:[%s11 + $0x40] sm:$0xff]
    %v706 = vld [vmem:[%s11 + $0x48] sm:$0xff]
    %v707 = vld [vmem:[%s11 + $0x50] sm:$0xff]
    %v708 = vld [vmem:[%s11 + $0x58] sm:$0xff]
    %v709 = vld [vmem:[%s11 + $0x60] sm:$0xff]
    %v710 = vld [vmem:[%s11 + $0x68] sm:$0xff]
    %v711 = vld [vmem:[%s11 + $0x70] sm:$0xff]
    %v712 = vld [vmem:[%s11 + $0x78] sm:$0xff]
    %v713 = vld [vmem:[%s11 + $0x80] sm:$0xff]
    %v714 = vld [vmem:[%s11 + $0x88] sm:$0xff]
    %v715 = vld [vmem:[%s11 + $0x90] sm:$0xff]
    %v716 = vld [vmem:[%s11 + $0x98] sm:$0xff]
    %v717 = vld [vmem:[%s11 + $0xa0] sm:$0xff]
    %v718 = vld [vmem:[%s11 + $0xa8] sm:$0xff]
    %v719 = vld [vmem:[%s11 + $0xb0] sm:$0xff]
    %v720 = vld [vmem:[%s11 + $0xb8] sm:$0xff]
    %v721 = vld [vmem:[%s11 + $0xc0] sm:$0xff]
    %v722 = vld [vmem:[%s11 + $0xc8] sm:$0xff]
    %v723 = vld [vmem:[%s11 + $0xd0] sm:$0xff]
    %v724 = vld [vmem:[%s11 + $0xd8] sm:$0xff]
    %v725 = vld [vmem:[%s11 + $0xe0] sm:$0xff]
    %v726 = vld [vmem:[%s11 + $0xe8] sm:$0xff]
    %v727 = vld [vmem:[%s11 + $0xf0] sm:$0xff]
    %v728 = vld [vmem:[%s11 + $0xf8] sm:$0xff]
    %vm729 = vcmask 130048
    %v731 = vsel %vm729, %v697, 0
    %v734 = vsel %vm729, %v698, 0
    %v737 = vsel %vm729, %v699, 0
    %v740 = vsel %vm729, %v700, 0
    %v743 = vsel %vm729, %v701, 0
    %v746 = vsel %vm729, %v702, 0
    %v749 = vsel %vm729, %v703, 0
    %v752 = vsel %vm729, %v704, 0
    %v755 = vsel %vm729, %v705, 0
    %v758 = vsel %vm729, %v706, 0
    %v761 = vsel %vm729, %v707, 0
    %v764 = vsel %vm729, %v708, 0
    %v767 = vsel %vm729, %v709, 0
    %v770 = vsel %vm729, %v710, 0
    %v773 = vsel %vm729, %v711, 0
    %v776 = vsel %vm729, %v712, 0
    %v779 = vsel %vm729, %v713, 0
    %v782 = vsel %vm729, %v714, 0
    %v785 = vsel %vm729, %v715, 0
    %v788 = vsel %vm729, %v716, 0
    %v791 = vsel %vm729, %v717, 0
    %v794 = vsel %vm729, %v718, 0
    %v797 = vsel %vm729, %v719, 0
    %v800 = vsel %vm729, %v720, 0
    %v803 = vsel %vm729, %v721, 0
    %v806 = vsel %vm729, %v722, 0
    %v809 = vsel %vm729, %v723, 0
    %v812 = vsel %vm729, %v724, 0
    %v815 = vsel %vm729, %v725, 0
    %v818 = vsel %vm729, %v726, 0
    %v821 = vsel %vm729, %v727, 0
    %v824 = vsel %vm729, %v728, 0
    %826 = vmatprep.subr.mxu0 0.0
    %827 = vmatpush1.msra.mxu0 0.0
    %828 = vmatprep.subr.mxu0 0.0
    %829 = vmatpush1.msra.mxu0 0.0
    %830 = vmatprep.subr.mxu0 0.0
    %831 = vmatpush1.msra.mxu0 0.0
    %832 = vmatprep.subr.mxu0 0.0
    %833 = vmatpush1.msra.mxu0 0.0
    %834 = vmatprep.subr.mxu0 0.0
    %835 = vmatpush1.msra.mxu0 0.0
    %836 = vmatprep.subr.mxu0 0.0
    %837 = vmatpush1.msra.mxu0 0.0
    %838 = vmatprep.subr.mxu0 0.0
    %839 = vmatpush1.msra.mxu0 0.0
    %840 = vmatprep.subr.mxu0 0.0
    %841 = vmatpush1.msra.mxu0 0.0
    %842 = vmatprep.subr.mxu0 0.0
    %843 = vmatpush1.msra.mxu0 0.0
    %844 = vmatprep.subr.mxu0 0.0
    %845 = vmatpush1.msra.mxu0 0.0
    %846 = vmatprep.subr.mxu0 0.0
    %847 = vmatpush1.msra.mxu0 0.0
    %848 = vmatprep.subr.mxu0 0.0
    %849 = vmatpush1.msra.mxu0 0.0
    %850 = vmatprep.subr.mxu0 0.0
    %851 = vmatpush1.msra.mxu0 0.0
    %852 = vmatprep.subr.mxu0 0.0
    %853 = vmatpush1.msra.mxu0 0.0
    %854 = vmatprep.subr.mxu0 %v181
    %855 = vmatpush1.msra.mxu0 %v179
    %856 = vmatprep.subr.mxu0 %v175
    %857 = vmatpush1.msra.mxu0 %v173
    %858 = vmatprep.subr.mxu0 0.0
    %859 = vmatpush2.msra.mxu0 0.0
    %860 = vmatprep.subr.mxu0 0.0
    %861 = vmatpush2.msra.mxu0 0.0
    %862 = vmatprep.subr.mxu0 0.0
    %863 = vmatpush2.msra.mxu0 0.0
    %864 = vmatprep.subr.mxu0 0.0
    %865 = vmatpush2.msra.mxu0 0.0
    %866 = vmatprep.subr.mxu0 0.0
    %867 = vmatpush2.msra.mxu0 0.0
    %868 = vmatprep.subr.mxu0 0.0
    %869 = vmatpush2.msra.mxu0 0.0
    %870 = vmatprep.subr.mxu0 0.0
    %871 = vmatpush2.msra.mxu0 0.0
    %872 = vmatprep.subr.mxu0 0.0
    %873 = vmatpush2.msra.mxu0 0.0
    %874 = vmatprep.subr.mxu0 0.0
    %875 = vmatpush2.msra.mxu0 0.0
    %876 = vmatprep.subr.mxu0 0.0
    %877 = vmatpush2.msra.mxu0 0.0
    %878 = vmatprep.subr.mxu0 0.0
    %879 = vmatpush2.msra.mxu0 0.0
    %880 = vmatprep.subr.mxu0 0.0
    %881 = vmatpush2.msra.mxu0 0.0
    %882 = vmatprep.subr.mxu0 0.0
    %883 = vmatpush2.msra.mxu0 0.0
    %884 = vmatprep.subr.mxu0 0.0
    %885 = vmatpush2.msra.mxu0 0.0
    %886 = vmatprep.subr.mxu0 0.0
    %887 = vmatpush2.msra.mxu0 0.0
    %888 = vmatprep.subr.mxu0 0.0
    %889 = vmatpush2.msra.mxu0 0.0
    %890 = vmatprep.mubr.f32.mxu0 0.0
    %891 = vmatmul.mubr.f32.gmra.mxu0 %v731
    %v892 = vpop.f32.mrf.mxu0
    %v893 = vadd.f32 0.0, %v892
    %v894 = vpop.f32.mrf.mxu0
    %v895 = vadd.f32 0.0, %v894
    %896 = vmatprep.mubr.f32.mxu0 0.0
    %897 = vmatmul.mubr.f32.gmra.mxu0 %v734
    %v898 = vpop.f32.mrf.mxu0
    %v899 = vadd.f32 0.0, %v898
    %v900 = vpop.f32.mrf.mxu0
    %v901 = vadd.f32 0.0, %v900
    %902 = vmatprep.mubr.f32.mxu0 0.0
    %903 = vmatmul.mubr.f32.gmra.mxu0 %v737
    %v904 = vpop.f32.mrf.mxu0
    %v905 = vadd.f32 0.0, %v904
    %v906 = vpop.f32.mrf.mxu0
    %v907 = vadd.f32 0.0, %v906
    %908 = vmatprep.mubr.f32.mxu0 0.0
    %909 = vmatmul.mubr.f32.gmra.mxu0 %v740
    %v910 = vpop.f32.mrf.mxu0
    %v911 = vadd.f32 0.0, %v910
    %v912 = vpop.f32.mrf.mxu0
    %v913 = vadd.f32 0.0, %v912
    %914 = vmatprep.mubr.f32.mxu0 0.0
    %915 = vmatmul.mubr.f32.gmra.mxu0 %v743
    %v916 = vpop.f32.mrf.mxu0
    %v917 = vadd.f32 0.0, %v916
    %v918 = vpop.f32.mrf.mxu0
    %v919 = vadd.f32 0.0, %v918
    %920 = vmatprep.mubr.f32.mxu0 0.0
    %921 = vmatmul.mubr.f32.gmra.mxu0 %v746
    %v922 = vpop.f32.mrf.mxu0
    %v923 = vadd.f32 0.0, %v922
    %v924 = vpop.f32.mrf.mxu0
    %v925 = vadd.f32 0.0, %v924
    %926 = vmatprep.mubr.f32.mxu0 0.0
    %927 = vmatmul.mubr.f32.gmra.mxu0 %v749
    %v928 = vpop.f32.mrf.mxu0
    %v929 = vadd.f32 0.0, %v928
    %v930 = vpop.f32.mrf.mxu0
    %v931 = vadd.f32 0.0, %v930
    %932 = vmatprep.mubr.f32.mxu0 0.0
    %933 = vmatmul.mubr.f32.gmra.mxu0 %v752
    %v934 = vpop.f32.mrf.mxu0
    %v935 = vadd.f32 0.0, %v934
    %v936 = vpop.f32.mrf.mxu0
    %v937 = vadd.f32 0.0, %v936
    %938 = vmatprep.mubr.f32.mxu0 0.0
    %939 = vmatmul.mubr.f32.gmra.mxu0 %v755
    %v940 = vpop.f32.mrf.mxu0
    %v941 = vadd.f32 0.0, %v940
    %v942 = vpop.f32.mrf.mxu0
    %v943 = vadd.f32 0.0, %v942
    %944 = vmatprep.mubr.f32.mxu0 0.0
    %945 = vmatmul.mubr.f32.gmra.mxu0 %v758
    %v946 = vpop.f32.mrf.mxu0
    %v947 = vadd.f32 0.0, %v946
    %v948 = vpop.f32.mrf.mxu0
    %v949 = vadd.f32 0.0, %v948
    %950 = vmatprep.mubr.f32.mxu0 0.0
    %951 = vmatmul.mubr.f32.gmra.mxu0 %v761
    %v952 = vpop.f32.mrf.mxu0
    %v953 = vadd.f32 0.0, %v952
    %v954 = vpop.f32.mrf.mxu0
    %v955 = vadd.f32 0.0, %v954
    %956 = vmatprep.mubr.f32.mxu0 0.0
    %957 = vmatmul.mubr.f32.gmra.mxu0 %v764
    %v958 = vpop.f32.mrf.mxu0
    %v959 = vadd.f32 0.0, %v958
    %v960 = vpop.f32.mrf.mxu0
    %v961 = vadd.f32 0.0, %v960
    %962 = vmatprep.mubr.f32.mxu0 0.0
    %963 = vmatmul.mubr.f32.gmra.mxu0 %v767
    %v964 = vpop.f32.mrf.mxu0
    %v965 = vadd.f32 0.0, %v964
    %v966 = vpop.f32.mrf.mxu0
    %v967 = vadd.f32 0.0, %v966
    %968 = vmatprep.mubr.f32.mxu0 0.0
    %969 = vmatmul.mubr.f32.gmra.mxu0 %v770
    %v970 = vpop.f32.mrf.mxu0
    %v971 = vadd.f32 0.0, %v970
    %v972 = vpop.f32.mrf.mxu0
    %v973 = vadd.f32 0.0, %v972
    %974 = vmatprep.mubr.f32.mxu0 0.0
    %975 = vmatmul.mubr.f32.gmra.mxu0 %v773
    %v976 = vpop.f32.mrf.mxu0
    %v977 = vadd.f32 0.0, %v976
    %v978 = vpop.f32.mrf.mxu0
    %v979 = vadd.f32 0.0, %v978
    %980 = vmatprep.mubr.f32.mxu0 0.0
    %981 = vmatmul.mubr.f32.gmra.mxu0 %v776
    %v982 = vpop.f32.mrf.mxu0
    %v983 = vadd.f32 0.0, %v982
    %v984 = vpop.f32.mrf.mxu0
    %v985 = vadd.f32 0.0, %v984
    %986 = vmatprep.mubr.f32.mxu0 0.0
    %987 = vmatmul.mubr.f32.gmra.mxu0 %v779
    %v988 = vpop.f32.mrf.mxu0
    %v989 = vadd.f32 0.0, %v988
    %v990 = vpop.f32.mrf.mxu0
    %v991 = vadd.f32 0.0, %v990
    %992 = vmatprep.mubr.f32.mxu0 0.0
    %993 = vmatmul.mubr.f32.gmra.mxu0 %v782
    %v994 = vpop.f32.mrf.mxu0
    %v995 = vadd.f32 0.0, %v994
    %v996 = vpop.f32.mrf.mxu0
    %v997 = vadd.f32 0.0, %v996
    %998 = vmatprep.mubr.f32.mxu0 0.0
    %999 = vmatmul.mubr.f32.gmra.mxu0 %v785
    %v1000 = vpop.f32.mrf.mxu0
    %v1001 = vadd.f32 0.0, %v1000
    %v1002 = vpop.f32.mrf.mxu0
    %v1003 = vadd.f32 0.0, %v1002
    %1004 = vmatprep.mubr.f32.mxu0 0.0
    %1005 = vmatmul.mubr.f32.gmra.mxu0 %v788
    %v1006 = vpop.f32.mrf.mxu0
    %v1007 = vadd.f32 0.0, %v1006
    %v1008 = vpop.f32.mrf.mxu0
    %v1009 = vadd.f32 0.0, %v1008
    %1010 = vmatprep.mubr.f32.mxu0 0.0
    %1011 = vmatmul.mubr.f32.gmra.mxu0 %v791
    %v1012 = vpop.f32.mrf.mxu0
    %v1013 = vadd.f32 0.0, %v1012
    %v1014 = vpop.f32.mrf.mxu0
    %v1015 = vadd.f32 0.0, %v1014
    %1016 = vmatprep.mubr.f32.mxu0 0.0
    %1017 = vmatmul.mubr.f32.gmra.mxu0 %v794
    %v1018 = vpop.f32.mrf.mxu0
    %v1019 = vadd.f32 0.0, %v1018
    %v1020 = vpop.f32.mrf.mxu0
    %v1021 = vadd.f32 0.0, %v1020
    %1022 = vmatprep.mubr.f32.mxu0 0.0
    %1023 = vmatmul.mubr.f32.gmra.mxu0 %v797
    %v1024 = vpop.f32.mrf.mxu0
    %v1025 = vadd.f32 0.0, %v1024
    %v1026 = vpop.f32.mrf.mxu0
    %v1027 = vadd.f32 0.0, %v1026
    %1028 = vmatprep.mubr.f32.mxu0 0.0
    %1029 = vmatmul.mubr.f32.gmra.mxu0 %v800
    %v1030 = vpop.f32.mrf.mxu0
    %v1031 = vadd.f32 0.0, %v1030
    %v1032 = vpop.f32.mrf.mxu0
    %v1033 = vadd.f32 0.0, %v1032
    %1034 = vmatprep.mubr.f32.mxu0 0.0
    %1035 = vmatmul.mubr.f32.gmra.mxu0 %v803
    %v1036 = vpop.f32.mrf.mxu0
    %v1037 = vadd.f32 0.0, %v1036
    %v1038 = vpop.f32.mrf.mxu0
    %v1039 = vadd.f32 0.0, %v1038
    %1040 = vmatprep.mubr.f32.mxu0 0.0
    %1041 = vmatmul.mubr.f32.gmra.mxu0 %v806
    %v1042 = vpop.f32.mrf.mxu0
    %v1043 = vadd.f32 0.0, %v1042
    %v1044 = vpop.f32.mrf.mxu0
    %v1045 = vadd.f32 0.0, %v1044
    %1046 = vmatprep.mubr.f32.mxu0 0.0
    %1047 = vmatmul.mubr.f32.gmra.mxu0 %v809
    %v1048 = vpop.f32.mrf.mxu0
    %v1049 = vadd.f32 0.0, %v1048
    %v1050 = vpop.f32.mrf.mxu0
    %v1051 = vadd.f32 0.0, %v1050
    %1052 = vmatprep.mubr.f32.mxu0 0.0
    %1053 = vmatmul.mubr.f32.gmra.mxu0 %v812
    %v1054 = vpop.f32.mrf.mxu0
    %v1055 = vadd.f32 0.0, %v1054
    %v1056 = vpop.f32.mrf.mxu0
    %v1057 = vadd.f32 0.0, %v1056
    %1058 = vmatprep.mubr.f32.mxu0 0.0
    %1059 = vmatmul.mubr.f32.gmra.mxu0 %v815
    %v1060 = vpop.f32.mrf.mxu0
    %v1061 = vadd.f32 0.0, %v1060
    %v1062 = vpop.f32.mrf.mxu0
    %v1063 = vadd.f32 0.0, %v1062
    %1064 = vmatprep.mubr.f32.mxu0 0.0
    %1065 = vmatmul.mubr.f32.gmra.mxu0 %v818
    %v1066 = vpop.f32.mrf.mxu0
    %v1067 = vadd.f32 0.0, %v1066
    %v1068 = vpop.f32.mrf.mxu0
    %v1069 = vadd.f32 0.0, %v1068
    %1070 = vmatprep.mubr.f32.mxu0 0.0
    %1071 = vmatmul.mubr.f32.gmra.mxu0 %v821
    %v1072 = vpop.f32.mrf.mxu0
    %v1073 = vadd.f32 0.0, %v1072
    %v1074 = vpop.f32.mrf.mxu0
    %v1075 = vadd.f32 0.0, %v1074
    %1076 = vmatprep.mubr.f32.mxu0 0.0
    %1077 = vmatmul.mubr.f32.gmra.mxu0 %v824
    %v1078 = vpop.f32.mrf.mxu0
    %v1079 = vadd.f32 0.0, %v1078
    %v1080 = vpop.f32.mrf.mxu0
    %v1081 = vadd.f32 0.0, %v1080
    %1082 = vdwg.mxu0
    %v1084 = vsel %vm729, %v665, 0
    %v1087 = vsel %vm729, %v666, 0
    %v1090 = vsel %vm729, %v667, 0
    %v1093 = vsel %vm729, %v668, 0
    %v1096 = vsel %vm729, %v669, 0
    %v1099 = vsel %vm729, %v670, 0
    %v1102 = vsel %vm729, %v671, 0
    %v1105 = vsel %vm729, %v672, 0
    %v1108 = vsel %vm729, %v673, 0
    %v1111 = vsel %vm729, %v674, 0
    %v1114 = vsel %vm729, %v675, 0
    %v1117 = vsel %vm729, %v676, 0
    %v1120 = vsel %vm729, %v677, 0
    %v1123 = vsel %vm729, %v678, 0
    %v1126 = vsel %vm729, %v679, 0
    %v1129 = vsel %vm729, %v680, 0
    %v1132 = vsel %vm729, %v681, 0
    %v1135 = vsel %vm729, %v682, 0
    %v1138 = vsel %vm729, %v683, 0
    %v1141 = vsel %vm729, %v684, 0
    %v1144 = vsel %vm729, %v685, 0
    %v1147 = vsel %vm729, %v686, 0
    %v1150 = vsel %vm729, %v687, 0
    %v1153 = vsel %vm729, %v688, 0
    %v1156 = vsel %vm729, %v689, 0
    %v1159 = vsel %vm729, %v690, 0
    %v1162 = vsel %vm729, %v691, 0
    %v1165 = vsel %vm729, %v692, 0
    %v1168 = vsel %vm729, %v693, 0
    %v1171 = vsel %vm729, %v694, 0
    %v1174 = vsel %vm729, %v695, 0
    %v1177 = vsel %vm729, %v696, 0
    %1179 = vmatprep.subr.mxu0 0.0
    %1180 = vmatpush1.msra.mxu0 0.0
    %1181 = vmatprep.subr.mxu0 0.0
    %1182 = vmatpush1.msra.mxu0 0.0
    %1183 = vmatprep.subr.mxu0 0.0
    %1184 = vmatpush1.msra.mxu0 0.0
    %1185 = vmatprep.subr.mxu0 0.0
    %1186 = vmatpush1.msra.mxu0 0.0
    %1187 = vmatprep.subr.mxu0 0.0
    %1188 = vmatpush1.msra.mxu0 0.0
    %1189 = vmatprep.subr.mxu0 0.0
    %1190 = vmatpush1.msra.mxu0 0.0
    %1191 = vmatprep.subr.mxu0 0.0
    %1192 = vmatpush1.msra.mxu0 0.0
    %1193 = vmatprep.subr.mxu0 0.0
    %1194 = vmatpush1.msra.mxu0 0.0
    %1195 = vmatprep.subr.mxu0 0.0
    %1196 = vmatpush1.msra.mxu0 0.0
    %1197 = vmatprep.subr.mxu0 0.0
    %1198 = vmatpush1.msra.mxu0 0.0
    %1199 = vmatprep.subr.mxu0 0.0
    %1200 = vmatpush1.msra.mxu0 0.0
    %1201 = vmatprep.subr.mxu0 0.0
    %1202 = vmatpush1.msra.mxu0 0.0
    %1203 = vmatprep.subr.mxu0 0.0
    %1204 = vmatpush1.msra.mxu0 0.0
    %1205 = vmatprep.subr.mxu0 0.0
    %1206 = vmatpush1.msra.mxu0 0.0
    %1207 = vmatprep.subr.mxu0 %v278
    %1208 = vmatpush1.msra.mxu0 %v276
    %1209 = vmatprep.subr.mxu0 %v272
    %1210 = vmatpush1.msra.mxu0 %v270
    %1211 = vmatprep.subr.mxu0 0.0
    %1212 = vmatpush2.msra.mxu0 0.0
    %1213 = vmatprep.subr.mxu0 0.0
    %1214 = vmatpush2.msra.mxu0 0.0
    %1215 = vmatprep.subr.mxu0 0.0
    %1216 = vmatpush2.msra.mxu0 0.0
    %1217 = vmatprep.subr.mxu0 0.0
    %1218 = vmatpush2.msra.mxu0 0.0
    %1219 = vmatprep.subr.mxu0 0.0
    %1220 = vmatpush2.msra.mxu0 0.0
    %1221 = vmatprep.subr.mxu0 0.0
    %1222 = vmatpush2.msra.mxu0 0.0
    %1223 = vmatprep.subr.mxu0 0.0
    %1224 = vmatpush2.msra.mxu0 0.0
    %1225 = vmatprep.subr.mxu0 0.0
    %1226 = vmatpush2.msra.mxu0 0.0
    %1227 = vmatprep.subr.mxu0 0.0
    %1228 = vmatpush2.msra.mxu0 0.0
    %1229 = vmatprep.subr.mxu0 0.0
    %1230 = vmatpush2.msra.mxu0 0.0
    %1231 = vmatprep.subr.mxu0 0.0
    %1232 = vmatpush2.msra.mxu0 0.0
    %1233 = vmatprep.subr.mxu0 0.0
    %1234 = vmatpush2.msra.mxu0 0.0
    %1235 = vmatprep.subr.mxu0 0.0
    %1236 = vmatpush2.msra.mxu0 0.0
    %1237 = vmatprep.subr.mxu0 0.0
    %1238 = vmatpush2.msra.mxu0 0.0
    %1239 = vmatprep.subr.mxu0 0.0
    %1240 = vmatpush2.msra.mxu0 0.0
    %1241 = vmatprep.subr.mxu0 0.0
    %1242 = vmatpush2.msra.mxu0 0.0
    %1243 = vmatprep.mubr.f32.mxu0 0.0
    %1244 = vmatmul.mubr.f32.gmra.mxu0 %v1084
    %v1245 = vpop.f32.mrf.mxu0
    %v1246 = vadd.f32 %v893, %v1245
    %v1247 = vpop.f32.mrf.mxu0
    %v1248 = vadd.f32 %v895, %v1247
    %1249 = vmatprep.mubr.f32.mxu0 0.0
    %1250 = vmatmul.mubr.f32.gmra.mxu0 %v1087
    %v1251 = vpop.f32.mrf.mxu0
    %v1252 = vadd.f32 %v899, %v1251
    %v1253 = vpop.f32.mrf.mxu0
    %v1254 = vadd.f32 %v901, %v1253
    %1255 = vmatprep.mubr.f32.mxu0 0.0
    %1256 = vmatmul.mubr.f32.gmra.mxu0 %v1090
    %v1257 = vpop.f32.mrf.mxu0
    %v1258 = vadd.f32 %v905, %v1257
    %v1259 = vpop.f32.mrf.mxu0
    %v1260 = vadd.f32 %v907, %v1259
    %1261 = vmatprep.mubr.f32.mxu0 0.0
    %1262 = vmatmul.mubr.f32.gmra.mxu0 %v1093
    %v1263 = vpop.f32.mrf.mxu0
    %v1264 = vadd.f32 %v911, %v1263
    %v1265 = vpop.f32.mrf.mxu0
    %v1266 = vadd.f32 %v913, %v1265
    %1267 = vmatprep.mubr.f32.mxu0 0.0
    %1268 = vmatmul.mubr.f32.gmra.mxu0 %v1096
    %v1269 = vpop.f32.mrf.mxu0
    %v1270 = vadd.f32 %v917, %v1269
    %v1271 = vpop.f32.mrf.mxu0
    %v1272 = vadd.f32 %v919, %v1271
    %1273 = vmatprep.mubr.f32.mxu0 0.0
    %1274 = vmatmul.mubr.f32.gmra.mxu0 %v1099
    %v1275 = vpop.f32.mrf.mxu0
    %v1276 = vadd.f32 %v923, %v1275
    %v1277 = vpop.f32.mrf.mxu0
    %v1278 = vadd.f32 %v925, %v1277
    %1279 = vmatprep.mubr.f32.mxu0 0.0
    %1280 = vmatmul.mubr.f32.gmra.mxu0 %v1102
    %v1281 = vpop.f32.mrf.mxu0
    %v1282 = vadd.f32 %v929, %v1281
    %v1283 = vpop.f32.mrf.mxu0
    %v1284 = vadd.f32 %v931, %v1283
    %1285 = vmatprep.mubr.f32.mxu0 0.0
    %1286 = vmatmul.mubr.f32.gmra.mxu0 %v1105
    %v1287 = vpop.f32.mrf.mxu0
    %v1288 = vadd.f32 %v935, %v1287
    %v1289 = vpop.f32.mrf.mxu0
    %v1290 = vadd.f32 %v937, %v1289
    %1291 = vmatprep.mubr.f32.mxu0 0.0
    %1292 = vmatmul.mubr.f32.gmra.mxu0 %v1108
    %v1293 = vpop.f32.mrf.mxu0
    %v1294 = vadd.f32 %v941, %v1293
    %v1295 = vpop.f32.mrf.mxu0
    %v1296 = vadd.f32 %v943, %v1295
    %1297 = vmatprep.mubr.f32.mxu0 0.0
    %1298 = vmatmul.mubr.f32.gmra.mxu0 %v1111
    %v1299 = vpop.f32.mrf.mxu0
    %v1300 = vadd.f32 %v947, %v1299
    %v1301 = vpop.f32.mrf.mxu0
    %v1302 = vadd.f32 %v949, %v1301
    %1303 = vmatprep.mubr.f32.mxu0 0.0
    %1304 = vmatmul.mubr.f32.gmra.mxu0 %v1114
    %v1305 = vpop.f32.mrf.mxu0
    %v1306 = vadd.f32 %v953, %v1305
    %v1307 = vpop.f32.mrf.mxu0
    %v1308 = vadd.f32 %v955, %v1307
    %1309 = vmatprep.mubr.f32.mxu0 0.0
    %1310 = vmatmul.mubr.f32.gmra.mxu0 %v1117
    %v1311 = vpop.f32.mrf.mxu0
    %v1312 = vadd.f32 %v959, %v1311
    %v1313 = vpop.f32.mrf.mxu0
    %v1314 = vadd.f32 %v961, %v1313
    %1315 = vmatprep.mubr.f32.mxu0 0.0
    %1316 = vmatmul.mubr.f32.gmra.mxu0 %v1120
    %v1317 = vpop.f32.mrf.mxu0
    %v1318 = vadd.f32 %v965, %v1317
    %v1319 = vpop.f32.mrf.mxu0
    %v1320 = vadd.f32 %v967, %v1319
    %1321 = vmatprep.mubr.f32.mxu0 0.0
    %1322 = vmatmul.mubr.f32.gmra.mxu0 %v1123
    %v1323 = vpop.f32.mrf.mxu0
    %v1324 = vadd.f32 %v971, %v1323
    %v1325 = vpop.f32.mrf.mxu0
    %v1326 = vadd.f32 %v973, %v1325
    %1327 = vmatprep.mubr.f32.mxu0 0.0
    %1328 = vmatmul.mubr.f32.gmra.mxu0 %v1126
    %v1329 = vpop.f32.mrf.mxu0
    %v1330 = vadd.f32 %v977, %v1329
    %v1331 = vpop.f32.mrf.mxu0
    %v1332 = vadd.f32 %v979, %v1331
    %1333 = vmatprep.mubr.f32.mxu0 0.0
    %1334 = vmatmul.mubr.f32.gmra.mxu0 %v1129
    %v1335 = vpop.f32.mrf.mxu0
    %v1336 = vadd.f32 %v983, %v1335
    %v1337 = vpop.f32.mrf.mxu0
    %v1338 = vadd.f32 %v985, %v1337
    %1339 = vmatprep.mubr.f32.mxu0 0.0
    %1340 = vmatmul.mubr.f32.gmra.mxu0 %v1132
    %v1341 = vpop.f32.mrf.mxu0
    %v1342 = vadd.f32 %v989, %v1341
    %v1343 = vpop.f32.mrf.mxu0
    %v1344 = vadd.f32 %v991, %v1343
    %1345 = vmatprep.mubr.f32.mxu0 0.0
    %1346 = vmatmul.mubr.f32.gmra.mxu0 %v1135
    %v1347 = vpop.f32.mrf.mxu0
    %v1348 = vadd.f32 %v995, %v1347
    %v1349 = vpop.f32.mrf.mxu0
    %v1350 = vadd.f32 %v997, %v1349
    %1351 = vmatprep.mubr.f32.mxu0 0.0
    %1352 = vmatmul.mubr.f32.gmra.mxu0 %v1138
    %v1353 = vpop.f32.mrf.mxu0
    %v1354 = vadd.f32 %v1001, %v1353
    %v1355 = vpop.f32.mrf.mxu0
    %v1356 = vadd.f32 %v1003, %v1355
    %1357 = vmatprep.mubr.f32.mxu0 0.0
    %1358 = vmatmul.mubr.f32.gmra.mxu0 %v1141
    %v1359 = vpop.f32.mrf.mxu0
    %v1360 = vadd.f32 %v1007, %v1359
    %v1361 = vpop.f32.mrf.mxu0
    %v1362 = vadd.f32 %v1009, %v1361
    %1363 = vmatprep.mubr.f32.mxu0 0.0
    %1364 = vmatmul.mubr.f32.gmra.mxu0 %v1144
    %v1365 = vpop.f32.mrf.mxu0
    %v1366 = vadd.f32 %v1013, %v1365
    %v1367 = vpop.f32.mrf.mxu0
    %v1368 = vadd.f32 %v1015, %v1367
    %1369 = vmatprep.mubr.f32.mxu0 0.0
    %1370 = vmatmul.mubr.f32.gmra.mxu0 %v1147
    %v1371 = vpop.f32.mrf.mxu0
    %v1372 = vadd.f32 %v1019, %v1371
    %v1373 = vpop.f32.mrf.mxu0
    %v1374 = vadd.f32 %v1021, %v1373
    %1375 = vmatprep.mubr.f32.mxu0 0.0
    %1376 = vmatmul.mubr.f32.gmra.mxu0 %v1150
    %v1377 = vpop.f32.mrf.mxu0
    %v1378 = vadd.f32 %v1025, %v1377
    %v1379 = vpop.f32.mrf.mxu0
    %v1380 = vadd.f32 %v1027, %v1379
    %1381 = vmatprep.mubr.f32.mxu0 0.0
    %1382 = vmatmul.mubr.f32.gmra.mxu0 %v1153
    %v1383 = vpop.f32.mrf.mxu0
    %v1384 = vadd.f32 %v1031, %v1383
    %v1385 = vpop.f32.mrf.mxu0
    %v1386 = vadd.f32 %v1033, %v1385
    %1387 = vmatprep.mubr.f32.mxu0 0.0
    %1388 = vmatmul.mubr.f32.gmra.mxu0 %v1156
    %v1389 = vpop.f32.mrf.mxu0
    %v1390 = vadd.f32 %v1037, %v1389
    %v1391 = vpop.f32.mrf.mxu0
    %v1392 = vadd.f32 %v1039, %v1391
    %1393 = vmatprep.mubr.f32.mxu0 0.0
    %1394 = vmatmul.mubr.f32.gmra.mxu0 %v1159
    %v1395 = vpop.f32.mrf.mxu0
    %v1396 = vadd.f32 %v1043, %v1395
    %v1397 = vpop.f32.mrf.mxu0
    %v1398 = vadd.f32 %v1045, %v1397
    %1399 = vmatprep.mubr.f32.mxu0 0.0
    %1400 = vmatmul.mubr.f32.gmra.mxu0 %v1162
    %v1401 = vpop.f32.mrf.mxu0
    %v1402 = vadd.f32 %v1049, %v1401
    %v1403 = vpop.f32.mrf.mxu0
    %v1404 = vadd.f32 %v1051, %v1403
    %1405 = vmatprep.mubr.f32.mxu0 0.0
    %1406 = vmatmul.mubr.f32.gmra.mxu0 %v1165
    %v1407 = vpop.f32.mrf.mxu0
    %v1408 = vadd.f32 %v1055, %v1407
    %v1409 = vpop.f32.mrf.mxu0
    %v1410 = vadd.f32 %v1057, %v1409
    %1411 = vmatprep.mubr.f32.mxu0 0.0
    %1412 = vmatmul.mubr.f32.gmra.mxu0 %v1168
    %v1413 = vpop.f32.mrf.mxu0
    %v1414 = vadd.f32 %v1061, %v1413
    %v1415 = vpop.f32.mrf.mxu0
    %v1416 = vadd.f32 %v1063, %v1415
    %1417 = vmatprep.mubr.f32.mxu0 0.0
    %1418 = vmatmul.mubr.f32.gmra.mxu0 %v1171
    %v1419 = vpop.f32.mrf.mxu0
    %v1420 = vadd.f32 %v1067, %v1419
    %v1421 = vpop.f32.mrf.mxu0
    %v1422 = vadd.f32 %v1069, %v1421
    %1423 = vmatprep.mubr.f32.mxu0 0.0
    %1424 = vmatmul.mubr.f32.gmra.mxu0 %v1174
    %v1425 = vpop.f32.mrf.mxu0
    %v1426 = vadd.f32 %v1073, %v1425
    %v1427 = vpop.f32.mrf.mxu0
    %v1428 = vadd.f32 %v1075, %v1427
    %1429 = vmatprep.mubr.f32.mxu0 0.0
    %1430 = vmatmul.mubr.f32.gmra.mxu0 %v1177
    %v1431 = vpop.f32.mrf.mxu0
    %v1432 = vadd.f32 %v1079, %v1431
    %v1433 = vpop.f32.mrf.mxu0
    %v1434 = vadd.f32 %v1081, %v1433
    %1435 = vdwg.mxu0
    %v1436 = vadd.f32 %v1246, %v475
    %v1437 = vadd.f32 %v1248, %v477
    %v1438 = vadd.f32 %v1252, %v481
    %v1439 = vadd.f32 %v1254, %v483
    %v1440 = vadd.f32 %v1258, %v487
    %v1441 = vadd.f32 %v1260, %v489
    %v1442 = vadd.f32 %v1264, %v493
    %v1443 = vadd.f32 %v1266, %v495
    %v1444 = vadd.f32 %v1270, %v499
    %v1445 = vadd.f32 %v1272, %v501
    %v1446 = vadd.f32 %v1276, %v505
    %v1447 = vadd.f32 %v1278, %v507
    %v1448 = vadd.f32 %v1282, %v511
    %v1449 = vadd.f32 %v1284, %v513
    %v1450 = vadd.f32 %v1288, %v517
    %v1451 = vadd.f32 %v1290, %v519
    %v1452 = vadd.f32 %v1294, %v523
    %v1453 = vadd.f32 %v1296, %v525
    %v1454 = vadd.f32 %v1300, %v529
    %v1455 = vadd.f32 %v1302, %v531
    %v1456 = vadd.f32 %v1306, %v535
    %v1457 = vadd.f32 %v1308, %v537
    %v1458 = vadd.f32 %v1312, %v541
    %v1459 = vadd.f32 %v1314, %v543
    %v1460 = vadd.f32 %v1318, %v547
    %v1461 = vadd.f32 %v1320, %v549
    %v1462 = vadd.f32 %v1324, %v553
    %v1463 = vadd.f32 %v1326, %v555
    %v1464 = vadd.f32 %v1330, %v559
    %v1465 = vadd.f32 %v1332, %v561
    %v1466 = vadd.f32 %v1336, %v565
    %v1467 = vadd.f32 %v1338, %v567
    %v1468 = vadd.f32 %v1342, %v571
    %v1469 = vadd.f32 %v1344, %v573
    %v1470 = vadd.f32 %v1348, %v577
    %v1471 = vadd.f32 %v1350, %v579
    %v1472 = vadd.f32 %v1354, %v583
    %v1473 = vadd.f32 %v1356, %v585
    %v1474 = vadd.f32 %v1360, %v589
    %v1475 = vadd.f32 %v1362, %v591
    %v1476 = vadd.f32 %v1366, %v595
    %v1477 = vadd.f32 %v1368, %v597
    %v1478 = vadd.f32 %v1372, %v601
    %v1479 = vadd.f32 %v1374, %v603
    %v1480 = vadd.f32 %v1378, %v607
    %v1481 = vadd.f32 %v1380, %v609
    %v1482 = vadd.f32 %v1384, %v613
    %v1483 = vadd.f32 %v1386, %v615
    %v1484 = vadd.f32 %v1390, %v619
    %v1485 = vadd.f32 %v1392, %v621
    %v1486 = vadd.f32 %v1396, %v625
    %v1487 = vadd.f32 %v1398, %v627
    %v1488 = vadd.f32 %v1402, %v631
    %v1489 = vadd.f32 %v1404, %v633
    %v1490 = vadd.f32 %v1408, %v637
    %v1491 = vadd.f32 %v1410, %v639
    %v1492 = vadd.f32 %v1414, %v643
    %v1493 = vadd.f32 %v1416, %v645
    %v1494 = vadd.f32 %v1420, %v649
    %v1495 = vadd.f32 %v1422, %v651
    %v1496 = vadd.f32 %v1426, %v655
    %v1497 = vadd.f32 %v1428, %v657
    %v1498 = vadd.f32 %v1432, %v661
    %v1499 = vadd.f32 %v1434, %v663
    %vm1500 = vcmp.gt.f32.partialorder %v1436, 0.0
    %vm1501 = vcmp.gt.f32.partialorder %v1437, 0.0
    %vm1502 = vcmp.gt.f32.partialorder %v1438, 0.0
    %vm1503 = vcmp.gt.f32.partialorder %v1439, 0.0
    %vm1504 = vcmp.gt.f32.partialorder %v1440, 0.0
    %vm1505 = vcmp.gt.f32.partialorder %v1441, 0.0
    %vm1506 = vcmp.gt.f32.partialorder %v1442, 0.0
    %vm1507 = vcmp.gt.f32.partialorder %v1443, 0.0
    %vm1508 = vcmp.gt.f32.partialorder %v1444, 0.0
    %vm1509 = vcmp.gt.f32.partialorder %v1445, 0.0
    %vm1510 = vcmp.gt.f32.partialorder %v1446, 0.0
    %vm1511 = vcmp.gt.f32.partialorder %v1447, 0.0
    %vm1512 = vcmp.gt.f32.partialorder %v1448, 0.0
    %vm1513 = vcmp.gt.f32.partialorder %v1449, 0.0
    %vm1514 = vcmp.gt.f32.partialorder %v1450, 0.0
    %vm1515 = vcmp.gt.f32.partialorder %v1451, 0.0
    %vm1516 = vcmp.gt.f32.partialorder %v1452, 0.0
    %vm1517 = vcmp.gt.f32.partialorder %v1453, 0.0
    %vm1518 = vcmp.gt.f32.partialorder %v1454, 0.0
    %vm1519 = vcmp.gt.f32.partialorder %v1455, 0.0
    %vm1520 = vcmp.gt.f32.partialorder %v1456, 0.0
    %vm1521 = vcmp.gt.f32.partialorder %v1457, 0.0
    %vm1522 = vcmp.gt.f32.partialorder %v1458, 0.0
    %vm1523 = vcmp.gt.f32.partialorder %v1459, 0.0
    %vm1524 = vcmp.gt.f32.partialorder %v1460, 0.0
    %vm1525 = vcmp.gt.f32.partialorder %v1461, 0.0
    %vm1526 = vcmp.gt.f32.partialorder %v1462, 0.0
    %vm1527 = vcmp.gt.f32.partialorder %v1463, 0.0
    %vm1528 = vcmp.gt.f32.partialorder %v1464, 0.0
    %vm1529 = vcmp.gt.f32.partialorder %v1465, 0.0
    %vm1530 = vcmp.gt.f32.partialorder %v1466, 0.0
    %vm1531 = vcmp.gt.f32.partialorder %v1467, 0.0
    %vm1532 = vcmp.gt.f32.partialorder %v1468, 0.0
    %vm1533 = vcmp.gt.f32.partialorder %v1469, 0.0
    %vm1534 = vcmp.gt.f32.partialorder %v1470, 0.0
    %vm1535 = vcmp.gt.f32.partialorder %v1471, 0.0
    %vm1536 = vcmp.gt.f32.partialorder %v1472, 0.0
    %vm1537 = vcmp.gt.f32.partialorder %v1473, 0.0
    %vm1538 = vcmp.gt.f32.partialorder %v1474, 0.0
    %vm1539 = vcmp.gt.f32.partialorder %v1475, 0.0
    %vm1540 = vcmp.gt.f32.partialorder %v1476, 0.0
    %vm1541 = vcmp.gt.f32.partialorder %v1477, 0.0
    %vm1542 = vcmp.gt.f32.partialorder %v1478, 0.0
    %vm1543 = vcmp.gt.f32.partialorder %v1479, 0.0
    %vm1544 = vcmp.gt.f32.partialorder %v1480, 0.0
    %vm1545 = vcmp.gt.f32.partialorder %v1481, 0.0
    %vm1546 = vcmp.gt.f32.partialorder %v1482, 0.0
    %vm1547 = vcmp.gt.f32.partialorder %v1483, 0.0
    %vm1548 = vcmp.gt.f32.partialorder %v1484, 0.0
    %vm1549 = vcmp.gt.f32.partialorder %v1485, 0.0
    %vm1550 = vcmp.gt.f32.partialorder %v1486, 0.0
    %vm1551 = vcmp.gt.f32.partialorder %v1487, 0.0
    %vm1552 = vcmp.gt.f32.partialorder %v1488, 0.0
    %vm1553 = vcmp.gt.f32.partialorder %v1489, 0.0
    %vm1554 = vcmp.gt.f32.partialorder %v1490, 0.0
    %vm1555 = vcmp.gt.f32.partialorder %v1491, 0.0
    %vm1556 = vcmp.gt.f32.partialorder %v1492, 0.0
    %vm1557 = vcmp.gt.f32.partialorder %v1493, 0.0
    %vm1558 = vcmp.gt.f32.partialorder %v1494, 0.0
    %vm1559 = vcmp.gt.f32.partialorder %v1495, 0.0
    %vm1560 = vcmp.gt.f32.partialorder %v1496, 0.0
    %vm1561 = vcmp.gt.f32.partialorder %v1497, 0.0
    %vm1562 = vcmp.gt.f32.partialorder %v1498, 0.0
    %vm1563 = vcmp.gt.f32.partialorder %v1499, 0.0
    %v1564 = vmul.f32 %v1436, 0.2
    %v1565 = vmul.f32 %v1437, 0.2
    %v1566 = vmul.f32 %v1438, 0.2
    %v1567 = vmul.f32 %v1439, 0.2
    %v1568 = vmul.f32 %v1440, 0.2
    %v1569 = vmul.f32 %v1441, 0.2
    %v1570 = vmul.f32 %v1442, 0.2
    %v1571 = vmul.f32 %v1443, 0.2
    %v1572 = vmul.f32 %v1444, 0.2
    %v1573 = vmul.f32 %v1445, 0.2
    %v1574 = vmul.f32 %v1446, 0.2
    %v1575 = vmul.f32 %v1447, 0.2
    %v1576 = vmul.f32 %v1448, 0.2
    %v1577 = vmul.f32 %v1449, 0.2
    %v1578 = vmul.f32 %v1450, 0.2
    %v1579 = vmul.f32 %v1451, 0.2
    %v1580 = vmul.f32 %v1452, 0.2
    %v1581 = vmul.f32 %v1453, 0.2
    %v1582 = vmul.f32 %v1454, 0.2
    %v1583 = vmul.f32 %v1455, 0.2
    %v1584 = vmul.f32 %v1456, 0.2
    %v1585 = vmul.f32 %v1457, 0.2
    %v1586 = vmul.f32 %v1458, 0.2
    %v1587 = vmul.f32 %v1459, 0.2
    %v1588 = vmul.f32 %v1460, 0.2
    %v1589 = vmul.f32 %v1461, 0.2
    %v1590 = vmul.f32 %v1462, 0.2
    %v1591 = vmul.f32 %v1463, 0.2
    %v1592 = vmul.f32 %v1464, 0.2
    %v1593 = vmul.f32 %v1465, 0.2
    %v1594 = vmul.f32 %v1466, 0.2
    %v1595 = vmul.f32 %v1467, 0.2
    %v1596 = vmul.f32 %v1468, 0.2
    %v1597 = vmul.f32 %v1469, 0.2
    %v1598 = vmul.f32 %v1470, 0.2
    %v1599 = vmul.f32 %v1471, 0.2
    %v1600 = vmul.f32 %v1472, 0.2
    %v1601 = vmul.f32 %v1473, 0.2
    %v1602 = vmul.f32 %v1474, 0.2
    %v1603 = vmul.f32 %v1475, 0.2
    %v1604 = vmul.f32 %v1476, 0.2
    %v1605 = vmul.f32 %v1477, 0.2
    %v1606 = vmul.f32 %v1478, 0.2
    %v1607 = vmul.f32 %v1479, 0.2
    %v1608 = vmul.f32 %v1480, 0.2
    %v1609 = vmul.f32 %v1481, 0.2
    %v1610 = vmul.f32 %v1482, 0.2
    %v1611 = vmul.f32 %v1483, 0.2
    %v1612 = vmul.f32 %v1484, 0.2
    %v1613 = vmul.f32 %v1485, 0.2
    %v1614 = vmul.f32 %v1486, 0.2
    %v1615 = vmul.f32 %v1487, 0.2
    %v1616 = vmul.f32 %v1488, 0.2
    %v1617 = vmul.f32 %v1489, 0.2
    %v1618 = vmul.f32 %v1490, 0.2
    %v1619 = vmul.f32 %v1491, 0.2
    %v1620 = vmul.f32 %v1492, 0.2
    %v1621 = vmul.f32 %v1493, 0.2
    %v1622 = vmul.f32 %v1494, 0.2
    %v1623 = vmul.f32 %v1495, 0.2
    %v1624 = vmul.f32 %v1496, 0.2
    %v1625 = vmul.f32 %v1497, 0.2
    %v1626 = vmul.f32 %v1498, 0.2
    %v1627 = vmul.f32 %v1499, 0.2
    %v1628 = vsel %vm1500, %v1436, %v1564
    %v1629 = vsel %vm1501, %v1437, %v1565
    %v1630 = vsel %vm1502, %v1438, %v1566
    %v1631 = vsel %vm1503, %v1439, %v1567
    %v1632 = vsel %vm1504, %v1440, %v1568
    %v1633 = vsel %vm1505, %v1441, %v1569
    %v1634 = vsel %vm1506, %v1442, %v1570
    %v1635 = vsel %vm1507, %v1443, %v1571
    %v1636 = vsel %vm1508, %v1444, %v1572
    %v1637 = vsel %vm1509, %v1445, %v1573
    %v1638 = vsel %vm1510, %v1446, %v1574
    %v1639 = vsel %vm1511, %v1447, %v1575
    %v1640 = vsel %vm1512, %v1448, %v1576
    %v1641 = vsel %vm1513, %v1449, %v1577
    %v1642 = vsel %vm1514, %v1450, %v1578
    %v1643 = vsel %vm1515, %v1451, %v1579
    %v1644 = vsel %vm1516, %v1452, %v1580
    %v1645 = vsel %vm1517, %v1453, %v1581
    %v1646 = vsel %vm1518, %v1454, %v1582
    %v1647 = vsel %vm1519, %v1455, %v1583
    %v1648 = vsel %vm1520, %v1456, %v1584
    %v1649 = vsel %vm1521, %v1457, %v1585
    %v1650 = vsel %vm1522, %v1458, %v1586
    %v1651 = vsel %vm1523, %v1459, %v1587
    %v1652 = vsel %vm1524, %v1460, %v1588
    %v1653 = vsel %vm1525, %v1461, %v1589
    %v1654 = vsel %vm1526, %v1462, %v1590
    %v1655 = vsel %vm1527, %v1463, %v1591
    %v1656 = vsel %vm1528, %v1464, %v1592
    %v1657 = vsel %vm1529, %v1465, %v1593
    %v1658 = vsel %vm1530, %v1466, %v1594
    %v1659 = vsel %vm1531, %v1467, %v1595
    %v1660 = vsel %vm1532, %v1468, %v1596
    %v1661 = vsel %vm1533, %v1469, %v1597
    %v1662 = vsel %vm1534, %v1470, %v1598
    %v1663 = vsel %vm1535, %v1471, %v1599
    %v1664 = vsel %vm1536, %v1472, %v1600
    %v1665 = vsel %vm1537, %v1473, %v1601
    %v1666 = vsel %vm1538, %v1474, %v1602
    %v1667 = vsel %vm1539, %v1475, %v1603
    %v1668 = vsel %vm1540, %v1476, %v1604
    %v1669 = vsel %vm1541, %v1477, %v1605
    %v1670 = vsel %vm1542, %v1478, %v1606
    %v1671 = vsel %vm1543, %v1479, %v1607
    %v1672 = vsel %vm1544, %v1480, %v1608
    %v1673 = vsel %vm1545, %v1481, %v1609
    %v1674 = vsel %vm1546, %v1482, %v1610
    %v1675 = vsel %vm1547, %v1483, %v1611
    %v1676 = vsel %vm1548, %v1484, %v1612
    %v1677 = vsel %vm1549, %v1485, %v1613
    %v1678 = vsel %vm1550, %v1486, %v1614
    %v1679 = vsel %vm1551, %v1487, %v1615
    %v1680 = vsel %vm1552, %v1488, %v1616
    %v1681 = vsel %vm1553, %v1489, %v1617
    %v1682 = vsel %vm1554, %v1490, %v1618
    %v1683 = vsel %vm1555, %v1491, %v1619
    %v1684 = vsel %vm1556, %v1492, %v1620
    %v1685 = vsel %vm1557, %v1493, %v1621
    %v1686 = vsel %vm1558, %v1494, %v1622
    %v1687 = vsel %vm1559, %v1495, %v1623
    %v1688 = vsel %vm1560, %v1496, %v1624
    %v1689 = vsel %vm1561, %v1497, %v1625
    %v1690 = vsel %vm1562, %v1498, %v1626
    %v1691 = vsel %vm1563, %v1499, %v1627
    %v1692 = vld [vmem:[%s9] sm:$0xff]
    %v1693 = vld [vmem:[%s9 + $0x8] sm:$0xff]
    %v1694 = vld [vmem:[%s9 + $0x10] sm:$0xff]
    %v1695 = vld [vmem:[%s9 + $0x18] sm:$0xff]
    %v1696 = vld [vmem:[%s9 + $0x20] sm:$0xff]
    %v1697 = vld [vmem:[%s9 + $0x28] sm:$0xff]
    %v1698 = vld [vmem:[%s9 + $0x30] sm:$0xff]
    %v1699 = vld [vmem:[%s9 + $0x38] sm:$0xff]
    %v1700 = vld [vmem:[%s9 + $0x40] sm:$0xff]
    %v1701 = vld [vmem:[%s9 + $0x48] sm:$0xff]
    %v1702 = vld [vmem:[%s9 + $0x50] sm:$0xff]
    %v1703 = vld [vmem:[%s9 + $0x58] sm:$0xff]
    %v1704 = vld [vmem:[%s9 + $0x60] sm:$0xff]
    %v1705 = vld [vmem:[%s9 + $0x68] sm:$0xff]
    %v1706 = vld [vmem:[%s9 + $0x70] sm:$0xff]
    %v1707 = vld [vmem:[%s9 + $0x78] sm:$0xff]
    %v1708 = vld [vmem:[%s9 + $0x80] sm:$0xff]
    %v1709 = vld [vmem:[%s9 + $0x88] sm:$0xff]
    %v1710 = vld [vmem:[%s9 + $0x90] sm:$0xff]
    %v1711 = vld [vmem:[%s9 + $0x98] sm:$0xff]
    %v1712 = vld [vmem:[%s9 + $0xa0] sm:$0xff]
    %v1713 = vld [vmem:[%s9 + $0xa8] sm:$0xff]
    %v1714 = vld [vmem:[%s9 + $0xb0] sm:$0xff]
    %v1715 = vld [vmem:[%s9 + $0xb8] sm:$0xff]
    %v1716 = vld [vmem:[%s9 + $0xc0] sm:$0xff]
    %v1717 = vld [vmem:[%s9 + $0xc8] sm:$0xff]
    %v1718 = vld [vmem:[%s9 + $0xd0] sm:$0xff]
    %v1719 = vld [vmem:[%s9 + $0xd8] sm:$0xff]
    %v1720 = vld [vmem:[%s9 + $0xe0] sm:$0xff]
    %v1721 = vld [vmem:[%s9 + $0xe8] sm:$0xff]
    %v1722 = vld [vmem:[%s9 + $0xf0] sm:$0xff]
    %v1723 = vld [vmem:[%s9 + $0xf8] sm:$0xff]
    %v1724 = vld [vmem:[%s2] sm:$0xff]
    %v1725 = vld [vmem:[%s2 + $0x8] sm:$0xff]
    %v1726 = vld [vmem:[%s2 + $0x10] sm:$0xff]
    %v1727 = vld [vmem:[%s2 + $0x18] sm:$0xff]
    %v1728 = vld [vmem:[%s2 + $0x20] sm:$0xff]
    %v1729 = vld [vmem:[%s2 + $0x28] sm:$0xff]
    %v1730 = vld [vmem:[%s2 + $0x30] sm:$0xff]
    %v1731 = vld [vmem:[%s2 + $0x38] sm:$0xff]
    %v1732 = vld [vmem:[%s2 + $0x40] sm:$0xff]
    %v1733 = vld [vmem:[%s2 + $0x48] sm:$0xff]
    %v1734 = vld [vmem:[%s2 + $0x50] sm:$0xff]
    %v1735 = vld [vmem:[%s2 + $0x58] sm:$0xff]
    %v1736 = vld [vmem:[%s2 + $0x60] sm:$0xff]
    %v1737 = vld [vmem:[%s2 + $0x68] sm:$0xff]
    %v1738 = vld [vmem:[%s2 + $0x70] sm:$0xff]
    %v1739 = vld [vmem:[%s2 + $0x78] sm:$0xff]
    %v1740 = vld [vmem:[%s2 + $0x80] sm:$0xff]
    %v1741 = vld [vmem:[%s2 + $0x88] sm:$0xff]
    %v1742 = vld [vmem:[%s2 + $0x90] sm:$0xff]
    %v1743 = vld [vmem:[%s2 + $0x98] sm:$0xff]
    %v1744 = vld [vmem:[%s2 + $0xa0] sm:$0xff]
    %v1745 = vld [vmem:[%s2 + $0xa8] sm:$0xff]
    %v1746 = vld [vmem:[%s2 + $0xb0] sm:$0xff]
    %v1747 = vld [vmem:[%s2 + $0xb8] sm:$0xff]
    %v1748 = vld [vmem:[%s2 + $0xc0] sm:$0xff]
    %v1749 = vld [vmem:[%s2 + $0xc8] sm:$0xff]
    %v1750 = vld [vmem:[%s2 + $0xd0] sm:$0xff]
    %v1751 = vld [vmem:[%s2 + $0xd8] sm:$0xff]
    %v1752 = vld [vmem:[%s2 + $0xe0] sm:$0xff]
    %v1753 = vld [vmem:[%s2 + $0xe8] sm:$0xff]
    %v1754 = vld [vmem:[%s2 + $0xf0] sm:$0xff]
    %v1755 = vld [vmem:[%s2 + $0xf8] sm:$0xff]
    %1757 = vset.pattern.permute.xlu0 0
    %1758 = vperm.xlu0 %1757, %v1724
    %v1759 = vpop.permute.xlu0 %1758
    %1762 = vset.pattern.permute.xlu0 0
    %1763 = vperm.xlu0 %1762, %v1725
    %v1764 = vpop.permute.xlu0 %1763
    %1767 = vset.pattern.permute.xlu0 0
    %1768 = vperm.xlu0 %1767, %v1726
    %v1769 = vpop.permute.xlu0 %1768
    %1772 = vset.pattern.permute.xlu0 0
    %1773 = vperm.xlu0 %1772, %v1727
    %v1774 = vpop.permute.xlu0 %1773
    %1777 = vset.pattern.permute.xlu0 0
    %1778 = vperm.xlu0 %1777, %v1728
    %v1779 = vpop.permute.xlu0 %1778
    %1782 = vset.pattern.permute.xlu0 0
    %1783 = vperm.xlu0 %1782, %v1729
    %v1784 = vpop.permute.xlu0 %1783
    %1787 = vset.pattern.permute.xlu0 0
    %1788 = vperm.xlu0 %1787, %v1730
    %v1789 = vpop.permute.xlu0 %1788
    %1792 = vset.pattern.permute.xlu0 0
    %1793 = vperm.xlu0 %1792, %v1731
    %v1794 = vpop.permute.xlu0 %1793
    %1797 = vset.pattern.permute.xlu0 0
    %1798 = vperm.xlu0 %1797, %v1732
    %v1799 = vpop.permute.xlu0 %1798
    %1802 = vset.pattern.permute.xlu0 0
    %1803 = vperm.xlu0 %1802, %v1733
    %v1804 = vpop.permute.xlu0 %1803
    %1807 = vset.pattern.permute.xlu0 0
    %1808 = vperm.xlu0 %1807, %v1734
    %v1809 = vpop.permute.xlu0 %1808
    %1812 = vset.pattern.permute.xlu0 0
    %1813 = vperm.xlu0 %1812, %v1735
    %v1814 = vpop.permute.xlu0 %1813
    %1817 = vset.pattern.permute.xlu0 0
    %1818 = vperm.xlu0 %1817, %v1736
    %v1819 = vpop.permute.xlu0 %1818
    %1822 = vset.pattern.permute.xlu0 0
    %1823 = vperm.xlu0 %1822, %v1737
    %v1824 = vpop.permute.xlu0 %1823
    %1827 = vset.pattern.permute.xlu0 0
    %1828 = vperm.xlu0 %1827, %v1738
    %v1829 = vpop.permute.xlu0 %1828
    %1832 = vset.pattern.permute.xlu0 0
    %1833 = vperm.xlu0 %1832, %v1739
    %v1834 = vpop.permute.xlu0 %1833
    %1837 = vset.pattern.permute.xlu0 0
    %1838 = vperm.xlu0 %1837, %v1740
    %v1839 = vpop.permute.xlu0 %1838
    %1842 = vset.pattern.permute.xlu0 0
    %1843 = vperm.xlu0 %1842, %v1741
    %v1844 = vpop.permute.xlu0 %1843
    %1847 = vset.pattern.permute.xlu0 0
    %1848 = vperm.xlu0 %1847, %v1742
    %v1849 = vpop.permute.xlu0 %1848
    %1852 = vset.pattern.permute.xlu0 0
    %1853 = vperm.xlu0 %1852, %v1743
    %v1854 = vpop.permute.xlu0 %1853
    %1857 = vset.pattern.permute.xlu0 0
    %1858 = vperm.xlu0 %1857, %v1744
    %v1859 = vpop.permute.xlu0 %1858
    %1862 = vset.pattern.permute.xlu0 0
    %1863 = vperm.xlu0 %1862, %v1745
    %v1864 = vpop.permute.xlu0 %1863
    %1867 = vset.pattern.permute.xlu0 0
    %1868 = vperm.xlu0 %1867, %v1746
    %v1869 = vpop.permute.xlu0 %1868
    %1872 = vset.pattern.permute.xlu0 0
    %1873 = vperm.xlu0 %1872, %v1747
    %v1874 = vpop.permute.xlu0 %1873
    %1877 = vset.pattern.permute.xlu0 0
    %1878 = vperm.xlu0 %1877, %v1748
    %v1879 = vpop.permute.xlu0 %1878
    %1882 = vset.pattern.permute.xlu0 0
    %1883 = vperm.xlu0 %1882, %v1749
    %v1884 = vpop.permute.xlu0 %1883
    %1887 = vset.pattern.permute.xlu0 0
    %1888 = vperm.xlu0 %1887, %v1750
    %v1889 = vpop.permute.xlu0 %1888
    %1892 = vset.pattern.permute.xlu0 0
    %1893 = vperm.xlu0 %1892, %v1751
    %v1894 = vpop.permute.xlu0 %1893
    %1897 = vset.pattern.permute.xlu0 0
    %1898 = vperm.xlu0 %1897, %v1752
    %v1899 = vpop.permute.xlu0 %1898
    %1902 = vset.pattern.permute.xlu0 0
    %1903 = vperm.xlu0 %1902, %v1753
    %v1904 = vpop.permute.xlu0 %1903
    %1907 = vset.pattern.permute.xlu0 0
    %1908 = vperm.xlu0 %1907, %v1754
    %v1909 = vpop.permute.xlu0 %1908
    %1912 = vset.pattern.permute.xlu0 0
    %1913 = vperm.xlu0 %1912, %v1755
    %v1914 = vpop.permute.xlu0 %1913
    %1916 = vmatprep.subr.mxu0 0.0
    %1917 = vmatpush1.msra.mxu0 %v1707
    %1918 = vmatprep.subr.mxu0 0.0
    %1919 = vmatpush1.msra.mxu0 %v1706
    %1920 = vmatprep.subr.mxu0 0.0
    %1921 = vmatpush1.msra.mxu0 %v1705
    %1922 = vmatprep.subr.mxu0 0.0
    %1923 = vmatpush1.msra.mxu0 %v1704
    %1924 = vmatprep.subr.mxu0 0.0
    %1925 = vmatpush1.msra.mxu0 %v1703
    %1926 = vmatprep.subr.mxu0 0.0
    %1927 = vmatpush1.msra.mxu0 %v1702
    %1928 = vmatprep.subr.mxu0 0.0
    %1929 = vmatpush1.msra.mxu0 %v1701
    %1930 = vmatprep.subr.mxu0 0.0
    %1931 = vmatpush1.msra.mxu0 %v1700
    %1932 = vmatprep.subr.mxu0 0.0
    %1933 = vmatpush1.msra.mxu0 %v1699
    %1934 = vmatprep.subr.mxu0 0.0
    %1935 = vmatpush1.msra.mxu0 %v1698
    %1936 = vmatprep.subr.mxu0 0.0
    %1937 = vmatpush1.msra.mxu0 %v1697
    %1938 = vmatprep.subr.mxu0 0.0
    %1939 = vmatpush1.msra.mxu0 %v1696
    %1940 = vmatprep.subr.mxu0 0.0
    %1941 = vmatpush1.msra.mxu0 %v1695
    %1942 = vmatprep.subr.mxu0 0.0
    %1943 = vmatpush1.msra.mxu0 %v1694
    %1944 = vmatprep.subr.mxu0 0.0
    %1945 = vmatpush1.msra.mxu0 %v1693
    %1946 = vmatprep.subr.mxu0 0.0
    %1947 = vmatpush1.msra.mxu0 %v1692
    %1948 = vmatprep.subr.mxu0 0.0
    %1949 = vmatpush2.msra.mxu0 %v1723
    %1950 = vmatprep.subr.mxu0 0.0
    %1951 = vmatpush2.msra.mxu0 %v1722
    %1952 = vmatprep.subr.mxu0 0.0
    %1953 = vmatpush2.msra.mxu0 %v1721
    %1954 = vmatprep.subr.mxu0 0.0
    %1955 = vmatpush2.msra.mxu0 %v1720
    %1956 = vmatprep.subr.mxu0 0.0
    %1957 = vmatpush2.msra.mxu0 %v1719
    %1958 = vmatprep.subr.mxu0 0.0
    %1959 = vmatpush2.msra.mxu0 %v1718
    %1960 = vmatprep.subr.mxu0 0.0
    %1961 = vmatpush2.msra.mxu0 %v1717
    %1962 = vmatprep.subr.mxu0 0.0
    %1963 = vmatpush2.msra.mxu0 %v1716
    %1964 = vmatprep.subr.mxu0 0.0
    %1965 = vmatpush2.msra.mxu0 %v1715
    %1966 = vmatprep.subr.mxu0 0.0
    %1967 = vmatpush2.msra.mxu0 %v1714
    %1968 = vmatprep.subr.mxu0 0.0
    %1969 = vmatpush2.msra.mxu0 %v1713
    %1970 = vmatprep.subr.mxu0 0.0
    %1971 = vmatpush2.msra.mxu0 %v1712
    %1972 = vmatprep.subr.mxu0 0.0
    %1973 = vmatpush2.msra.mxu0 %v1711
    %1974 = vmatprep.subr.mxu0 0.0
    %1975 = vmatpush2.msra.mxu0 %v1710
    %1976 = vmatprep.subr.mxu0 0.0
    %1977 = vmatpush2.msra.mxu0 %v1709
    %1978 = vmatprep.subr.mxu0 0.0
    %1979 = vmatpush2.msra.mxu0 %v1708
    %1980 = vmatprep.mubr.f32.mxu0 %v1629
    %1981 = vmatmul.mubr.f32.gmra.mxu0 %v1628
    %v1982 = vpop.f32.mrf.mxu0
    %v1983 = vadd.f32 %v1759, %v1982
    %v1984 = vpop.f32.mrf.mxu0
    %1985 = vmatprep.mubr.f32.mxu0 %v1631
    %1986 = vmatmul.mubr.f32.gmra.mxu0 %v1630
    %v1987 = vpop.f32.mrf.mxu0
    %v1988 = vadd.f32 %v1764, %v1987
    %v1989 = vpop.f32.mrf.mxu0
    %1990 = vmatprep.mubr.f32.mxu0 %v1633
    %1991 = vmatmul.mubr.f32.gmra.mxu0 %v1632
    %v1992 = vpop.f32.mrf.mxu0
    %v1993 = vadd.f32 %v1769, %v1992
    %v1994 = vpop.f32.mrf.mxu0
    %1995 = vmatprep.mubr.f32.mxu0 %v1635
    %1996 = vmatmul.mubr.f32.gmra.mxu0 %v1634
    %v1997 = vpop.f32.mrf.mxu0
    %v1998 = vadd.f32 %v1774, %v1997
    %v1999 = vpop.f32.mrf.mxu0
    %2000 = vmatprep.mubr.f32.mxu0 %v1637
    %2001 = vmatmul.mubr.f32.gmra.mxu0 %v1636
    %v2002 = vpop.f32.mrf.mxu0
    %v2003 = vadd.f32 %v1779, %v2002
    %v2004 = vpop.f32.mrf.mxu0
    %2005 = vmatprep.mubr.f32.mxu0 %v1639
    %2006 = vmatmul.mubr.f32.gmra.mxu0 %v1638
    %v2007 = vpop.f32.mrf.mxu0
    %v2008 = vadd.f32 %v1784, %v2007
    %v2009 = vpop.f32.mrf.mxu0
    %2010 = vmatprep.mubr.f32.mxu0 %v1641
    %2011 = vmatmul.mubr.f32.gmra.mxu0 %v1640
    %v2012 = vpop.f32.mrf.mxu0
    %v2013 = vadd.f32 %v1789, %v2012
    %v2014 = vpop.f32.mrf.mxu0
    %2015 = vmatprep.mubr.f32.mxu0 %v1643
    %2016 = vmatmul.mubr.f32.gmra.mxu0 %v1642
    %v2017 = vpop.f32.mrf.mxu0
    %v2018 = vadd.f32 %v1794, %v2017
    %v2019 = vpop.f32.mrf.mxu0
    %2020 = vmatprep.mubr.f32.mxu0 %v1645
    %2021 = vmatmul.mubr.f32.gmra.mxu0 %v1644
    %v2022 = vpop.f32.mrf.mxu0
    %v2023 = vadd.f32 %v1799, %v2022
    %v2024 = vpop.f32.mrf.mxu0
    %2025 = vmatprep.mubr.f32.mxu0 %v1647
    %2026 = vmatmul.mubr.f32.gmra.mxu0 %v1646
    %v2027 = vpop.f32.mrf.mxu0
    %v2028 = vadd.f32 %v1804, %v2027
    %v2029 = vpop.f32.mrf.mxu0
    %2030 = vmatprep.mubr.f32.mxu0 %v1649
    %2031 = vmatmul.mubr.f32.gmra.mxu0 %v1648
    %v2032 = vpop.f32.mrf.mxu0
    %v2033 = vadd.f32 %v1809, %v2032
    %v2034 = vpop.f32.mrf.mxu0
    %2035 = vmatprep.mubr.f32.mxu0 %v1651
    %2036 = vmatmul.mubr.f32.gmra.mxu0 %v1650
    %v2037 = vpop.f32.mrf.mxu0
    %v2038 = vadd.f32 %v1814, %v2037
    %v2039 = vpop.f32.mrf.mxu0
    %2040 = vmatprep.mubr.f32.mxu0 %v1653
    %2041 = vmatmul.mubr.f32.gmra.mxu0 %v1652
    %v2042 = vpop.f32.mrf.mxu0
    %v2043 = vadd.f32 %v1819, %v2042
    %v2044 = vpop.f32.mrf.mxu0
    %2045 = vmatprep.mubr.f32.mxu0 %v1655
    %2046 = vmatmul.mubr.f32.gmra.mxu0 %v1654
    %v2047 = vpop.f32.mrf.mxu0
    %v2048 = vadd.f32 %v1824, %v2047
    %v2049 = vpop.f32.mrf.mxu0
    %2050 = vmatprep.mubr.f32.mxu0 %v1657
    %2051 = vmatmul.mubr.f32.gmra.mxu0 %v1656
    %v2052 = vpop.f32.mrf.mxu0
    %v2053 = vadd.f32 %v1829, %v2052
    %v2054 = vpop.f32.mrf.mxu0
    %2055 = vmatprep.mubr.f32.mxu0 %v1659
    %2056 = vmatmul.mubr.f32.gmra.mxu0 %v1658
    %v2057 = vpop.f32.mrf.mxu0
    %v2058 = vadd.f32 %v1834, %v2057
    %v2059 = vpop.f32.mrf.mxu0
    %2060 = vmatprep.mubr.f32.mxu0 %v1661
    %2061 = vmatmul.mubr.f32.gmra.mxu0 %v1660
    %v2062 = vpop.f32.mrf.mxu0
    %v2063 = vadd.f32 %v1839, %v2062
    %v2064 = vpop.f32.mrf.mxu0
    %2065 = vmatprep.mubr.f32.mxu0 %v1663
    %2066 = vmatmul.mubr.f32.gmra.mxu0 %v1662
    %v2067 = vpop.f32.mrf.mxu0
    %v2068 = vadd.f32 %v1844, %v2067
    %v2069 = vpop.f32.mrf.mxu0
    %2070 = vmatprep.mubr.f32.mxu0 %v1665
    %2071 = vmatmul.mubr.f32.gmra.mxu0 %v1664
    %v2072 = vpop.f32.mrf.mxu0
    %v2073 = vadd.f32 %v1849, %v2072
    %v2074 = vpop.f32.mrf.mxu0
    %2075 = vmatprep.mubr.f32.mxu0 %v1667
    %2076 = vmatmul.mubr.f32.gmra.mxu0 %v1666
    %v2077 = vpop.f32.mrf.mxu0
    %v2078 = vadd.f32 %v1854, %v2077
    %v2079 = vpop.f32.mrf.mxu0
    %2080 = vmatprep.mubr.f32.mxu0 %v1669
    %2081 = vmatmul.mubr.f32.gmra.mxu0 %v1668
    %v2082 = vpop.f32.mrf.mxu0
    %v2083 = vadd.f32 %v1859, %v2082
    %v2084 = vpop.f32.mrf.mxu0
    %2085 = vmatprep.mubr.f32.mxu0 %v1671
    %2086 = vmatmul.mubr.f32.gmra.mxu0 %v1670
    %v2087 = vpop.f32.mrf.mxu0
    %v2088 = vadd.f32 %v1864, %v2087
    %v2089 = vpop.f32.mrf.mxu0
    %2090 = vmatprep.mubr.f32.mxu0 %v1673
    %2091 = vmatmul.mubr.f32.gmra.mxu0 %v1672
    %v2092 = vpop.f32.mrf.mxu0
    %v2093 = vadd.f32 %v1869, %v2092
    %v2094 = vpop.f32.mrf.mxu0
    %2095 = vmatprep.mubr.f32.mxu0 %v1675
    %2096 = vmatmul.mubr.f32.gmra.mxu0 %v1674
    %v2097 = vpop.f32.mrf.mxu0
    %v2098 = vadd.f32 %v1874, %v2097
    %v2099 = vpop.f32.mrf.mxu0
    %2100 = vmatprep.mubr.f32.mxu0 %v1677
    %2101 = vmatmul.mubr.f32.gmra.mxu0 %v1676
    %v2102 = vpop.f32.mrf.mxu0
    %v2103 = vadd.f32 %v1879, %v2102
    %v2104 = vpop.f32.mrf.mxu0
    %2105 = vmatprep.mubr.f32.mxu0 %v1679
    %2106 = vmatmul.mubr.f32.gmra.mxu0 %v1678
    %v2107 = vpop.f32.mrf.mxu0
    %v2108 = vadd.f32 %v1884, %v2107
    %v2109 = vpop.f32.mrf.mxu0
    %2110 = vmatprep.mubr.f32.mxu0 %v1681
    %2111 = vmatmul.mubr.f32.gmra.mxu0 %v1680
    %v2112 = vpop.f32.mrf.mxu0
    %v2113 = vadd.f32 %v1889, %v2112
    %v2114 = vpop.f32.mrf.mxu0
    %2115 = vmatprep.mubr.f32.mxu0 %v1683
    %2116 = vmatmul.mubr.f32.gmra.mxu0 %v1682
    %v2117 = vpop.f32.mrf.mxu0
    %v2118 = vadd.f32 %v1894, %v2117
    %v2119 = vpop.f32.mrf.mxu0
    %2120 = vmatprep.mubr.f32.mxu0 %v1685
    %2121 = vmatmul.mubr.f32.gmra.mxu0 %v1684
    %v2122 = vpop.f32.mrf.mxu0
    %v2123 = vadd.f32 %v1899, %v2122
    %v2124 = vpop.f32.mrf.mxu0
    %2125 = vmatprep.mubr.f32.mxu0 %v1687
    %2126 = vmatmul.mubr.f32.gmra.mxu0 %v1686
    %v2127 = vpop.f32.mrf.mxu0
    %v2128 = vadd.f32 %v1904, %v2127
    %v2129 = vpop.f32.mrf.mxu0
    %2130 = vmatprep.mubr.f32.mxu0 %v1689
    %2131 = vmatmul.mubr.f32.gmra.mxu0 %v1688
    %v2132 = vpop.f32.mrf.mxu0
    %v2133 = vadd.f32 %v1909, %v2132
    %v2134 = vpop.f32.mrf.mxu0
    %2135 = vmatprep.mubr.f32.mxu0 %v1691
    %2136 = vmatmul.mubr.f32.gmra.mxu0 %v1690
    %v2137 = vpop.f32.mrf.mxu0
    %v2138 = vadd.f32 %v1914, %v2137
    %v2139 = vpop.f32.mrf.mxu0
    %2140 = vdwg.mxu0
    %vm2141 = vcmask 64512
    %v2142 = vsel %vm2141, %v1983, -inf
    %2143 = vmax.xlane.f32.xlu0 %v2142
    %v2144 = vpop.xlane.xlu0 %2143
    %v2145 = vsel %vm2141, %v1988, -inf
    %2146 = vmax.xlane.f32.xlu0 %v2145
    %v2147 = vpop.xlane.xlu0 %2146
    %v2148 = vsel %vm2141, %v1993, -inf
    %2149 = vmax.xlane.f32.xlu0 %v2148
    %v2150 = vpop.xlane.xlu0 %2149
    %v2151 = vsel %vm2141, %v1998, -inf
    %2152 = vmax.xlane.f32.xlu0 %v2151
    %v2153 = vpop.xlane.xlu0 %2152
    %v2154 = vsel %vm2141, %v2003, -inf
    %2155 = vmax.xlane.f32.xlu0 %v2154
    %v2156 = vpop.xlane.xlu0 %2155
    %v2157 = vsel %vm2141, %v2008, -inf
    %2158 = vmax.xlane.f32.xlu0 %v2157
    %v2159 = vpop.xlane.xlu0 %2158
    %v2160 = vsel %vm2141, %v2013, -inf
    %2161 = vmax.xlane.f32.xlu0 %v2160
    %v2162 = vpop.xlane.xlu0 %2161
    %v2163 = vsel %vm2141, %v2018, -inf
    %2164 = vmax.xlane.f32.xlu0 %v2163
    %v2165 = vpop.xlane.xlu0 %2164
    %v2166 = vsel %vm2141, %v2023, -inf
    %2167 = vmax.xlane.f32.xlu0 %v2166
    %v2168 = vpop.xlane.xlu0 %2167
    %v2169 = vsel %vm2141, %v2028, -inf
    %2170 = vmax.xlane.f32.xlu0 %v2169
    %v2171 = vpop.xlane.xlu0 %2170
    %v2172 = vsel %vm2141, %v2033, -inf
    %2173 = vmax.xlane.f32.xlu0 %v2172
    %v2174 = vpop.xlane.xlu0 %2173
    %v2175 = vsel %vm2141, %v2038, -inf
    %2176 = vmax.xlane.f32.xlu0 %v2175
    %v2177 = vpop.xlane.xlu0 %2176
    %v2178 = vsel %vm2141, %v2043, -inf
    %2179 = vmax.xlane.f32.xlu0 %v2178
    %v2180 = vpop.xlane.xlu0 %2179
    %v2181 = vsel %vm2141, %v2048, -inf
    %2182 = vmax.xlane.f32.xlu0 %v2181
    %v2183 = vpop.xlane.xlu0 %2182
    %v2184 = vsel %vm2141, %v2053, -inf
    %2185 = vmax.xlane.f32.xlu0 %v2184
    %v2186 = vpop.xlane.xlu0 %2185
    %v2187 = vsel %vm2141, %v2058, -inf
    %2188 = vmax.xlane.f32.xlu0 %v2187
    %v2189 = vpop.xlane.xlu0 %2188
    %v2190 = vsel %vm2141, %v2063, -inf
    %2191 = vmax.xlane.f32.xlu0 %v2190
    %v2192 = vpop.xlane.xlu0 %2191
    %v2193 = vsel %vm2141, %v2068, -inf
    %2194 = vmax.xlane.f32.xlu0 %v2193
    %v2195 = vpop.xlane.xlu0 %2194
    %v2196 = vsel %vm2141, %v2073, -inf
    %2197 = vmax.xlane.f32.xlu0 %v2196
    %v2198 = vpop.xlane.xlu0 %2197
    %v2199 = vsel %vm2141, %v2078, -inf
    %2200 = vmax.xlane.f32.xlu0 %v2199
    %v2201 = vpop.xlane.xlu0 %2200
    %v2202 = vsel %vm2141, %v2083, -inf
    %2203 = vmax.xlane.f32.xlu0 %v2202
    %v2204 = vpop.xlane.xlu0 %2203
    %v2205 = vsel %vm2141, %v2088, -inf
    %2206 = vmax.xlane.f32.xlu0 %v2205
    %v2207 = vpop.xlane.xlu0 %2206
    %v2208 = vsel %vm2141, %v2093, -inf
    %2209 = vmax.xlane.f32.xlu0 %v2208
    %v2210 = vpop.xlane.xlu0 %2209
    %v2211 = vsel %vm2141, %v2098, -inf
    %2212 = vmax.xlane.f32.xlu0 %v2211
    %v2213 = vpop.xlane.xlu0 %2212
    %v2214 = vsel %vm2141, %v2103, -inf
    %2215 = vmax.xlane.f32.xlu0 %v2214
    %v2216 = vpop.xlane.xlu0 %2215
    %v2217 = vsel %vm2141, %v2108, -inf
    %2218 = vmax.xlane.f32.xlu0 %v2217
    %v2219 = vpop.xlane.xlu0 %2218
    %v2220 = vsel %vm2141, %v2113, -inf
    %2221 = vmax.xlane.f32.xlu0 %v2220
    %v2222 = vpop.xlane.xlu0 %2221
    %v2223 = vsel %vm2141, %v2118, -inf
    %2224 = vmax.xlane.f32.xlu0 %v2223
    %v2225 = vpop.xlane.xlu0 %2224
    %v2226 = vsel %vm2141, %v2123, -inf
    %2227 = vmax.xlane.f32.xlu0 %v2226
    %v2228 = vpop.xlane.xlu0 %2227
    %v2229 = vsel %vm2141, %v2128, -inf
    %2230 = vmax.xlane.f32.xlu0 %v2229
    %v2231 = vpop.xlane.xlu0 %2230
    %v2232 = vsel %vm2141, %v2133, -inf
    %2233 = vmax.xlane.f32.xlu0 %v2232
    %v2234 = vpop.xlane.xlu0 %2233
    %v2235 = vsel %vm2141, %v2138, -inf
    %2236 = vmax.xlane.f32.xlu0 %v2235
    %v2237 = vpop.xlane.xlu0 %2236
    %v2238 = vmax.f32 %v2144, %v2156
    %v2239 = vmax.f32 %v2147, %v2159
    %v2240 = vmax.f32 %v2150, %v2162
    %v2241 = vmax.f32 %v2153, %v2165
    %v2242 = vmax.f32 %v2238, %v2168
    %v2243 = vmax.f32 %v2239, %v2171
    %v2244 = vmax.f32 %v2240, %v2174
    %v2245 = vmax.f32 %v2241, %v2177
    %v2246 = vmax.f32 %v2242, %v2180
    %v2247 = vmax.f32 %v2243, %v2183
    %v2248 = vmax.f32 %v2244, %v2186
    %v2249 = vmax.f32 %v2245, %v2189
    %v2250 = vmax.f32 %v2246, %v2192
    %v2251 = vmax.f32 %v2247, %v2195
    %v2252 = vmax.f32 %v2248, %v2198
    %v2253 = vmax.f32 %v2249, %v2201
    %v2254 = vmax.f32 %v2250, %v2204
    %v2255 = vmax.f32 %v2251, %v2207
    %v2256 = vmax.f32 %v2252, %v2210
    %v2257 = vmax.f32 %v2253, %v2213
    %v2258 = vmax.f32 %v2254, %v2216
    %v2259 = vmax.f32 %v2255, %v2219
    %v2260 = vmax.f32 %v2256, %v2222
    %v2261 = vmax.f32 %v2257, %v2225
    %v2262 = vmax.f32 %v2258, %v2228
    %v2263 = vmax.f32 %v2259, %v2231
    %v2264 = vmax.f32 %v2260, %v2234
    %v2265 = vmax.f32 %v2261, %v2237
    %v2266 = vmax.f32 %v2262, %v2263
    %v2267 = vmax.f32 %v2264, %v2265
    %v2268 = vmax.f32 %v2266, %v2267
    %v2269 = vrot.slane %v2268, 4
    %v2270 = vmax.f32 %v2268, %v2269
    %v2271 = vrot.slane %v2270, 2
    %v2272 = vmax.f32 %v2270, %v2271
    %v2273 = vrot.slane %v2272, 1
    %v2274 = vmax.f32 %v2272, %v2273
    %v2275 = vsub.f32 %v1983, %v2274
    %v2276 = vsub.f32 %v1988, %v2274
    %v2277 = vsub.f32 %v1993, %v2274
    %v2278 = vsub.f32 %v1998, %v2274
    %v2279 = vsub.f32 %v2003, %v2274
    %v2280 = vsub.f32 %v2008, %v2274
    %v2281 = vsub.f32 %v2013, %v2274
    %v2282 = vsub.f32 %v2018, %v2274
    %v2283 = vsub.f32 %v2023, %v2274
    %v2284 = vsub.f32 %v2028, %v2274
    %v2285 = vsub.f32 %v2033, %v2274
    %v2286 = vsub.f32 %v2038, %v2274
    %v2287 = vsub.f32 %v2043, %v2274
    %v2288 = vsub.f32 %v2048, %v2274
    %v2289 = vsub.f32 %v2053, %v2274
    %v2290 = vsub.f32 %v2058, %v2274
    %v2291 = vsub.f32 %v2063, %v2274
    %v2292 = vsub.f32 %v2068, %v2274
    %v2293 = vsub.f32 %v2073, %v2274
    %v2294 = vsub.f32 %v2078, %v2274
    %v2295 = vsub.f32 %v2083, %v2274
    %v2296 = vsub.f32 %v2088, %v2274
    %v2297 = vsub.f32 %v2093, %v2274
    %v2298 = vsub.f32 %v2098, %v2274
    %v2299 = vsub.f32 %v2103, %v2274
    %v2300 = vsub.f32 %v2108, %v2274
    %v2301 = vsub.f32 %v2113, %v2274
    %v2302 = vsub.f32 %v2118, %v2274
    %v2303 = vsub.f32 %v2123, %v2274
    %v2304 = vsub.f32 %v2128, %v2274
    %v2305 = vsub.f32 %v2133, %v2274
    %v2306 = vsub.f32 %v2138, %v2274
    %v2307 = vmul.f32 %v2275, 1.442695
    %v2308 = vpow.pop %v2307
    %v2309 = vmul.f32 %v2276, 1.442695
    %v2310 = vpow.pop %v2309
    %v2311 = vmul.f32 %v2277, 1.442695
    %v2312 = vpow.pop %v2311
    %v2313 = vmul.f32 %v2278, 1.442695
    %v2314 = vpow.pop %v2313
    %v2315 = vmul.f32 %v2279, 1.442695
    %v2316 = vpow.pop %v2315
    %v2317 = vmul.f32 %v2280, 1.442695
    %v2318 = vpow.pop %v2317
    %v2319 = vmul.f32 %v2281, 1.442695
    %v2320 = vpow.pop %v2319
    %v2321 = vmul.f32 %v2282, 1.442695
    %v2322 = vpow.pop %v2321
    %v2323 = vmul.f32 %v2283, 1.442695
    %v2324 = vpow.pop %v2323
    %v2325 = vmul.f32 %v2284, 1.442695
    %v2326 = vpow.pop %v2325
    %v2327 = vmul.f32 %v2285, 1.442695
    %v2328 = vpow.pop %v2327
    %v2329 = vmul.f32 %v2286, 1.442695
    %v2330 = vpow.pop %v2329
    %v2331 = vmul.f32 %v2287, 1.442695
    %v2332 = vpow.pop %v2331
    %v2333 = vmul.f32 %v2288, 1.442695
    %v2334 = vpow.pop %v2333
    %v2335 = vmul.f32 %v2289, 1.442695
    %v2336 = vpow.pop %v2335
    %v2337 = vmul.f32 %v2290, 1.442695
    %v2338 = vpow.pop %v2337
    %v2339 = vmul.f32 %v2291, 1.442695
    %v2340 = vpow.pop %v2339
    %v2341 = vmul.f32 %v2292, 1.442695
    %v2342 = vpow.pop %v2341
    %v2343 = vmul.f32 %v2293, 1.442695
    %v2344 = vpow.pop %v2343
    %v2345 = vmul.f32 %v2294, 1.442695
    %v2346 = vpow.pop %v2345
    %v2347 = vmul.f32 %v2295, 1.442695
    %v2348 = vpow.pop %v2347
    %v2349 = vmul.f32 %v2296, 1.442695
    %v2350 = vpow.pop %v2349
    %v2351 = vmul.f32 %v2297, 1.442695
    %v2352 = vpow.pop %v2351
    %v2353 = vmul.f32 %v2298, 1.442695
    %v2354 = vpow.pop %v2353
    %v2355 = vmul.f32 %v2299, 1.442695
    %v2356 = vpow.pop %v2355
    %v2357 = vmul.f32 %v2300, 1.442695
    %v2358 = vpow.pop %v2357
    %v2359 = vmul.f32 %v2301, 1.442695
    %v2360 = vpow.pop %v2359
    %v2361 = vmul.f32 %v2302, 1.442695
    %v2362 = vpow.pop %v2361
    %v2363 = vmul.f32 %v2303, 1.442695
    %v2364 = vpow.pop %v2363
    %v2365 = vmul.f32 %v2304, 1.442695
    %v2366 = vpow.pop %v2365
    %v2367 = vmul.f32 %v2305, 1.442695
    %v2368 = vpow.pop %v2367
    %v2369 = vmul.f32 %v2306, 1.442695
    %v2370 = vpow.pop %v2369
    %2371 = vmatprep.subr.mxu0 0.0
    %2372 = vmatpush1.msra.mxu0 %v2338
    %2373 = vmatprep.subr.mxu0 0.0
    %2374 = vmatpush1.msra.mxu0 %v2336
    %2375 = vmatprep.subr.mxu0 0.0
    %2376 = vmatpush1.msra.mxu0 %v2334
    %2377 = vmatprep.subr.mxu0 0.0
    %2378 = vmatpush1.msra.mxu0 %v2332
    %2379 = vmatprep.subr.mxu0 0.0
    %2380 = vmatpush1.msra.mxu0 %v2330
    %2381 = vmatprep.subr.mxu0 0.0
    %2382 = vmatpush1.msra.mxu0 %v2328
    %2383 = vmatprep.subr.mxu0 0.0
    %2384 = vmatpush1.msra.mxu0 %v2326
    %2385 = vmatprep.subr.mxu0 0.0
    %2386 = vmatpush1.msra.mxu0 %v2324
    %2387 = vmatprep.subr.mxu0 0.0
    %2388 = vmatpush1.msra.mxu0 %v2322
    %2389 = vmatprep.subr.mxu0 0.0
    %2390 = vmatpush1.msra.mxu0 %v2320
    %2391 = vmatprep.subr.mxu0 0.0
    %2392 = vmatpush1.msra.mxu0 %v2318
    %2393 = vmatprep.subr.mxu0 0.0
    %2394 = vmatpush1.msra.mxu0 %v2316
    %2395 = vmatprep.subr.mxu0 0.0
    %2396 = vmatpush1.msra.mxu0 %v2314
    %2397 = vmatprep.subr.mxu0 0.0
    %2398 = vmatpush1.msra.mxu0 %v2312
    %2399 = vmatprep.subr.mxu0 0.0
    %2400 = vmatpush1.msra.mxu0 %v2310
    %2401 = vmatprep.subr.mxu0 0.0
    %2402 = vmatpush1.msra.mxu0 %v2308
    %2403 = vmatprep.subr.mxu0 0.0
    %2404 = vmatpush2.msra.mxu0 %v2370
    %2405 = vmatprep.subr.mxu0 0.0
    %2406 = vmatpush2.msra.mxu0 %v2368
    %2407 = vmatprep.subr.mxu0 0.0
    %2408 = vmatpush2.msra.mxu0 %v2366
    %2409 = vmatprep.subr.mxu0 0.0
    %2410 = vmatpush2.msra.mxu0 %v2364
    %2411 = vmatprep.subr.mxu0 0.0
    %2412 = vmatpush2.msra.mxu0 %v2362
    %2413 = vmatprep.subr.mxu0 0.0
    %2414 = vmatpush2.msra.mxu0 %v2360
    %2415 = vmatprep.subr.mxu0 0.0
    %2416 = vmatpush2.msra.mxu0 %v2358
    %2417 = vmatprep.subr.mxu0 0.0
    %2418 = vmatpush2.msra.mxu0 %v2356
    %2419 = vmatprep.subr.mxu0 0.0
    %2420 = vmatpush2.msra.mxu0 %v2354
    %2421 = vmatprep.subr.mxu0 0.0
    %2422 = vmatpush2.msra.mxu0 %v2352
    %2423 = vmatprep.subr.mxu0 0.0
    %2424 = vmatpush2.msra.mxu0 %v2350
    %2425 = vmatprep.subr.mxu0 0.0
    %2426 = vmatpush2.msra.mxu0 %v2348
    %2427 = vmatprep.subr.mxu0 0.0
    %2428 = vmatpush2.msra.mxu0 %v2346
    %2429 = vmatprep.subr.mxu0 0.0
    %2430 = vmatpush2.msra.mxu0 %v2344
    %2431 = vmatprep.subr.mxu0 0.0
    %2432 = vmatpush2.msra.mxu0 %v2342
    %2433 = vmatprep.subr.mxu0 0.0
    %2434 = vmatpush2.msra.mxu0 %v2340
    %2435 = vmatprep.mubr.f32.mxu0 %v72
    %2436 = vmatmul.mubr.f32.gmra.mxu0 %v71
    %v2437 = vpop.f32.mrf.mxu0
    %v2438 = vadd.f32 0.0, %v2437
    %v2439 = vpop.f32.mrf.mxu0
    %2440 = vmatprep.mubr.f32.mxu0 %v74
    %2441 = vmatmul.mubr.f32.gmra.mxu0 %v73
    %v2442 = vpop.f32.mrf.mxu0
    %v2443 = vadd.f32 0.0, %v2442
    %v2444 = vpop.f32.mrf.mxu0
    %2445 = vdwg.mxu0
    %v2447 = vsel %vm2141, %v2308, 0
    %v2450 = vsel %vm2141, %v2310, 0
    %v2453 = vsel %vm2141, %v2312, 0
    %v2456 = vsel %vm2141, %v2314, 0
    %v2459 = vsel %vm2141, %v2316, 0
    %v2462 = vsel %vm2141, %v2318, 0
    %v2465 = vsel %vm2141, %v2320, 0
    %v2468 = vsel %vm2141, %v2322, 0
    %v2471 = vsel %vm2141, %v2324, 0
    %v2474 = vsel %vm2141, %v2326, 0
    %v2477 = vsel %vm2141, %v2328, 0
    %v2480 = vsel %vm2141, %v2330, 0
    %v2483 = vsel %vm2141, %v2332, 0
    %v2486 = vsel %vm2141, %v2334, 0
    %v2489 = vsel %vm2141, %v2336, 0
    %v2492 = vsel %vm2141, %v2338, 0
    %v2495 = vsel %vm2141, %v2340, 0
    %v2498 = vsel %vm2141, %v2342, 0
    %v2501 = vsel %vm2141, %v2344, 0
    %v2504 = vsel %vm2141, %v2346, 0
    %v2507 = vsel %vm2141, %v2348, 0
    %v2510 = vsel %vm2141, %v2350, 0
    %v2513 = vsel %vm2141, %v2352, 0
    %v2516 = vsel %vm2141, %v2354, 0
    %v2519 = vsel %vm2141, %v2356, 0
    %v2522 = vsel %vm2141, %v2358, 0
    %v2525 = vsel %vm2141, %v2360, 0
    %v2528 = vsel %vm2141, %v2362, 0
    %v2531 = vsel %vm2141, %v2364, 0
    %v2534 = vsel %vm2141, %v2366, 0
    %v2537 = vsel %vm2141, %v2368, 0
    %v2540 = vsel %vm2141, %v2370, 0
    %2542 = vmatprep.subr.mxu0 0.0
    %2543 = vmatpush1.msra.mxu0 0.0
    %2544 = vmatprep.subr.mxu0 0.0
    %2545 = vmatpush1.msra.mxu0 0.0
    %2546 = vmatprep.subr.mxu0 0.0
    %2547 = vmatpush1.msra.mxu0 0.0
    %2548 = vmatprep.subr.mxu0 0.0
    %2549 = vmatpush1.msra.mxu0 0.0
    %2550 = vmatprep.subr.mxu0 0.0
    %2551 = vmatpush1.msra.mxu0 0.0
    %2552 = vmatprep.subr.mxu0 0.0
    %2553 = vmatpush1.msra.mxu0 0.0
    %2554 = vmatprep.subr.mxu0 0.0
    %2555 = vmatpush1.msra.mxu0 0.0
    %2556 = vmatprep.subr.mxu0 0.0
    %2557 = vmatpush1.msra.mxu0 0.0
    %2558 = vmatprep.subr.mxu0 0.0
    %2559 = vmatpush1.msra.mxu0 0.0
    %2560 = vmatprep.subr.mxu0 0.0
    %2561 = vmatpush1.msra.mxu0 0.0
    %2562 = vmatprep.subr.mxu0 0.0
    %2563 = vmatpush1.msra.mxu0 0.0
    %2564 = vmatprep.subr.mxu0 0.0
    %2565 = vmatpush1.msra.mxu0 0.0
    %2566 = vmatprep.subr.mxu0 0.0
    %2567 = vmatpush1.msra.mxu0 0.0
    %2568 = vmatprep.subr.mxu0 0.0
    %2569 = vmatpush1.msra.mxu0 0.0
    %2570 = vmatprep.subr.mxu0 0.0
    %2571 = vmatpush1.msra.mxu0 0.0
    %2572 = vmatprep.subr.mxu0 %v76
    %2573 = vmatpush1.msra.mxu0 %v75
    %2574 = vmatprep.subr.mxu0 0.0
    %2575 = vmatpush2.msra.mxu0 0.0
    %2576 = vmatprep.subr.mxu0 0.0
    %2577 = vmatpush2.msra.mxu0 0.0
    %2578 = vmatprep.subr.mxu0 0.0
    %2579 = vmatpush2.msra.mxu0 0.0
    %2580 = vmatprep.subr.mxu0 0.0
    %2581 = vmatpush2.msra.mxu0 0.0
    %2582 = vmatprep.subr.mxu0 0.0
    %2583 = vmatpush2.msra.mxu0 0.0
    %2584 = vmatprep.subr.mxu0 0.0
    %2585 = vmatpush2.msra.mxu0 0.0
    %2586 = vmatprep.subr.mxu0 0.0
    %2587 = vmatpush2.msra.mxu0 0.0
    %2588 = vmatprep.subr.mxu0 0.0
    %2589 = vmatpush2.msra.mxu0 0.0
    %2590 = vmatprep.subr.mxu0 0.0
    %2591 = vmatpush2.msra.mxu0 0.0
    %2592 = vmatprep.subr.mxu0 0.0
    %2593 = vmatpush2.msra.mxu0 0.0
    %2594 = vmatprep.subr.mxu0 0.0
    %2595 = vmatpush2.msra.mxu0 0.0
    %2596 = vmatprep.subr.mxu0 0.0
    %2597 = vmatpush2.msra.mxu0 0.0
    %2598 = vmatprep.subr.mxu0 0.0
    %2599 = vmatpush2.msra.mxu0 0.0
    %2600 = vmatprep.subr.mxu0 0.0
    %2601 = vmatpush2.msra.mxu0 0.0
    %2602 = vmatprep.subr.mxu0 0.0
    %2603 = vmatpush2.msra.mxu0 0.0
    %2604 = vmatprep.subr.mxu0 0.0
    %2605 = vmatpush2.msra.mxu0 0.0
    %2606 = vmatprep.mubr.f32.mxu0 0.0
    %2607 = vmatmul.mubr.f32.gmra.mxu0 %v2447
    %v2608 = vpop.f32.mrf.mxu0
    %v2609 = vadd.f32 0.0, %v2608
    %v2610 = vpop.f32.mrf.mxu0
    %v2611 = vadd.f32 0.0, %v2610
    %2612 = vmatprep.mubr.f32.mxu0 0.0
    %2613 = vmatmul.mubr.f32.gmra.mxu0 %v2450
    %v2614 = vpop.f32.mrf.mxu0
    %v2615 = vadd.f32 0.0, %v2614
    %v2616 = vpop.f32.mrf.mxu0
    %v2617 = vadd.f32 0.0, %v2616
    %2618 = vmatprep.mubr.f32.mxu0 0.0
    %2619 = vmatmul.mubr.f32.gmra.mxu0 %v2453
    %v2620 = vpop.f32.mrf.mxu0
    %v2621 = vadd.f32 0.0, %v2620
    %v2622 = vpop.f32.mrf.mxu0
    %v2623 = vadd.f32 0.0, %v2622
    %2624 = vmatprep.mubr.f32.mxu0 0.0
    %2625 = vmatmul.mubr.f32.gmra.mxu0 %v2456
    %v2626 = vpop.f32.mrf.mxu0
    %v2627 = vadd.f32 0.0, %v2626
    %v2628 = vpop.f32.mrf.mxu0
    %v2629 = vadd.f32 0.0, %v2628
    %2630 = vmatprep.mubr.f32.mxu0 0.0
    %2631 = vmatmul.mubr.f32.gmra.mxu0 %v2459
    %v2632 = vpop.f32.mrf.mxu0
    %v2633 = vadd.f32 0.0, %v2632
    %v2634 = vpop.f32.mrf.mxu0
    %v2635 = vadd.f32 0.0, %v2634
    %2636 = vmatprep.mubr.f32.mxu0 0.0
    %2637 = vmatmul.mubr.f32.gmra.mxu0 %v2462
    %v2638 = vpop.f32.mrf.mxu0
    %v2639 = vadd.f32 0.0, %v2638
    %v2640 = vpop.f32.mrf.mxu0
    %v2641 = vadd.f32 0.0, %v2640
    %2642 = vmatprep.mubr.f32.mxu0 0.0
    %2643 = vmatmul.mubr.f32.gmra.mxu0 %v2465
    %v2644 = vpop.f32.mrf.mxu0
    %v2645 = vadd.f32 0.0, %v2644
    %v2646 = vpop.f32.mrf.mxu0
    %v2647 = vadd.f32 0.0, %v2646
    %2648 = vmatprep.mubr.f32.mxu0 0.0
    %2649 = vmatmul.mubr.f32.gmra.mxu0 %v2468
    %v2650 = vpop.f32.mrf.mxu0
    %v2651 = vadd.f32 0.0, %v2650
    %v2652 = vpop.f32.mrf.mxu0
    %v2653 = vadd.f32 0.0, %v2652
    %2654 = vmatprep.mubr.f32.mxu0 0.0
    %2655 = vmatmul.mubr.f32.gmra.mxu0 %v2471
    %v2656 = vpop.f32.mrf.mxu0
    %v2657 = vadd.f32 0.0, %v2656
    %v2658 = vpop.f32.mrf.mxu0
    %v2659 = vadd.f32 0.0, %v2658
    %2660 = vmatprep.mubr.f32.mxu0 0.0
    %2661 = vmatmul.mubr.f32.gmra.mxu0 %v2474
    %v2662 = vpop.f32.mrf.mxu0
    %v2663 = vadd.f32 0.0, %v2662
    %v2664 = vpop.f32.mrf.mxu0
    %v2665 = vadd.f32 0.0, %v2664
    %2666 = vmatprep.mubr.f32.mxu0 0.0
    %2667 = vmatmul.mubr.f32.gmra.mxu0 %v2477
    %v2668 = vpop.f32.mrf.mxu0
    %v2669 = vadd.f32 0.0, %v2668
    %v2670 = vpop.f32.mrf.mxu0
    %v2671 = vadd.f32 0.0, %v2670
    %2672 = vmatprep.mubr.f32.mxu0 0.0
    %2673 = vmatmul.mubr.f32.gmra.mxu0 %v2480
    %v2674 = vpop.f32.mrf.mxu0
    %v2675 = vadd.f32 0.0, %v2674
    %v2676 = vpop.f32.mrf.mxu0
    %v2677 = vadd.f32 0.0, %v2676
    %2678 = vmatprep.mubr.f32.mxu0 0.0
    %2679 = vmatmul.mubr.f32.gmra.mxu0 %v2483
    %v2680 = vpop.f32.mrf.mxu0
    %v2681 = vadd.f32 0.0, %v2680
    %v2682 = vpop.f32.mrf.mxu0
    %v2683 = vadd.f32 0.0, %v2682
    %2684 = vmatprep.mubr.f32.mxu0 0.0
    %2685 = vmatmul.mubr.f32.gmra.mxu0 %v2486
    %v2686 = vpop.f32.mrf.mxu0
    %v2687 = vadd.f32 0.0, %v2686
    %v2688 = vpop.f32.mrf.mxu0
    %v2689 = vadd.f32 0.0, %v2688
    %2690 = vmatprep.mubr.f32.mxu0 0.0
    %2691 = vmatmul.mubr.f32.gmra.mxu0 %v2489
    %v2692 = vpop.f32.mrf.mxu0
    %v2693 = vadd.f32 0.0, %v2692
    %v2694 = vpop.f32.mrf.mxu0
    %v2695 = vadd.f32 0.0, %v2694
    %2696 = vmatprep.mubr.f32.mxu0 0.0
    %2697 = vmatmul.mubr.f32.gmra.mxu0 %v2492
    %v2698 = vpop.f32.mrf.mxu0
    %v2699 = vadd.f32 0.0, %v2698
    %v2700 = vpop.f32.mrf.mxu0
    %v2701 = vadd.f32 0.0, %v2700
    %2702 = vmatprep.mubr.f32.mxu0 0.0
    %2703 = vmatmul.mubr.f32.gmra.mxu0 %v2495
    %v2704 = vpop.f32.mrf.mxu0
    %v2705 = vadd.f32 0.0, %v2704
    %v2706 = vpop.f32.mrf.mxu0
    %v2707 = vadd.f32 0.0, %v2706
    %2708 = vmatprep.mubr.f32.mxu0 0.0
    %2709 = vmatmul.mubr.f32.gmra.mxu0 %v2498
    %v2710 = vpop.f32.mrf.mxu0
    %v2711 = vadd.f32 0.0, %v2710
    %v2712 = vpop.f32.mrf.mxu0
    %v2713 = vadd.f32 0.0, %v2712
    %2714 = vmatprep.mubr.f32.mxu0 0.0
    %2715 = vmatmul.mubr.f32.gmra.mxu0 %v2501
    %v2716 = vpop.f32.mrf.mxu0
    %v2717 = vadd.f32 0.0, %v2716
    %v2718 = vpop.f32.mrf.mxu0
    %v2719 = vadd.f32 0.0, %v2718
    %2720 = vmatprep.mubr.f32.mxu0 0.0
    %2721 = vmatmul.mubr.f32.gmra.mxu0 %v2504
    %v2722 = vpop.f32.mrf.mxu0
    %v2723 = vadd.f32 0.0, %v2722
    %v2724 = vpop.f32.mrf.mxu0
    %v2725 = vadd.f32 0.0, %v2724
    %2726 = vmatprep.mubr.f32.mxu0 0.0
    %2727 = vmatmul.mubr.f32.gmra.mxu0 %v2507
    %v2728 = vpop.f32.mrf.mxu0
    %v2729 = vadd.f32 0.0, %v2728
    %v2730 = vpop.f32.mrf.mxu0
    %v2731 = vadd.f32 0.0, %v2730
    %2732 = vmatprep.mubr.f32.mxu0 0.0
    %2733 = vmatmul.mubr.f32.gmra.mxu0 %v2510
    %v2734 = vpop.f32.mrf.mxu0
    %v2735 = vadd.f32 0.0, %v2734
    %v2736 = vpop.f32.mrf.mxu0
    %v2737 = vadd.f32 0.0, %v2736
    %2738 = vmatprep.mubr.f32.mxu0 0.0
    %2739 = vmatmul.mubr.f32.gmra.mxu0 %v2513
    %v2740 = vpop.f32.mrf.mxu0
    %v2741 = vadd.f32 0.0, %v2740
    %v2742 = vpop.f32.mrf.mxu0
    %v2743 = vadd.f32 0.0, %v2742
    %2744 = vmatprep.mubr.f32.mxu0 0.0
    %2745 = vmatmul.mubr.f32.gmra.mxu0 %v2516
    %v2746 = vpop.f32.mrf.mxu0
    %v2747 = vadd.f32 0.0, %v2746
    %v2748 = vpop.f32.mrf.mxu0
    %v2749 = vadd.f32 0.0, %v2748
    %2750 = vmatprep.mubr.f32.mxu0 0.0
    %2751 = vmatmul.mubr.f32.gmra.mxu0 %v2519
    %v2752 = vpop.f32.mrf.mxu0
    %v2753 = vadd.f32 0.0, %v2752
    %v2754 = vpop.f32.mrf.mxu0
    %v2755 = vadd.f32 0.0, %v2754
    %2756 = vmatprep.mubr.f32.mxu0 0.0
    %2757 = vmatmul.mubr.f32.gmra.mxu0 %v2522
    %v2758 = vpop.f32.mrf.mxu0
    %v2759 = vadd.f32 0.0, %v2758
    %v2760 = vpop.f32.mrf.mxu0
    %v2761 = vadd.f32 0.0, %v2760
    %2762 = vmatprep.mubr.f32.mxu0 0.0
    %2763 = vmatmul.mubr.f32.gmra.mxu0 %v2525
    %v2764 = vpop.f32.mrf.mxu0
    %v2765 = vadd.f32 0.0, %v2764
    %v2766 = vpop.f32.mrf.mxu0
    %v2767 = vadd.f32 0.0, %v2766
    %2768 = vmatprep.mubr.f32.mxu0 0.0
    %2769 = vmatmul.mubr.f32.gmra.mxu0 %v2528
    %v2770 = vpop.f32.mrf.mxu0
    %v2771 = vadd.f32 0.0, %v2770
    %v2772 = vpop.f32.mrf.mxu0
    %v2773 = vadd.f32 0.0, %v2772
    %2774 = vmatprep.mubr.f32.mxu0 0.0
    %2775 = vmatmul.mubr.f32.gmra.mxu0 %v2531
    %v2776 = vpop.f32.mrf.mxu0
    %v2777 = vadd.f32 0.0, %v2776
    %v2778 = vpop.f32.mrf.mxu0
    %v2779 = vadd.f32 0.0, %v2778
    %2780 = vmatprep.mubr.f32.mxu0 0.0
    %2781 = vmatmul.mubr.f32.gmra.mxu0 %v2534
    %v2782 = vpop.f32.mrf.mxu0
    %v2783 = vadd.f32 0.0, %v2782
    %v2784 = vpop.f32.mrf.mxu0
    %v2785 = vadd.f32 0.0, %v2784
    %2786 = vmatprep.mubr.f32.mxu0 0.0
    %2787 = vmatmul.mubr.f32.gmra.mxu0 %v2537
    %v2788 = vpop.f32.mrf.mxu0
    %v2789 = vadd.f32 0.0, %v2788
    %v2790 = vpop.f32.mrf.mxu0
    %v2791 = vadd.f32 0.0, %v2790
    %2792 = vmatprep.mubr.f32.mxu0 0.0
    %2793 = vmatmul.mubr.f32.gmra.mxu0 %v2540
    %v2794 = vpop.f32.mrf.mxu0
    %v2795 = vadd.f32 0.0, %v2794
    %v2796 = vpop.f32.mrf.mxu0
    %v2797 = vadd.f32 0.0, %v2796
    %2798 = vdwg.mxu0
    %v2799 = vmul.f32 %v2609, %v893
    %v2800 = vmul.f32 %v2611, %v895
    %v2801 = vmul.f32 %v2615, %v899
    %v2802 = vmul.f32 %v2617, %v901
    %v2803 = vmul.f32 %v2621, %v905
    %v2804 = vmul.f32 %v2623, %v907
    %v2805 = vmul.f32 %v2627, %v911
    %v2806 = vmul.f32 %v2629, %v913
    %v2807 = vmul.f32 %v2633, %v917
    %v2808 = vmul.f32 %v2635, %v919
    %v2809 = vmul.f32 %v2639, %v923
    %v2810 = vmul.f32 %v2641, %v925
    %v2811 = vmul.f32 %v2645, %v929
    %v2812 = vmul.f32 %v2647, %v931
    %v2813 = vmul.f32 %v2651, %v935
    %v2814 = vmul.f32 %v2653, %v937
    %v2815 = vmul.f32 %v2657, %v941
    %v2816 = vmul.f32 %v2659, %v943
    %v2817 = vmul.f32 %v2663, %v947
    %v2818 = vmul.f32 %v2665, %v949
    %v2819 = vmul.f32 %v2669, %v953
    %v2820 = vmul.f32 %v2671, %v955
    %v2821 = vmul.f32 %v2675, %v959
    %v2822 = vmul.f32 %v2677, %v961
    %v2823 = vmul.f32 %v2681, %v965
    %v2824 = vmul.f32 %v2683, %v967
    %v2825 = vmul.f32 %v2687, %v971
    %v2826 = vmul.f32 %v2689, %v973
    %v2827 = vmul.f32 %v2693, %v977
    %v2828 = vmul.f32 %v2695, %v979
    %v2829 = vmul.f32 %v2699, %v983
    %v2830 = vmul.f32 %v2701, %v985
    %v2831 = vmul.f32 %v2705, %v989
    %v2832 = vmul.f32 %v2707, %v991
    %v2833 = vmul.f32 %v2711, %v995
    %v2834 = vmul.f32 %v2713, %v997
    %v2835 = vmul.f32 %v2717, %v1001
    %v2836 = vmul.f32 %v2719, %v1003
    %v2837 = vmul.f32 %v2723, %v1007
    %v2838 = vmul.f32 %v2725, %v1009
    %v2839 = vmul.f32 %v2729, %v1013
    %v2840 = vmul.f32 %v2731, %v1015
    %v2841 = vmul.f32 %v2735, %v1019
    %v2842 = vmul.f32 %v2737, %v1021
    %v2843 = vmul.f32 %v2741, %v1025
    %v2844 = vmul.f32 %v2743, %v1027
    %v2845 = vmul.f32 %v2747, %v1031
    %v2846 = vmul.f32 %v2749, %v1033
    %v2847 = vmul.f32 %v2753, %v1037
    %v2848 = vmul.f32 %v2755, %v1039
    %v2849 = vmul.f32 %v2759, %v1043
    %v2850 = vmul.f32 %v2761, %v1045
    %v2851 = vmul.f32 %v2765, %v1049
    %v2852 = vmul.f32 %v2767, %v1051
    %v2853 = vmul.f32 %v2771, %v1055
    %v2854 = vmul.f32 %v2773, %v1057
    %v2855 = vmul.f32 %v2777, %v1061
    %v2856 = vmul.f32 %v2779, %v1063
    %v2857 = vmul.f32 %v2783, %v1067
    %v2858 = vmul.f32 %v2785, %v1069
    %v2859 = vmul.f32 %v2789, %v1073
    %v2860 = vmul.f32 %v2791, %v1075
    %v2861 = vmul.f32 %v2795, %v1079
    %v2862 = vmul.f32 %v2797, %v1081
    %2863 = vmatprep.subr.mxu0 %v2830
    %2864 = vmatpush1.msra.mxu0 %v2829
    %2865 = vmatprep.subr.mxu0 %v2828
    %2866 = vmatpush1.msra.mxu0 %v2827
    %2867 = vmatprep.subr.mxu0 %v2826
    %2868 = vmatpush1.msra.mxu0 %v2825
    %2869 = vmatprep.subr.mxu0 %v2824
    %2870 = vmatpush1.msra.mxu0 %v2823
    %2871 = vmatprep.subr.mxu0 %v2822
    %2872 = vmatpush1.msra.mxu0 %v2821
    %2873 = vmatprep.subr.mxu0 %v2820
    %2874 = vmatpush1.msra.mxu0 %v2819
    %2875 = vmatprep.subr.mxu0 %v2818
    %2876 = vmatpush1.msra.mxu0 %v2817
    %2877 = vmatprep.subr.mxu0 %v2816
    %2878 = vmatpush1.msra.mxu0 %v2815
    %2879 = vmatprep.subr.mxu0 %v2814
    %2880 = vmatpush1.msra.mxu0 %v2813
    %2881 = vmatprep.subr.mxu0 %v2812
    %2882 = vmatpush1.msra.mxu0 %v2811
    %2883 = vmatprep.subr.mxu0 %v2810
    %2884 = vmatpush1.msra.mxu0 %v2809
    %2885 = vmatprep.subr.mxu0 %v2808
    %2886 = vmatpush1.msra.mxu0 %v2807
    %2887 = vmatprep.subr.mxu0 %v2806
    %2888 = vmatpush1.msra.mxu0 %v2805
    %2889 = vmatprep.subr.mxu0 %v2804
    %2890 = vmatpush1.msra.mxu0 %v2803
    %2891 = vmatprep.subr.mxu0 %v2802
    %2892 = vmatpush1.msra.mxu0 %v2801
    %2893 = vmatprep.subr.mxu0 %v2800
    %2894 = vmatpush1.msra.mxu0 %v2799
    %2895 = vmatprep.subr.mxu0 %v2862
    %2896 = vmatpush2.msra.mxu0 %v2861
    %2897 = vmatprep.subr.mxu0 %v2860
    %2898 = vmatpush2.msra.mxu0 %v2859
    %2899 = vmatprep.subr.mxu0 %v2858
    %2900 = vmatpush2.msra.mxu0 %v2857
    %2901 = vmatprep.subr.mxu0 %v2856
    %2902 = vmatpush2.msra.mxu0 %v2855
    %2903 = vmatprep.subr.mxu0 %v2854
    %2904 = vmatpush2.msra.mxu0 %v2853
    %2905 = vmatprep.subr.mxu0 %v2852
    %2906 = vmatpush2.msra.mxu0 %v2851
    %2907 = vmatprep.subr.mxu0 %v2850
    %2908 = vmatpush2.msra.mxu0 %v2849
    %2909 = vmatprep.subr.mxu0 %v2848
    %2910 = vmatpush2.msra.mxu0 %v2847
    %2911 = vmatprep.subr.mxu0 %v2846
    %2912 = vmatpush2.msra.mxu0 %v2845
    %2913 = vmatprep.subr.mxu0 %v2844
    %2914 = vmatpush2.msra.mxu0 %v2843
    %2915 = vmatprep.subr.mxu0 %v2842
    %2916 = vmatpush2.msra.mxu0 %v2841
    %2917 = vmatprep.subr.mxu0 %v2840
    %2918 = vmatpush2.msra.mxu0 %v2839
    %2919 = vmatprep.subr.mxu0 %v2838
    %2920 = vmatpush2.msra.mxu0 %v2837
    %2921 = vmatprep.subr.mxu0 %v2836
    %2922 = vmatpush2.msra.mxu0 %v2835
    %2923 = vmatprep.subr.mxu0 %v2834
    %2924 = vmatpush2.msra.mxu0 %v2833
    %2925 = vmatprep.subr.mxu0 %v2832
    %2926 = vmatpush2.msra.mxu0 %v2831
    %2927 = vmatprep.mubr.f32.mxu0 %v72
    %2928 = vmatmul.mubr.f32.gmra.mxu0 %v71
    %v2929 = vpop.f32.mrf.mxu0
    %v2930 = vadd.f32 0.0, %v2929
    %v2931 = vpop.f32.mrf.mxu0
    %v2932 = vadd.f32 0.0, %v2931
    %2933 = vmatprep.mubr.f32.mxu0 %v74
    %2934 = vmatmul.mubr.f32.gmra.mxu0 %v73
    %v2935 = vpop.f32.mrf.mxu0
    %v2936 = vadd.f32 0.0, %v2935
    %v2937 = vpop.f32.mrf.mxu0
    %v2938 = vadd.f32 0.0, %v2937
    %2939 = vdwg.mxu0
    %v2941 = vsel %vm2141, %v2438, 0
    %v2944 = vsel %vm2141, %v2443, 0
    %2946 = vmatprep.subr.mxu0 0.0
    %2947 = vmatpush1.msra.mxu0 0.0
    %2948 = vmatprep.subr.mxu0 0.0
    %2949 = vmatpush1.msra.mxu0 0.0
    %2950 = vmatprep.subr.mxu0 0.0
    %2951 = vmatpush1.msra.mxu0 0.0
    %2952 = vmatprep.subr.mxu0 0.0
    %2953 = vmatpush1.msra.mxu0 0.0
    %2954 = vmatprep.subr.mxu0 0.0
    %2955 = vmatpush1.msra.mxu0 0.0
    %2956 = vmatprep.subr.mxu0 0.0
    %2957 = vmatpush1.msra.mxu0 0.0
    %2958 = vmatprep.subr.mxu0 0.0
    %2959 = vmatpush1.msra.mxu0 0.0
    %2960 = vmatprep.subr.mxu0 0.0
    %2961 = vmatpush1.msra.mxu0 0.0
    %2962 = vmatprep.subr.mxu0 0.0
    %2963 = vmatpush1.msra.mxu0 0.0
    %2964 = vmatprep.subr.mxu0 0.0
    %2965 = vmatpush1.msra.mxu0 0.0
    %2966 = vmatprep.subr.mxu0 0.0
    %2967 = vmatpush1.msra.mxu0 0.0
    %2968 = vmatprep.subr.mxu0 0.0
    %2969 = vmatpush1.msra.mxu0 0.0
    %2970 = vmatprep.subr.mxu0 0.0
    %2971 = vmatpush1.msra.mxu0 0.0
    %2972 = vmatprep.subr.mxu0 0.0
    %2973 = vmatpush1.msra.mxu0 0.0
    %2974 = vmatprep.subr.mxu0 0.0
    %2975 = vmatpush1.msra.mxu0 0.0
    %2976 = vmatprep.subr.mxu0 %v76
    %2977 = vmatpush1.msra.mxu0 %v75
    %2978 = vmatprep.subr.mxu0 0.0
    %2979 = vmatpush2.msra.mxu0 0.0
    %2980 = vmatprep.subr.mxu0 0.0
    %2981 = vmatpush2.msra.mxu0 0.0
    %2982 = vmatprep.subr.mxu0 0.0
    %2983 = vmatpush2.msra.mxu0 0.0
    %2984 = vmatprep.subr.mxu0 0.0
    %2985 = vmatpush2.msra.mxu0 0.0
    %2986 = vmatprep.subr.mxu0 0.0
    %2987 = vmatpush2.msra.mxu0 0.0
    %2988 = vmatprep.subr.mxu0 0.0
    %2989 = vmatpush2.msra.mxu0 0.0
    %2990 = vmatprep.subr.mxu0 0.0
    %2991 = vmatpush2.msra.mxu0 0.0
    %2992 = vmatprep.subr.mxu0 0.0
    %2993 = vmatpush2.msra.mxu0 0.0
    %2994 = vmatprep.subr.mxu0 0.0
    %2995 = vmatpush2.msra.mxu0 0.0
    %2996 = vmatprep.subr.mxu0 0.0
    %2997 = vmatpush2.msra.mxu0 0.0
    %2998 = vmatprep.subr.mxu0 0.0
    %2999 = vmatpush2.msra.mxu0 0.0
    %3000 = vmatprep.subr.mxu0 0.0
    %3001 = vmatpush2.msra.mxu0 0.0
    %3002 = vmatprep.subr.mxu0 0.0
    %3003 = vmatpush2.msra.mxu0 0.0
    %3004 = vmatprep.subr.mxu0 0.0
    %3005 = vmatpush2.msra.mxu0 0.0
    %3006 = vmatprep.subr.mxu0 0.0
    %3007 = vmatpush2.msra.mxu0 0.0
    %3008 = vmatprep.subr.mxu0 0.0
    %3009 = vmatpush2.msra.mxu0 0.0
    %3010 = vmatprep.mubr.f32.mxu0 0.0
    %3011 = vmatmul.mubr.f32.gmra.mxu0 %v2941
    %v3012 = vpop.f32.mrf.mxu0
    %v3013 = vadd.f32 0.0, %v3012
    %v3014 = vpop.f32.mrf.mxu0
    %v3015 = vadd.f32 0.0, %v3014
    %3016 = vmatprep.mubr.f32.mxu0 0.0
    %3017 = vmatmul.mubr.f32.gmra.mxu0 %v2944
    %v3018 = vpop.f32.mrf.mxu0
    %v3019 = vadd.f32 0.0, %v3018
    %v3020 = vpop.f32.mrf.mxu0
    %v3021 = vadd.f32 0.0, %v3020
    %3022 = vdwg.mxu0
    %v3023 = vrcp.pop %v3013
    %v3024 = vmul.f32 %v2930, %v3023
    %v3025 = vrcp.pop %v3015
    %v3026 = vmul.f32 %v2932, %v3025
    %v3027 = vrcp.pop %v3019
    %v3028 = vmul.f32 %v2936, %v3027
    %v3029 = vrcp.pop %v3021
    %v3030 = vmul.f32 %v2938, %v3029
    %v3031 = vld [vmem:[%s14] sm:$0xff]
    %v3032 = vld [vmem:[%s14 + $0x8] sm:$0xff]
    %v3033 = vld [vmem:[%s14 + $0x10] sm:$0xff]
    %v3034 = vld [vmem:[%s14 + $0x18] sm:$0xff]
    %v3035 = vld [vmem:[%s14 + $0x20] sm:$0xff]
    %v3036 = vld [vmem:[%s14 + $0x28] sm:$0xff]
    %v3037 = vld [vmem:[%s14 + $0x30] sm:$0xff]
    %v3038 = vld [vmem:[%s14 + $0x38] sm:$0xff]
    %v3039 = vld [vmem:[%s14 + $0x40] sm:$0xff]
    %v3040 = vld [vmem:[%s14 + $0x48] sm:$0xff]
    %v3041 = vld [vmem:[%s14 + $0x50] sm:$0xff]
    %v3042 = vld [vmem:[%s14 + $0x58] sm:$0xff]
    %v3043 = vld [vmem:[%s14 + $0x60] sm:$0xff]
    %v3044 = vld [vmem:[%s14 + $0x68] sm:$0xff]
    %v3045 = vld [vmem:[%s14 + $0x70] sm:$0xff]
    %v3046 = vld [vmem:[%s14 + $0x78] sm:$0xff]
    %v3047 = vld [vmem:[%s14 + $0x80] sm:$0xff]
    %v3048 = vld [vmem:[%s14 + $0x88] sm:$0xff]
    %v3049 = vld [vmem:[%s14 + $0x90] sm:$0xff]
    %v3050 = vld [vmem:[%s14 + $0x98] sm:$0xff]
    %v3051 = vld [vmem:[%s14 + $0xa0] sm:$0xff]
    %v3052 = vld [vmem:[%s14 + $0xa8] sm:$0xff]
    %v3053 = vld [vmem:[%s14 + $0xb0] sm:$0xff]
    %v3054 = vld [vmem:[%s14 + $0xb8] sm:$0xff]
    %v3055 = vld [vmem:[%s14 + $0xc0] sm:$0xff]
    %v3056 = vld [vmem:[%s14 + $0xc8] sm:$0xff]
    %v3057 = vld [vmem:[%s14 + $0xd0] sm:$0xff]
    %v3058 = vld [vmem:[%s14 + $0xd8] sm:$0xff]
    %v3059 = vld [vmem:[%s14 + $0xe0] sm:$0xff]
    %v3060 = vld [vmem:[%s14 + $0xe8] sm:$0xff]
    %v3061 = vld [vmem:[%s14 + $0xf0] sm:$0xff]
    %v3062 = vld [vmem:[%s14 + $0xf8] sm:$0xff]
    %v3063 = vld [vmem:[%s15] sm:$0x1]
    %v3065 = vlaneseq
    %v3066 = vshrl.u32 %v3065, 7
    %v3067 = vsub.s32 0, %v3066
    %v3068 = vrot.slane %v3063, %v3067
    %3070 = vmatprep.subr.mxu0 0.0
    %3071 = vmatpush1.msra.mxu0 %v3046
    %3072 = vmatprep.subr.mxu0 0.0
    %3073 = vmatpush1.msra.mxu0 %v3045
    %3074 = vmatprep.subr.mxu0 0.0
    %3075 = vmatpush1.msra.mxu0 %v3044
    %3076 = vmatprep.subr.mxu0 0.0
    %3077 = vmatpush1.msra.mxu0 %v3043
    %3078 = vmatprep.subr.mxu0 0.0
    %3079 = vmatpush1.msra.mxu0 %v3042
    %3080 = vmatprep.subr.mxu0 0.0
    %3081 = vmatpush1.msra.mxu0 %v3041
    %3082 = vmatprep.subr.mxu0 0.0
    %3083 = vmatpush1.msra.mxu0 %v3040
    %3084 = vmatprep.subr.mxu0 0.0
    %3085 = vmatpush1.msra.mxu0 %v3039
    %3086 = vmatprep.subr.mxu0 0.0
    %3087 = vmatpush1.msra.mxu0 %v3038
    %3088 = vmatprep.subr.mxu0 0.0
    %3089 = vmatpush1.msra.mxu0 %v3037
    %3090 = vmatprep.subr.mxu0 0.0
    %3091 = vmatpush1.msra.mxu0 %v3036
    %3092 = vmatprep.subr.mxu0 0.0
    %3093 = vmatpush1.msra.mxu0 %v3035
    %3094 = vmatprep.subr.mxu0 0.0
    %3095 = vmatpush1.msra.mxu0 %v3034
    %3096 = vmatprep.subr.mxu0 0.0
    %3097 = vmatpush1.msra.mxu0 %v3033
    %3098 = vmatprep.subr.mxu0 0.0
    %3099 = vmatpush1.msra.mxu0 %v3032
    %3100 = vmatprep.subr.mxu0 0.0
    %3101 = vmatpush1.msra.mxu0 %v3031
    %3102 = vmatprep.subr.mxu0 0.0
    %3103 = vmatpush2.msra.mxu0 %v3062
    %3104 = vmatprep.subr.mxu0 0.0
    %3105 = vmatpush2.msra.mxu0 %v3061
    %3106 = vmatprep.subr.mxu0 0.0
    %3107 = vmatpush2.msra.mxu0 %v3060
    %3108 = vmatprep.subr.mxu0 0.0
    %3109 = vmatpush2.msra.mxu0 %v3059
    %3110 = vmatprep.subr.mxu0 0.0
    %3111 = vmatpush2.msra.mxu0 %v3058
    %3112 = vmatprep.subr.mxu0 0.0
    %3113 = vmatpush2.msra.mxu0 %v3057
    %3114 = vmatprep.subr.mxu0 0.0
    %3115 = vmatpush2.msra.mxu0 %v3056
    %3116 = vmatprep.subr.mxu0 0.0
    %3117 = vmatpush2.msra.mxu0 %v3055
    %3118 = vmatprep.subr.mxu0 0.0
    %3119 = vmatpush2.msra.mxu0 %v3054
    %3120 = vmatprep.subr.mxu0 0.0
    %3121 = vmatpush2.msra.mxu0 %v3053
    %3122 = vmatprep.subr.mxu0 0.0
    %3123 = vmatpush2.msra.mxu0 %v3052
    %3124 = vmatprep.subr.mxu0 0.0
    %3125 = vmatpush2.msra.mxu0 %v3051
    %3126 = vmatprep.subr.mxu0 0.0
    %3127 = vmatpush2.msra.mxu0 %v3050
    %3128 = vmatprep.subr.mxu0 0.0
    %3129 = vmatpush2.msra.mxu0 %v3049
    %3130 = vmatprep.subr.mxu0 0.0
    %3131 = vmatpush2.msra.mxu0 %v3048
    %3132 = vmatprep.subr.mxu0 0.0
    %3133 = vmatpush2.msra.mxu0 %v3047
    %3134 = vmatprep.mubr.f32.mxu0 %v3026
    %3135 = vmatmul.mubr.f32.gmra.mxu0 %v3024
    %v3136 = vpop.f32.mrf.mxu0
    %v3137 = vadd.f32 %v3068, %v3136
    %v3138 = vpop.f32.mrf.mxu0
    %3139 = vmatprep.mubr.f32.mxu0 %v3030
    %3140 = vmatmul.mubr.f32.gmra.mxu0 %v3028
    %v3141 = vpop.f32.mrf.mxu0
    %v3142 = vadd.f32 %v3068, %v3141
    %v3143 = vpop.f32.mrf.mxu0
    %3144 = vdwg.mxu0
    %3145 = vst.msk [vmem:[#allocation2] sm:$0xff] %vm99, %v3137
    %3146 = vst.msk [vmem:[#allocation2 + $0x8] sm:$0xff] %vm99, %v3142
    %v3147 = vld [vmem:[%s3] sm:$0xff]
    %v3149 = vsel %vm99, %v3147, 0
    %3151 = vmatprep.subr.mxu0 0.0
    %3152 = vmatpush1.msra.mxu0 0.0
    %3153 = vmatprep.subr.mxu0 0.0
    %3154 = vmatpush1.msra.mxu0 0.0
    %3155 = vmatprep.subr.mxu0 0.0
    %3156 = vmatpush1.msra.mxu0 0.0
    %3157 = vmatprep.subr.mxu0 0.0
    %3158 = vmatpush1.msra.mxu0 0.0
    %3159 = vmatprep.subr.mxu0 0.0
    %3160 = vmatpush1.msra.mxu0 0.0
    %3161 = vmatprep.subr.mxu0 0.0
    %3162 = vmatpush1.msra.mxu0 0.0
    %3163 = vmatprep.subr.mxu0 0.0
    %3164 = vmatpush1.msra.mxu0 0.0
    %3165 = vmatprep.subr.mxu0 0.0
    %3166 = vmatpush1.msra.mxu0 0.0
    %3167 = vmatprep.subr.mxu0 0.0
    %3168 = vmatpush1.msra.mxu0 0.0
    %3169 = vmatprep.subr.mxu0 0.0
    %3170 = vmatpush1.msra.mxu0 0.0
    %3171 = vmatprep.subr.mxu0 0.0
    %3172 = vmatpush1.msra.mxu0 0.0
    %3173 = vmatprep.subr.mxu0 0.0
    %3174 = vmatpush1.msra.mxu0 0.0
    %3175 = vmatprep.subr.mxu0 %v70
    %3176 = vmatpush1.msra.mxu0 %v69
    %3177 = vmatprep.subr.mxu0 %v68
    %3178 = vmatpush1.msra.mxu0 %v67
    %3179 = vmatprep.subr.mxu0 %v66
    %3180 = vmatpush1.msra.mxu0 %v65
    %3181 = vmatprep.subr.mxu0 %v64
    %3182 = vmatpush1.msra.mxu0 %v63
    %3183 = vmatprep.subr.mxu0 0.0
    %3184 = vmatpush2.msra.mxu0 0.0
    %3185 = vmatprep.subr.mxu0 0.0
    %3186 = vmatpush2.msra.mxu0 0.0
    %3187 = vmatprep.subr.mxu0 0.0
    %3188 = vmatpush2.msra.mxu0 0.0
    %3189 = vmatprep.subr.mxu0 0.0
    %3190 = vmatpush2.msra.mxu0 0.0
    %3191 = vmatprep.subr.mxu0 0.0
    %3192 = vmatpush2.msra.mxu0 0.0
    %3193 = vmatprep.subr.mxu0 0.0
    %3194 = vmatpush2.msra.mxu0 0.0
    %3195 = vmatprep.subr.mxu0 0.0
    %3196 = vmatpush2.msra.mxu0 0.0
    %3197 = vmatprep.subr.mxu0 0.0
    %3198 = vmatpush2.msra.mxu0 0.0
    %3199 = vmatprep.subr.mxu0 0.0
    %3200 = vmatpush2.msra.mxu0 0.0
    %3201 = vmatprep.subr.mxu0 0.0
    %3202 = vmatpush2.msra.mxu0 0.0
    %3203 = vmatprep.subr.mxu0 0.0
    %3204 = vmatpush2.msra.mxu0 0.0
    %3205 = vmatprep.subr.mxu0 0.0
    %3206 = vmatpush2.msra.mxu0 0.0
    %3207 = vmatprep.subr.mxu0 0.0
    %3208 = vmatpush2.msra.mxu0 0.0
    %3209 = vmatprep.subr.mxu0 0.0
    %3210 = vmatpush2.msra.mxu0 0.0
    %3211 = vmatprep.subr.mxu0 0.0
    %3212 = vmatpush2.msra.mxu0 0.0
    %3213 = vmatprep.subr.mxu0 0.0
    %3214 = vmatpush2.msra.mxu0 0.0
    %3215 = vmatprep.mubr.f32.mxu0 0.0
    %3216 = vmatmul.mubr.f32.gmra.mxu0 %v3149
    %v3217 = vpop.f32.mrf.mxu0
    %v3218 = vadd.f32 0.0, %v3217
    %v3219 = vpop.f32.mrf.mxu0
    %v3220 = vadd.f32 0.0, %v3219
    %3221 = vdwg.mxu0
    %v3222 = vmax.f32 %v3218, 0.0
    %v3223 = vmax.f32 %v3220, 0.0
    %v3224 = vld [vmem:[%s16] sm:$0xff]
    %v3225 = vld [vmem:[%s16 + $0x8] sm:$0xff]
    %v3226 = vld [vmem:[%s16 + $0x10] sm:$0xff]
    %v3227 = vld [vmem:[%s16 + $0x18] sm:$0xff]
    %v3228 = vld [vmem:[%s16 + $0x20] sm:$0xff]
    %v3229 = vld [vmem:[%s16 + $0x28] sm:$0xff]
    %v3230 = vld [vmem:[%s16 + $0x30] sm:$0xff]
    %v3231 = vld [vmem:[%s16 + $0x38] sm:$0xff]
    %v3232 = vld [vmem:[%s16 + $0x40] sm:$0xff]
    %v3233 = vld [vmem:[%s16 + $0x48] sm:$0xff]
    %v3234 = vld [vmem:[%s16 + $0x50] sm:$0xff]
    %v3235 = vld [vmem:[%s16 + $0x58] sm:$0xff]
    %v3236 = vld [vmem:[%s16 + $0x60] sm:$0xff]
    %v3237 = vld [vmem:[%s16 + $0x68] sm:$0xff]
    %v3238 = vld [vmem:[%s16 + $0x70] sm:$0xff]
    %v3239 = vld [vmem:[%s16 + $0x78] sm:$0xff]
    %v3240 = vld [vmem:[%s16 + $0x80] sm:$0xff]
    %v3241 = vld [vmem:[%s16 + $0x88] sm:$0xff]
    %v3242 = vld [vmem:[%s16 + $0x90] sm:$0xff]
    %v3243 = vld [vmem:[%s16 + $0x98] sm:$0xff]
    %v3244 = vld [vmem:[%s16 + $0xa0] sm:$0xff]
    %v3245 = vld [vmem:[%s16 + $0xa8] sm:$0xff]
    %v3246 = vld [vmem:[%s16 + $0xb0] sm:$0xff]
    %v3247 = vld [vmem:[%s16 + $0xb8] sm:$0xff]
    %v3248 = vld [vmem:[%s16 + $0xc0] sm:$0xff]
    %v3249 = vld [vmem:[%s16 + $0xc8] sm:$0xff]
    %v3250 = vld [vmem:[%s16 + $0xd0] sm:$0xff]
    %v3251 = vld [vmem:[%s16 + $0xd8] sm:$0xff]
    %v3252 = vld [vmem:[%s16 + $0xe0] sm:$0xff]
    %v3253 = vld [vmem:[%s16 + $0xe8] sm:$0xff]
    %v3254 = vld [vmem:[%s16 + $0xf0] sm:$0xff]
    %v3255 = vld [vmem:[%s16 + $0xf8] sm:$0xff]
    %v3256 = vld [vmem:[%s17] sm:$0x1]
    %v3258 = vlaneseq
    %v3259 = vshrl.u32 %v3258, 7
    %v3260 = vsub.s32 0, %v3259
    %v3261 = vrot.slane %v3256, %v3260
    %3263 = vmatprep.subr.mxu0 0.0
    %3264 = vmatpush1.msra.mxu0 %v3239
    %3265 = vmatprep.subr.mxu0 0.0
    %3266 = vmatpush1.msra.mxu0 %v3238
    %3267 = vmatprep.subr.mxu0 0.0
    %3268 = vmatpush1.msra.mxu0 %v3237
    %3269 = vmatprep.subr.mxu0 0.0
    %3270 = vmatpush1.msra.mxu0 %v3236
    %3271 = vmatprep.subr.mxu0 0.0
    %3272 = vmatpush1.msra.mxu0 %v3235
    %3273 = vmatprep.subr.mxu0 0.0
    %3274 = vmatpush1.msra.mxu0 %v3234
    %3275 = vmatprep.subr.mxu0 0.0
    %3276 = vmatpush1.msra.mxu0 %v3233
    %3277 = vmatprep.subr.mxu0 0.0
    %3278 = vmatpush1.msra.mxu0 %v3232
    %3279 = vmatprep.subr.mxu0 0.0
    %3280 = vmatpush1.msra.mxu0 %v3231
    %3281 = vmatprep.subr.mxu0 0.0
    %3282 = vmatpush1.msra.mxu0 %v3230
    %3283 = vmatprep.subr.mxu0 0.0
    %3284 = vmatpush1.msra.mxu0 %v3229
    %3285 = vmatprep.subr.mxu0 0.0
    %3286 = vmatpush1.msra.mxu0 %v3228
    %3287 = vmatprep.subr.mxu0 0.0
    %3288 = vmatpush1.msra.mxu0 %v3227
    %3289 = vmatprep.subr.mxu0 0.0
    %3290 = vmatpush1.msra.mxu0 %v3226
    %3291 = vmatprep.subr.mxu0 0.0
    %3292 = vmatpush1.msra.mxu0 %v3225
    %3293 = vmatprep.subr.mxu0 0.0
    %3294 = vmatpush1.msra.mxu0 %v3224
    %3295 = vmatprep.subr.mxu0 0.0
    %3296 = vmatpush2.msra.mxu0 %v3255
    %3297 = vmatprep.subr.mxu0 0.0
    %3298 = vmatpush2.msra.mxu0 %v3254
    %3299 = vmatprep.subr.mxu0 0.0
    %3300 = vmatpush2.msra.mxu0 %v3253
    %3301 = vmatprep.subr.mxu0 0.0
    %3302 = vmatpush2.msra.mxu0 %v3252
    %3303 = vmatprep.subr.mxu0 0.0
    %3304 = vmatpush2.msra.mxu0 %v3251
    %3305 = vmatprep.subr.mxu0 0.0
    %3306 = vmatpush2.msra.mxu0 %v3250
    %3307 = vmatprep.subr.mxu0 0.0
    %3308 = vmatpush2.msra.mxu0 %v3249
    %3309 = vmatprep.subr.mxu0 0.0
    %3310 = vmatpush2.msra.mxu0 %v3248
    %3311 = vmatprep.subr.mxu0 0.0
    %3312 = vmatpush2.msra.mxu0 %v3247
    %3313 = vmatprep.subr.mxu0 0.0
    %3314 = vmatpush2.msra.mxu0 %v3246
    %3315 = vmatprep.subr.mxu0 0.0
    %3316 = vmatpush2.msra.mxu0 %v3245
    %3317 = vmatprep.subr.mxu0 0.0
    %3318 = vmatpush2.msra.mxu0 %v3244
    %3319 = vmatprep.subr.mxu0 0.0
    %3320 = vmatpush2.msra.mxu0 %v3243
    %3321 = vmatprep.subr.mxu0 0.0
    %3322 = vmatpush2.msra.mxu0 %v3242
    %3323 = vmatprep.subr.mxu0 0.0
    %3324 = vmatpush2.msra.mxu0 %v3241
    %3325 = vmatprep.subr.mxu0 0.0
    %3326 = vmatpush2.msra.mxu0 %v3240
    %3327 = vmatprep.mubr.f32.mxu0 %v3223
    %3328 = vmatmul.mubr.f32.gmra.mxu0 %v3222
    %v3329 = vpop.f32.mrf.mxu0
    %v3330 = vadd.f32 %v3261, %v3329
    %v3331 = vpop.f32.mrf.mxu0
    %3332 = vdwg.mxu0
    %3333 = vst.msk [vmem:[#allocation4] sm:$0xff] %vm99, %v3330
    // Predicated region
    $region74: #{tpu_custom_call.1} parent=1 // pred_check
      _
    $region75: #{tpu_custom_call.1} parent=1 // pred_check_branch
      %3335 = sbr.rel (0) target = $region77
    $region76: #{tpu_custom_call.1} parent=1 // pred_region
      %s3337 = ssub.s32 256, 256
      %3338 = vsyncadd [#allocation3], %s3337
      %s3339 = sshll.u32 [#allocation2], 4
      %s3340 = int_to_ptr.vmem [resolvable:$true] %s3339
      %3345 = dma.vmem_to_hbm [thread:$0]  %s3340, 256, %s18, [#allocation3], 128, 128, 8
    $region77: #{tpu_custom_call.1} parent=1 // pred_fallthru
      _
    // Predicated region
    $region78: #{tpu_custom_call.1} parent=1 // pred_check
      _
    $region79: #{tpu_custom_call.1} parent=1 // pred_check_branch
      %3347 = sbr.rel (0) target = $region81
    $region80: #{tpu_custom_call.1} parent=1 // pred_region
      %s3349 = ssub.s32 128, 128
      %3350 = vsyncadd [#allocation5], %s3349
      %s3352 = sshll.u32 [#allocation4], 4
      %s3353 = int_to_ptr.vmem [resolvable:$true] %s3352
      %3355 = dma.vmem_to_hbm [thread:$0]  %s3353, 128, %s19, [#allocation5]
    $region81: #{tpu_custom_call.1} parent=1 // pred_fallthru
      _
    // Predicated region
    $region82: #{tpu_custom_call.1} parent=1 // pred_check
      _
    $region83: #{tpu_custom_call.1} parent=1 // pred_check_branch
      %3357 = sbr.rel (0) target = $region85
    $region84: #{tpu_custom_call.1} parent=1 // pred_region
      %3358 = dma.done [#allocation3], 256
    $region85: #{tpu_custom_call.1} parent=1 // pred_fallthru
      _
    // Predicated region
    $region86: #{tpu_custom_call.1} parent=1 // pred_check
      _
    $region87: #{tpu_custom_call.1} parent=1 // pred_check_branch
      %3360 = sbr.rel (0) target = $region89
    $region88: #{tpu_custom_call.1} parent=1 // pred_region
      %3361 = dma.done [#allocation5], 128
    $region89: #{tpu_custom_call.1} parent=1 // pred_fallthru
      _
    %3362 = vsyncpa [#allocation3], 1
    %3363 = vsyncpa [#allocation5], 1

</llo_original>
